<compile_context>
chip_gen: v7x
topology: tpu7x:2x2x1
jax: 0.10.0
libtpu: 0.0.40
codegen_flags: <defaults>
</compile_context>

<pallas_src>
import collections
import functools

import jax
import jax.numpy as jnp
from jax.experimental import pallas as pl
from jax.experimental.pallas import tpu as pltpu

LANE = 128
SUBLANE = 8

ChipConfig = collections.namedtuple(
    "ChipConfig",
    ["generation", "num_cores", "vmem_limit_bytes", "vmem_budget_bytes", "silu_dtype"],
)


def _round_up(x, m):
    return (x + m - 1) // m * m


def _chip_config():
    """Generation-aware VMEM budget / TensorCore count / SiLU dtype."""
    kind = ""
    try:
        kind = jax.devices()[0].device_kind.lower()
    except Exception:
        pass
    if "v7" in kind or "7x" in kind:
        gen, num_cores, fallback_vmem = 7, 2, 64 * 1024 * 1024
    elif "v6" in kind:
        gen, num_cores, fallback_vmem = 6, 1, 128 * 1024 * 1024
    elif "v5p" in kind:
        gen, num_cores, fallback_vmem = 5, 2, 128 * 1024 * 1024
    elif "v5" in kind:
        gen, num_cores, fallback_vmem = 5, 1, 128 * 1024 * 1024
    else:  # unknown / older: conservative
        gen, num_cores, fallback_vmem = 6, 1, 64 * 1024 * 1024
    try:
        vmem_cap = int(pltpu.get_tpu_info().vmem_capacity_bytes)
    except Exception:
        vmem_cap = fallback_vmem
    vmem_limit = (vmem_cap * 7) // 8      # headroom for compiler internal scratch
    vmem_budget = (vmem_cap * 3) // 4     # what _choose_tm is allowed to plan with
    silu_dtype = jnp.bfloat16 if gen >= 6 else jnp.float32  # v5e has no bf16 VPU/EUP
    return ChipConfig(gen, num_cores, int(vmem_limit), int(vmem_budget), silu_dtype)


def _pad_dim(d, cfg):
    """Lane-dense feature dim; 256-granule above 128 on v6e/v7x (2x256x256 MXU)."""
    if d <= LANE:
        return LANE
    granule = 256 if cfg.generation >= 6 else LANE
    return _round_up(d, granule)


def _mlp_kernel(*refs, num_layers, has_bias, silu_dtype):
    """refs = (x_ref, w0, [b0], w1, b1, ..., o_ref).  Layer-0 bias may be folded."""
    x_ref = refs[0]
    o_ref = refs[-1]
    params = refs[1:-1]

    h = x_ref[...]  # bf16 (tm, pdims[0]) row tile
    p = 0
    for l in range(num_layers):
        w = params[p][...]  # bf16 (d_in_pad, d_out_pad), VMEM resident, single-buffered
        p += 1
        y = jnp.dot(h, w, preferred_element_type=jnp.float32)  # MXU, f32 accumulate
        if has_bias[l]:
            y = y + params[p][...]  # f32 (1, d_out_pad) bias, VPU add
            p += 1
        if l != num_layers - 1:
            # SiLU: sigmoid hits the EUP slot, mul the VPU.  bf16 on v6e/v7x halves
            # the VPU/EUP data volume and vreg pressure; f32 on v5e.
            ya = y.astype(silu_dtype)
            h = (ya * jax.nn.sigmoid(ya)).astype(jnp.bfloat16)
        else:
            h = y
    o_ref[...] = h.astype(o_ref.dtype)


def _choose_tm(n, pdims, cfg):
    """Row tile: biggest that fits the (chip-specific) VMEM budget, targeting ~2
    trips (multiple of the TensorCore count) and >=512-row tiles."""
    n_sub = _round_up(max(n, 1), SUBLANE)
    num_layers = len(pdims) - 1
    # Weights/biases are single-buffered (constant index map + pl.Buffered(1)).
    w_bytes = sum(2 * pdims[l] * pdims[l + 1] + 4 * pdims[l + 1]
                  for l in range(num_layers))
    # Per-row live bytes: double-buffered bf16 x tile, double-buffered f32 out tile,
    # plus (f32 y + sigmoid temp + bf16 recast of h) on the widest layer.
    per_row = 4 * pdims[0] + 8 * pdims[-1] + 10 * max(pdims)
    avail = cfg.vmem_budget_bytes - w_bytes
    if avail < per_row * SUBLANE:
        # TODO(synk): K-'arbitrary' staged weight path (VMEM f32 accumulator) for
        # MLPs whose resident weights exceed the VMEM budget (v7x: 64 MiB).
        raise NotImplementedError(
            "MLP weights exceed the VMEM budget; staged weight path not implemented")
    tm_cap = max(SUBLANE, (avail // per_row) // SUBLANE * SUBLANE)

    target_trips = 2 * cfg.num_cores
    tm_want = max(_round_up(pl.cdiv(n_sub, target_trips), SUBLANE), min(512, n_sub))
    tm = min(tm_cap, n_sub, _round_up(tm_want, SUBLANE))
    if cfg.num_cores > 1:
        # Keep the 'parallel' grid a multiple of the TensorCore count.
        trips = _round_up(pl.cdiv(n_sub, tm), cfg.num_cores)
        tm = min(tm, _round_up(pl.cdiv(n_sub, trips), SUBLANE))
    return max(tm, SUBLANE)


def mlp_forward(x, params):
    """Forward pass matching MLP.forward: Linear -> SiLU -> ... -> Linear.

    x: (N, D0) f32.  params: list of (W, b) with W stored as (D_in, D_out)
    (i.e. transposed vs PyTorch's (out, in)) and b as (D_out,), both f32.
    """
    cfg = _chip_config()
    n, d_in = x.shape
    num_layers = len(params)
    dims = [d_in] + [w.shape[1] for (w, _) in params]
    pdims = [_pad_dim(d, cfg) for d in dims]

    tm = _choose_tm(n, pdims, cfg)
    n_pad = _round_up(n, tm)
    grid = (n_pad // tm,)

    # Fold the layer-0 bias into a spare zero-padded K row of W0 (rides the MXU).
    fold_bias0 = dims[0] < pdims[0]

    # --- input: fused bf16 convert + ones column + pad (one wrapper HBM pass) -----
    x_bf = x.astype(jnp.bfloat16)
    if fold_bias0:
        x_bf = jnp.concatenate([x_bf, jnp.ones((n, 1), jnp.bfloat16)], axis=1)
    x_p = jnp.pad(x_bf, ((0, n_pad - n), (0, pdims[0] - x_bf.shape[1])))

    # --- parameters (zero padding is exact through the network) -------------------
    flat_args = [x_p]
    wspec_shapes = []
    has_bias = []
    for l, (w, b) in enumerate(params):
        if l == 0 and fold_bias0:
            w_aug = jnp.concatenate([w, b[None, :]], axis=0)  # bias as extra K row
            wp = jnp.pad(w_aug.astype(jnp.bfloat16),
                         ((0, pdims[0] - (dims[0] + 1)), (0, pdims[1] - dims[1])))
            flat_args.append(wp)
            wspec_shapes.append((pdims[0], pdims[1]))
            has_bias.append(False)
        else:
            wp = jnp.pad(w.astype(jnp.bfloat16),
                         ((0, pdims[l] - dims[l]), (0, pdims[l + 1] - dims[l + 1])))
            bp = jnp.pad(b[None, :].astype(jnp.float32),
                         ((0, 0), (0, pdims[l + 1] - dims[l + 1])))
            flat_args += [wp, bp]
            wspec_shapes += [(pdims[l], pdims[l + 1]), (1, pdims[l + 1])]
            has_bias.append(True)

    kernel = functools.partial(_mlp_kernel, num_layers=num_layers,
                               has_bias=tuple(has_bias), silu_dtype=cfg.silu_dtype)

    # --- advisory cost estimate ----------------------------------------------------
    flops = 2 * n_pad * sum(pdims[l] * pdims[l + 1] for l in range(num_layers))
    transcendentals = n_pad * sum(pdims[1:-1])  # one sigmoid per hidden activation
    bytes_accessed = int(
        x_p.size * 2
        + sum(int(a.size) * a.dtype.itemsize for a in flat_args[1:])
        + n_pad * pdims[-1] * 4
    )

    def run(single_buffer_weights):
        x_spec = pl.BlockSpec((tm, pdims[0]), lambda i: (i, 0))
        if single_buffer_weights:
            wspecs = [pl.BlockSpec(s, lambda i: (0, 0), pipeline_mode=pl.Buffered(1))
                      for s in wspec_shapes]
        else:
            wspecs = [pl.BlockSpec(s, lambda i: (0, 0)) for s in wspec_shapes]
        out_spec = pl.BlockSpec((tm, pdims[-1]), lambda i: (i, 0))
        return pl.pallas_call(
            kernel,
            out_shape=jax.ShapeDtypeStruct((n_pad, pdims[-1]), jnp.float32),
            grid_spec=pltpu.PrefetchScalarGridSpec(
                num_scalar_prefetch=0,
                grid=grid,
                in_specs=[x_spec] + wspecs,
                out_specs=out_spec,
            ),
            compiler_params=pltpu.CompilerParams(
                dimension_semantics=("parallel",),
                vmem_limit_bytes=cfg.vmem_limit_bytes,
            ),
            cost_estimate=pl.CostEstimate(
                flops=int(flops),
                transcendentals=int(transcendentals),
                bytes_accessed=bytes_accessed,
            ),
        )(*flat_args)

    try:
        out_p = run(True)
    except Exception:
        # Fallback if this jax/Mosaic version rejects single-buffered constant
        # blocks (pl.Buffered(1)); numerics are identical, only VMEM use differs.
        out_p = run(False)

    # TODO(synk): for bandwidth-bound callers, emit bf16 output / fuse this un-pad
    # slice into the consumer instead of returning an f32 slab and slicing.
    return out_p[:n, : dims[-1]]


def init_mlp_params(key, layer_vec):
    """Deterministic init mimicking nn.Linear (uniform +-1/sqrt(fan_in))."""
    params = []
    for k in range(len(layer_vec) - 1):
        d_in, d_out = layer_vec[k], layer_vec[k + 1]
        key, wk, bk = jax.random.split(key, 3)
        bound = 1.0 / jnp.sqrt(d_in)
        # W stored as (D_in, D_out) = PyTorch weight.T for row-major matmul.
        w = jax.random.uniform(wk, (d_in, d_out), jnp.float32, -bound, bound)
        b = jax.random.uniform(bk, (d_out,), jnp.float32, -bound, bound)
        params.append((w, b))
    return params


if __name__ == "__main__":
    key = jax.random.PRNGKey(0)
    layer_vec = [32, 64, 64, 16]  # 3 Linear layers, SiLU between the first two
    n_nodes = 1024                # real row count so the grid has trip count >= 2

    key, xk, pk = jax.random.split(key, 3)
    x = jax.random.normal(xk, (n_nodes, layer_vec[0]), jnp.float32)
    params = init_mlp_params(pk, layer_vec)

    out = mlp_forward(x, params)
    out = jax.block_until_ready(out)
    assert out.shape == (n_nodes, layer_vec[-1])

    cfg = _chip_config()

    # Reference 1: quantization-matched (bf16 MXU inputs, chip-matched SiLU dtype).
    ref_q = x
    for idx, (w, b) in enumerate(params):
        ref_q = jnp.dot(
            ref_q.astype(jnp.bfloat16),
            w.astype(jnp.bfloat16),
            preferred_element_type=jnp.float32,
        ) + b
        if idx != len(params) - 1:
            r = ref_q.astype(cfg.silu_dtype)
            ref_q = (r * jax.nn.sigmoid(r)).astype(jnp.float32)
    assert jnp.allclose(out, ref_q, atol=2e-2, rtol=2e-2)

    # Reference 2: full f32 (loose tolerance due to bf16 MXU inputs).
    ref_f32 = x
    for idx, (w, b) in enumerate(params):
        ref_f32 = ref_f32 @ w + b
        if idx != len(params) - 1:
            ref_f32 = ref_f32 * jax.nn.sigmoid(ref_f32)
    assert jnp.allclose(out, ref_f32, atol=5e-2, rtol=5e-2)

    print("KERNEL_OK")
</pallas_src>

<mosaic_0001>
module attributes {stable_mosaic.version = 11 : i64} {
  func.func @_mlp_kernel(%arg0: i32, %arg1: memref<512x128xbf16, #tpu.memory_space<vmem>>, %arg2: memref<128x128xbf16, #tpu.memory_space<vmem>>, %arg3: memref<128x128xbf16, #tpu.memory_space<vmem>>, %arg4: memref<1x128xf32, #tpu.memory_space<vmem>>, %arg5: memref<128x128xbf16, #tpu.memory_space<vmem>>, %arg6: memref<1x128xf32, #tpu.memory_space<vmem>>, %arg7: memref<512x128xf32, #tpu.memory_space<vmem>>) attributes {dimension_semantics = [#tpu.dimension_semantics<parallel>], iteration_bounds = array<i64: 2>, scalar_prefetch = 0 : i64, scratch_operands = 0 : i64, tpu.core_type = #tpu.core_type<tc>, window_params = [{transform_indices = @transform_0, window_bounds = array<i64: 512, 128>}, {pipeline_mode = #tpu.pipeline_mode<synchronous>, transform_indices = @transform_1, window_bounds = array<i64: 128, 128>}, {pipeline_mode = #tpu.pipeline_mode<synchronous>, transform_indices = @transform_2, window_bounds = array<i64: 128, 128>}, {pipeline_mode = #tpu.pipeline_mode<synchronous>, transform_indices = @transform_3, window_bounds = array<i64: 1, 128>}, {pipeline_mode = #tpu.pipeline_mode<synchronous>, transform_indices = @transform_4, window_bounds = array<i64: 128, 128>}, {pipeline_mode = #tpu.pipeline_mode<synchronous>, transform_indices = @transform_5, window_bounds = array<i64: 1, 128>}, {transform_indices = @transform_6, window_bounds = array<i64: 512, 128>}]} {
    %c0 = arith.constant 0 : index
    %c0_0 = arith.constant 0 : index
    %0 = vector.load %arg1[%c0, %c0_0] : memref<512x128xbf16, #tpu.memory_space<vmem>>, vector<512x128xbf16>
    %c0_1 = arith.constant 0 : index
    %c0_2 = arith.constant 0 : index
    %1 = vector.load %arg2[%c0_1, %c0_2] : memref<128x128xbf16, #tpu.memory_space<vmem>>, vector<128x128xbf16>
    %cst = arith.constant dense<0.000000e+00> : vector<512x128xf32>
    %2 = tpu.matmul %0, %1, %cst {dimension_numbers = #tpu.dot_dimension_numbers<[1], [0], [0], [1], [0, 0, 1, 1], [], []>} : vector<512x128xbf16>, vector<128x128xbf16>, vector<512x128xf32> -> vector<512x128xf32>
    %3 = arith.truncf %2 : vector<512x128xf32> to vector<512x128xbf16>
    %4 = arith.negf %3 : vector<512x128xbf16>
    %5 = math.exp %4 : vector<512x128xbf16>
    %cst_3 = arith.constant 1.000000e+00 : bf16
    %6 = vector.broadcast %cst_3 : bf16 to vector<512x128xbf16>
    %7 = arith.addf %6, %5 : vector<512x128xbf16>
    %8 = arith.divf %6, %7 : vector<512x128xbf16>
    %9 = arith.mulf %3, %8 : vector<512x128xbf16>
    %c0_4 = arith.constant 0 : index
    %c0_5 = arith.constant 0 : index
    %10 = vector.load %arg3[%c0_4, %c0_5] : memref<128x128xbf16, #tpu.memory_space<vmem>>, vector<128x128xbf16>
    %cst_6 = arith.constant dense<0.000000e+00> : vector<512x128xf32>
    %11 = tpu.matmul %9, %10, %cst_6 {dimension_numbers = #tpu.dot_dimension_numbers<[1], [0], [0], [1], [0, 0, 1, 1], [], []>} : vector<512x128xbf16>, vector<128x128xbf16>, vector<512x128xf32> -> vector<512x128xf32>
    %c0_7 = arith.constant 0 : index
    %c0_8 = arith.constant 0 : index
    %12 = vector.load %arg4[%c0_7, %c0_8] : memref<1x128xf32, #tpu.memory_space<vmem>>, vector<1x128xf32>
    %13 = vector.broadcast %12 : vector<1x128xf32> to vector<512x128xf32>
    %14 = arith.addf %11, %13 : vector<512x128xf32>
    %15 = arith.truncf %14 : vector<512x128xf32> to vector<512x128xbf16>
    %16 = arith.negf %15 : vector<512x128xbf16>
    %17 = math.exp %16 : vector<512x128xbf16>
    %cst_9 = arith.constant 1.000000e+00 : bf16
    %18 = vector.broadcast %cst_9 : bf16 to vector<512x128xbf16>
    %19 = arith.addf %18, %17 : vector<512x128xbf16>
    %20 = arith.divf %18, %19 : vector<512x128xbf16>
    %21 = arith.mulf %15, %20 : vector<512x128xbf16>
    %c0_10 = arith.constant 0 : index
    %c0_11 = arith.constant 0 : index
    %22 = vector.load %arg5[%c0_10, %c0_11] : memref<128x128xbf16, #tpu.memory_space<vmem>>, vector<128x128xbf16>
    %cst_12 = arith.constant dense<0.000000e+00> : vector<512x128xf32>
    %23 = tpu.matmul %21, %22, %cst_12 {dimension_numbers = #tpu.dot_dimension_numbers<[1], [0], [0], [1], [0, 0, 1, 1], [], []>} : vector<512x128xbf16>, vector<128x128xbf16>, vector<512x128xf32> -> vector<512x128xf32>
    %c0_13 = arith.constant 0 : index
    %c0_14 = arith.constant 0 : index
    %24 = vector.load %arg6[%c0_13, %c0_14] : memref<1x128xf32, #tpu.memory_space<vmem>>, vector<1x128xf32>
    %25 = vector.broadcast %24 : vector<1x128xf32> to vector<512x128xf32>
    %26 = arith.addf %23, %25 : vector<512x128xf32>
    %c0_15 = arith.constant 0 : index
    %c0_16 = arith.constant 0 : index
    %27 = vector.load %arg7[%c0_15, %c0_16] : memref<512x128xf32, #tpu.memory_space<vmem>>, vector<512x128xf32>
    tpu.vector_store %arg7[%c0_15, %c0_16], %26 {strides = array<i32>} : memref<512x128xf32, #tpu.memory_space<vmem>>, vector<512x128xf32>,
    return
  }
  func.func @transform_0(%arg0: i32) -> (i32, i32) {
    %c0_i32 = arith.constant 0 : i32
    %c0_i32_0 = arith.constant 0 : i32
    return %arg0, %c0_i32 : i32, i32
  }
  func.func @transform_1(%arg0: i32) -> (i32, i32) {
    %c0_i32 = arith.constant 0 : i32
    %c0_i32_0 = arith.constant 0 : i32
    %c0_i32_1 = arith.constant 0 : i32
    return %c0_i32, %c0_i32_0 : i32, i32
  }
  func.func @transform_2(%arg0: i32) -> (i32, i32) {
    %c0_i32 = arith.constant 0 : i32
    %c0_i32_0 = arith.constant 0 : i32
    %c0_i32_1 = arith.constant 0 : i32
    return %c0_i32, %c0_i32_0 : i32, i32
  }
  func.func @transform_3(%arg0: i32) -> (i32, i32) {
    %c0_i32 = arith.constant 0 : i32
    %c0_i32_0 = arith.constant 0 : i32
    %c0_i32_1 = arith.constant 0 : i32
    return %c0_i32, %c0_i32_0 : i32, i32
  }
  func.func @transform_4(%arg0: i32) -> (i32, i32) {
    %c0_i32 = arith.constant 0 : i32
    %c0_i32_0 = arith.constant 0 : i32
    %c0_i32_1 = arith.constant 0 : i32
    return %c0_i32, %c0_i32_0 : i32, i32
  }
  func.func @transform_5(%arg0: i32) -> (i32, i32) {
    %c0_i32 = arith.constant 0 : i32
    %c0_i32_0 = arith.constant 0 : i32
    %c0_i32_1 = arith.constant 0 : i32
    return %c0_i32, %c0_i32_0 : i32, i32
  }
  func.func @transform_6(%arg0: i32) -> (i32, i32) {
    %c0_i32 = arith.constant 0 : i32
    %c0_i32_0 = arith.constant 0 : i32
    return %arg0, %c0_i32 : i32, i32
  }
}

module attributes {stable_mosaic.version = 11 : i64} {
  func.func @_mlp_kernel(%arg0: i32, %arg1: memref<512x128xbf16, #tpu.memory_space<vmem>>, %arg2: memref<128x128xbf16, #tpu.memory_space<vmem>>, %arg3: memref<128x128xbf16, #tpu.memory_space<vmem>>, %arg4: memref<1x128xf32, #tpu.memory_space<vmem>>, %arg5: memref<128x128xbf16, #tpu.memory_space<vmem>>, %arg6: memref<1x128xf32, #tpu.memory_space<vmem>>, %arg7: memref<512x128xf32, #tpu.memory_space<vmem>>) attributes {dimension_semantics = [#tpu.dimension_semantics<parallel>], iteration_bounds = array<i64: 2>, scalar_prefetch = 0 : i64, scratch_operands = 0 : i64, tpu.core_type = #tpu.core_type<tc>, window_params = [{transform_indices = @transform_0, window_bounds = array<i64: 512, 128>}, {pipeline_mode = #tpu.pipeline_mode<synchronous>, transform_indices = @transform_1, window_bounds = array<i64: 128, 128>}, {pipeline_mode = #tpu.pipeline_mode<synchronous>, transform_indices = @transform_2, window_bounds = array<i64: 128, 128>}, {pipeline_mode = #tpu.pipeline_mode<synchronous>, transform_indices = @transform_3, window_bounds = array<i64: 1, 128>}, {pipeline_mode = #tpu.pipeline_mode<synchronous>, transform_indices = @transform_4, window_bounds = array<i64: 128, 128>}, {pipeline_mode = #tpu.pipeline_mode<synchronous>, transform_indices = @transform_5, window_bounds = array<i64: 1, 128>}, {transform_indices = @transform_6, window_bounds = array<i64: 512, 128>}]} {
    %c0 = arith.constant 0 : index
    %c0_0 = arith.constant 0 : index
    %0 = vector.load %arg1[%c0, %c0_0] : memref<512x128xbf16, #tpu.memory_space<vmem>>, vector<512x128xbf16>
    %c0_1 = arith.constant 0 : index
    %c0_2 = arith.constant 0 : index
    %1 = vector.load %arg2[%c0_1, %c0_2] : memref<128x128xbf16, #tpu.memory_space<vmem>>, vector<128x128xbf16>
    %cst = arith.constant dense<0.000000e+00> : vector<512x128xf32>
    %2 = tpu.matmul %0, %1, %cst {dimension_numbers = #tpu.dot_dimension_numbers<[1], [0], [0], [1], [0, 0, 1, 1], [], []>} : vector<512x128xbf16>, vector<128x128xbf16>, vector<512x128xf32> -> vector<512x128xf32>
    %3 = arith.truncf %2 : vector<512x128xf32> to vector<512x128xbf16>
    %4 = arith.negf %3 : vector<512x128xbf16>
    %5 = math.exp %4 : vector<512x128xbf16>
    %cst_3 = arith.constant 1.000000e+00 : bf16
    %6 = vector.broadcast %cst_3 : bf16 to vector<512x128xbf16>
    %7 = arith.addf %6, %5 : vector<512x128xbf16>
    %8 = arith.divf %6, %7 : vector<512x128xbf16>
    %9 = arith.mulf %3, %8 : vector<512x128xbf16>
    %c0_4 = arith.constant 0 : index
    %c0_5 = arith.constant 0 : index
    %10 = vector.load %arg3[%c0_4, %c0_5] : memref<128x128xbf16, #tpu.memory_space<vmem>>, vector<128x128xbf16>
    %cst_6 = arith.constant dense<0.000000e+00> : vector<512x128xf32>
    %11 = tpu.matmul %9, %10, %cst_6 {dimension_numbers = #tpu.dot_dimension_numbers<[1], [0], [0], [1], [0, 0, 1, 1], [], []>} : vector<512x128xbf16>, vector<128x128xbf16>, vector<512x128xf32> -> vector<512x128xf32>
    %c0_7 = arith.constant 0 : index
    %c0_8 = arith.constant 0 : index
    %12 = vector.load %arg4[%c0_7, %c0_8] : memref<1x128xf32, #tpu.memory_space<vmem>>, vector<1x128xf32>
    %13 = vector.broadcast %12 : vector<1x128xf32> to vector<512x128xf32>
    %14 = arith.addf %11, %13 : vector<512x128xf32>
    %15 = arith.truncf %14 : vector<512x128xf32> to vector<512x128xbf16>
    %16 = arith.negf %15 : vector<512x128xbf16>
    %17 = math.exp %16 : vector<512x128xbf16>
    %cst_9 = arith.constant 1.000000e+00 : bf16
    %18 = vector.broadcast %cst_9 : bf16 to vector<512x128xbf16>
    %19 = arith.addf %18, %17 : vector<512x128xbf16>
    %20 = arith.divf %18, %19 : vector<512x128xbf16>
    %21 = arith.mulf %15, %20 : vector<512x128xbf16>
    %c0_10 = arith.constant 0 : index
    %c0_11 = arith.constant 0 : index
    %22 = vector.load %arg5[%c0_10, %c0_11] : memref<128x128xbf16, #tpu.memory_space<vmem>>, vector<128x128xbf16>
    %cst_12 = arith.constant dense<0.000000e+00> : vector<512x128xf32>
    %23 = tpu.matmul %21, %22, %cst_12 {dimension_numbers = #tpu.dot_dimension_numbers<[1], [0], [0], [1], [0, 0, 1, 1], [], []>} : vector<512x128xbf16>, vector<128x128xbf16>, vector<512x128xf32> -> vector<512x128xf32>
    %c0_13 = arith.constant 0 : index
    %c0_14 = arith.constant 0 : index
    %24 = vector.load %arg6[%c0_13, %c0_14] : memref<1x128xf32, #tpu.memory_space<vmem>>, vector<1x128xf32>
    %25 = vector.broadcast %24 : vector<1x128xf32> to vector<512x128xf32>
    %26 = arith.addf %23, %25 : vector<512x128xf32>
    %c0_15 = arith.constant 0 : index
    %c0_16 = arith.constant 0 : index
    %27 = vector.load %arg7[%c0_15, %c0_16] : memref<512x128xf32, #tpu.memory_space<vmem>>, vector<512x128xf32>
    tpu.vector_store %arg7[%c0_15, %c0_16], %26 {strides = array<i32>} : memref<512x128xf32, #tpu.memory_space<vmem>>, vector<512x128xf32>,
    return
  }
  func.func @transform_0(%arg0: i32) -> (i32, i32) {
    %c0_i32 = arith.constant 0 : i32
    %c0_i32_0 = arith.constant 0 : i32
    return %arg0, %c0_i32 : i32, i32
  }
  func.func @transform_1(%arg0: i32) -> (i32, i32) {
    %c0_i32 = arith.constant 0 : i32
    %c0_i32_0 = arith.constant 0 : i32
    %c0_i32_1 = arith.constant 0 : i32
    return %c0_i32, %c0_i32_0 : i32, i32
  }
  func.func @transform_2(%arg0: i32) -> (i32, i32) {
    %c0_i32 = arith.constant 0 : i32
    %c0_i32_0 = arith.constant 0 : i32
    %c0_i32_1 = arith.constant 0 : i32
    return %c0_i32, %c0_i32_0 : i32, i32
  }
  func.func @transform_3(%arg0: i32) -> (i32, i32) {
    %c0_i32 = arith.constant 0 : i32
    %c0_i32_0 = arith.constant 0 : i32
    %c0_i32_1 = arith.constant 0 : i32
    return %c0_i32, %c0_i32_0 : i32, i32
  }
  func.func @transform_4(%arg0: i32) -> (i32, i32) {
    %c0_i32 = arith.constant 0 : i32
    %c0_i32_0 = arith.constant 0 : i32
    %c0_i32_1 = arith.constant 0 : i32
    return %c0_i32, %c0_i32_0 : i32, i32
  }
  func.func @transform_5(%arg0: i32) -> (i32, i32) {
    %c0_i32 = arith.constant 0 : i32
    %c0_i32_0 = arith.constant 0 : i32
    %c0_i32_1 = arith.constant 0 : i32
    return %c0_i32, %c0_i32_0 : i32, i32
  }
  func.func @transform_6(%arg0: i32) -> (i32, i32) {
    %c0_i32 = arith.constant 0 : i32
    %c0_i32_0 = arith.constant 0 : i32
    return %arg0, %c0_i32 : i32, i32
  }
}

</mosaic_0001>

<llo_original>
// kernel: tpu_custom_call.1
$region0: #{tpu_custom_call.1}
  #allocation0 [shape = 'u32[]', space=smem, size = 0x4, offset = 0x4, fixed_abs, tag = 'smem constant byte address 0x4 - core index']
  #allocation1 [shape = 'u32[144,128]{1,0:T(1,128)}', space=vmem, size = 0x12000, scoped, tag = 'internal scratch']
  %s0 = inlined_call_operand.hbm [shape: bf16[1024,128], index: 0, kind: input, shape index: {}]
  %s1 = inlined_call_operand.hbm [shape: bf16[128,128], index: 1, kind: input, shape index: {}]
  %s2 = inlined_call_operand.hbm [shape: bf16[128,128], index: 2, kind: input, shape index: {}]
  %s3 = inlined_call_operand.vmem [shape: f32[1,128], index: 3, kind: input, shape index: {}]
  %s4 = inlined_call_operand.hbm [shape: bf16[128,128], index: 4, kind: input, shape index: {}]
  %s5 = inlined_call_operand.vmem [shape: f32[1,128], index: 5, kind: input, shape index: {}]
  %s6 = inlined_call_operand.hbm [shape: f32[1024,128], index: 6, kind: output, shape index: {}]
  %s7 = sld [smem:[#allocation0]]
  $region73: #{tpu_custom_call.1} parent=0
    _
  %s9 = ssub.s32 1, %s7
  %s10 = scalar_select 0, %s9, %s7
  $region1: #{tpu_custom_call.1} parent=0
    #allocation2 [shape = 'u8[262144]{0}', space=vmem, size = 0x40000, scoped, tag = 'input window, operand 0']
    #allocation3 [shape = 's32[2]{0}', space=sflag, size = 0x8, scoped, tag = 'scoped memory for tpu_custom_call.1']
    #allocation4 [shape = 's32[2]{0}', space=sflag, size = 0x8, scoped, tag = 'scoped memory for tpu_custom_call.1']
    #allocation5 [shape = 'u8[32768]{0}', space=vmem, size = 0x8000, scoped, tag = 'input window, operand 1, single buffered']
    #allocation6 [shape = 's32[1]{0}', space=sflag, size = 0x4, scoped, tag = 'scoped memory for tpu_custom_call.1']
    #allocation7 [shape = 'u8[32768]{0}', space=vmem, size = 0x8000, scoped, tag = 'input window, operand 2, single buffered']
    #allocation8 [shape = 'u8[32768]{0}', space=vmem, size = 0x8000, scoped, tag = 'input window, operand 4, single buffered']
    #allocation9 [shape = 's32[1]{0}', space=sflag, size = 0x4, scoped, tag = 'scoped memory for tpu_custom_call.1']
    #allocation10 [shape = 'u8[524288]{0}', space=vmem, size = 0x80000, scoped, tag = 'output window, operand 0']
    %11 = vsyncpa [#allocation3], 0
    %s12 = scalar_lea.sflag [#allocation3], 1
    %13 = vsyncpa %s12, 0
    %14 = vsyncpa [#allocation6], 0
    %15 = vsyncpa [#allocation9], 0
    %16 = vsyncpa [#allocation4], 0
    %s17 = scalar_lea.sflag [#allocation4], 1
    %18 = vsyncpa %s17, 0
    loop: start=0, step=1, limit=4
    $region2: #{tpu_custom_call.1} parent=1 // loop_pre_header
      _
    $region3: #{tpu_custom_call.1} parent=1 // loop_header
      %s20 = sphi 0, %s24
      %p21 = scmp.ge.s32.totalorder %s20, 4
      %s30 = sphi 0, %s32
      %s33 = sphi 0, %s30
      %s34 = sphi 0, %s33
      %s50 = sphi 0, %s34
      %s54 = sphi 0, %s54
      %s56 = sphi 0, %s54
      %s57 = sphi 0, %s56
      %s71 = sphi 0, %s57
      %s75 = sphi 0, %s75
      %s77 = sphi 0, %s75
      %s78 = sphi 0, %s77
      %s92 = sphi 0, %s78
      %s96 = sphi 0, %s96
      %s98 = sphi 0, %s96
      %s99 = sphi 0, %s98
      %s113 = sphi 0, %s99
      %s117 = sphi 0, %s117
      %s119 = sphi 0, %s117
      %s120 = sphi 0, %s119
      %s134 = sphi 0, %s120
      %s138 = sphi 0, %s138
      %s140 = sphi 0, %s138
      %s141 = sphi 0, %s140
      %s155 = sphi 0, %s141
      %s161 = sphi 0, %s163
      %s164 = sphi 0, %s161
      %s165 = sphi 0, %s164
      %s181 = sphi 0, %s165
    $region4: #{tpu_custom_call.1} parent=1 // loop_header_branch
      %23 = sbr.rel (%p21) target = $region8
    $region5: #{tpu_custom_call.1} parent=1 // loop_body
      %s25 = ssub.s32 %s20, 1
      %s26 = ssub.s32 %s20, 2
      %s27 = sadd.s32 %s20, 1
      %s28 = ssub.s32 %s20, %s27
      %p29 = scmp.eq.s32.totalorder %s28, 0
      %s31 = sadd.s32 %s30, 1
      %s32 = scalar_select %p29, %s30, %s31
      %p35 = pneg %p29
      %p36 = scmp.eq.s32.totalorder %s20, 1
      %p37 = por %p35, %p36
      %p38 = scmp.ne.s32.totalorder %s30, %s33
      %p39 = scmp.eq.s32.totalorder %s20, 0
      %p40 = por %p38, %p39
      %p41 = scmp.ne.s32.totalorder %s30, %s33
      %p42 = scmp.eq.s32.totalorder %s25, 1
      %p43 = por %p41, %p42
      %p44 = scmp.ne.s32.totalorder %s33, %s34
      %p45 = scmp.eq.s32.totalorder %s25, 0
      %p46 = por %p44, %p45
      %p47 = scmp.ne.s32.totalorder %s33, %s34
      %p48 = scmp.eq.s32.totalorder %s26, 1
      %p49 = por %p47, %p48
      %p51 = scmp.ne.s32.totalorder %s34, %s50
      %p52 = scmp.eq.s32.totalorder %s26, 0
      %p53 = por %p51, %p52
      %s55 = sadd.s32 %s54, 1
      %p58 = scmp.eq.s32.totalorder %s20, 1
      %p59 = scmp.ne.s32.totalorder %s54, %s56
      %p60 = scmp.eq.s32.totalorder %s20, 0
      %p61 = por %p59, %p60
      %p62 = scmp.ne.s32.totalorder %s54, %s56
      %p63 = scmp.eq.s32.totalorder %s25, 1
      %p64 = por %p62, %p63
      %p65 = scmp.ne.s32.totalorder %s56, %s57
      %p66 = scmp.eq.s32.totalorder %s25, 0
      %p67 = por %p65, %p66
      %p68 = scmp.ne.s32.totalorder %s56, %s57
      %p69 = scmp.eq.s32.totalorder %s26, 1
      %p70 = por %p68, %p69
      %p72 = scmp.ne.s32.totalorder %s57, %s71
      %p73 = scmp.eq.s32.totalorder %s26, 0
      %p74 = por %p72, %p73
      %s76 = sadd.s32 %s75, 1
      %p79 = scmp.eq.s32.totalorder %s20, 1
      %p80 = scmp.ne.s32.totalorder %s75, %s77
      %p81 = scmp.eq.s32.totalorder %s20, 0
      %p82 = por %p80, %p81
      %p83 = scmp.ne.s32.totalorder %s75, %s77
      %p84 = scmp.eq.s32.totalorder %s25, 1
      %p85 = por %p83, %p84
      %p86 = scmp.ne.s32.totalorder %s77, %s78
      %p87 = scmp.eq.s32.totalorder %s25, 0
      %p88 = por %p86, %p87
      %p89 = scmp.ne.s32.totalorder %s77, %s78
      %p90 = scmp.eq.s32.totalorder %s26, 1
      %p91 = por %p89, %p90
      %p93 = scmp.ne.s32.totalorder %s78, %s92
      %p94 = scmp.eq.s32.totalorder %s26, 0
      %p95 = por %p93, %p94
      %s97 = sadd.s32 %s96, 1
      %p100 = scmp.eq.s32.totalorder %s20, 1
      %p101 = scmp.ne.s32.totalorder %s96, %s98
      %p102 = scmp.eq.s32.totalorder %s20, 0
      %p103 = por %p101, %p102
      %p104 = scmp.ne.s32.totalorder %s96, %s98
      %p105 = scmp.eq.s32.totalorder %s25, 1
      %p106 = por %p104, %p105
      %p107 = scmp.ne.s32.totalorder %s98, %s99
      %p108 = scmp.eq.s32.totalorder %s25, 0
      %p109 = por %p107, %p108
      %p110 = scmp.ne.s32.totalorder %s98, %s99
      %p111 = scmp.eq.s32.totalorder %s26, 1
      %p112 = por %p110, %p111
      %p114 = scmp.ne.s32.totalorder %s99, %s113
      %p115 = scmp.eq.s32.totalorder %s26, 0
      %p116 = por %p114, %p115
      %s118 = sadd.s32 %s117, 1
      %p121 = scmp.eq.s32.totalorder %s20, 1
      %p122 = scmp.ne.s32.totalorder %s117, %s119
      %p123 = scmp.eq.s32.totalorder %s20, 0
      %p124 = por %p122, %p123
      %p125 = scmp.ne.s32.totalorder %s117, %s119
      %p126 = scmp.eq.s32.totalorder %s25, 1
      %p127 = por %p125, %p126
      %p128 = scmp.ne.s32.totalorder %s119, %s120
      %p129 = scmp.eq.s32.totalorder %s25, 0
      %p130 = por %p128, %p129
      %p131 = scmp.ne.s32.totalorder %s119, %s120
      %p132 = scmp.eq.s32.totalorder %s26, 1
      %p133 = por %p131, %p132
      %p135 = scmp.ne.s32.totalorder %s120, %s134
      %p136 = scmp.eq.s32.totalorder %s26, 0
      %p137 = por %p135, %p136
      %s139 = sadd.s32 %s138, 1
      %p142 = scmp.eq.s32.totalorder %s20, 1
      %p143 = scmp.ne.s32.totalorder %s138, %s140
      %p144 = scmp.eq.s32.totalorder %s20, 0
      %p145 = por %p143, %p144
      %p146 = scmp.ne.s32.totalorder %s138, %s140
      %p147 = scmp.eq.s32.totalorder %s25, 1
      %p148 = por %p146, %p147
      %p149 = scmp.ne.s32.totalorder %s140, %s141
      %p150 = scmp.eq.s32.totalorder %s25, 0
      %p151 = por %p149, %p150
      %p152 = scmp.ne.s32.totalorder %s140, %s141
      %p153 = scmp.eq.s32.totalorder %s26, 1
      %p154 = por %p152, %p153
      %p156 = scmp.ne.s32.totalorder %s141, %s155
      %p157 = scmp.eq.s32.totalorder %s26, 0
      %p158 = por %p156, %p157
      %s159 = ssub.s32 %s20, %s27
      %p160 = scmp.eq.s32.totalorder %s159, 0
      %s162 = sadd.s32 %s161, 1
      %s163 = scalar_select %p160, %s161, %s162
      %p166 = pneg %p160
      %p167 = scmp.eq.s32.totalorder %s20, 1
      %p168 = por %p166, %p167
      %p169 = scmp.ne.s32.totalorder %s161, %s164
      %p170 = scmp.eq.s32.totalorder %s20, 0
      %p171 = por %p169, %p170
      %p172 = scmp.ne.s32.totalorder %s161, %s164
      %p173 = scmp.eq.s32.totalorder %s25, 1
      %p174 = por %p172, %p173
      %p175 = scmp.ne.s32.totalorder %s164, %s165
      %p176 = scmp.eq.s32.totalorder %s25, 0
      %p177 = por %p175, %p176
      %p178 = scmp.ne.s32.totalorder %s164, %s165
      %p179 = scmp.eq.s32.totalorder %s26, 1
      %p180 = por %p178, %p179
      %p182 = scmp.ne.s32.totalorder %s165, %s181
      %p183 = scmp.eq.s32.totalorder %s26, 0
      %p184 = por %p182, %p183
      %p185 = scmp.le.s32.totalorder 1, %s20
      %p186 = scmp.lt.s32.totalorder %s20, 3
      %p187 = pnand %p185, %p186
      %p188 = pneg %p187
      // Predicated region
      $region9: #{tpu_custom_call.1} parent=5 // pred_check
        _
      $region10: #{tpu_custom_call.1} parent=5 // pred_check_branch
        %190 = sbr.rel (%p187) target = $region12
      $region11: #{tpu_custom_call.1} parent=5 // pred_region
        %s191 = ssub.s32 %s20, 1
        // Predicated region
        $region13: #{tpu_custom_call.1} parent=11 // pred_check
          %p192 = pneg %p67
        $region14: #{tpu_custom_call.1} parent=11 // pred_check_branch
          %194 = sbr.rel (%p192) target = $region16
        $region15: #{tpu_custom_call.1} parent=11 // pred_region
          %s196 = ssub.s32 1024, 1024
          %197 = vsyncadd [#allocation6], %s196
          %s198 = sshll.u32 [#allocation5], 4
          %s199 = int_to_ptr.vmem [resolvable:$true] %s198
          %204 = dma.hbm_to_vmem [thread:$0]  %s1, 1024, %s199, [#allocation6], 64, 64, 4
        $region16: #{tpu_custom_call.1} parent=11 // pred_fallthru
          _
        // Predicated region
        $region17: #{tpu_custom_call.1} parent=11 // pred_check
          %p205 = pneg %p88
        $region18: #{tpu_custom_call.1} parent=11 // pred_check_branch
          %207 = sbr.rel (%p205) target = $region20
        $region19: #{tpu_custom_call.1} parent=11 // pred_region
          %s209 = ssub.s32 1024, 1024
          %210 = vsyncadd [#allocation6], %s209
          %s211 = sshll.u32 [#allocation7], 4
          %s212 = int_to_ptr.vmem [resolvable:$true] %s211
          %217 = dma.hbm_to_vmem [thread:$0]  %s2, 1024, %s212, [#allocation6], 64, 64, 4
        $region20: #{tpu_custom_call.1} parent=11 // pred_fallthru
          _
        // Predicated region
        $region21: #{tpu_custom_call.1} parent=11 // pred_check
          %p218 = pneg %p109
        $region22: #{tpu_custom_call.1} parent=11 // pred_check_branch
          %220 = sbr.rel (%p218) target = $region24
        $region23: #{tpu_custom_call.1} parent=11 // pred_region
          _
        $region24: #{tpu_custom_call.1} parent=11 // pred_fallthru
          _
        // Predicated region
        $region25: #{tpu_custom_call.1} parent=11 // pred_check
          %p221 = pneg %p130
        $region26: #{tpu_custom_call.1} parent=11 // pred_check_branch
          %223 = sbr.rel (%p221) target = $region28
        $region27: #{tpu_custom_call.1} parent=11 // pred_region
          %s225 = ssub.s32 1024, 1024
          %226 = vsyncadd [#allocation9], %s225
          %s227 = sshll.u32 [#allocation8], 4
          %s228 = int_to_ptr.vmem [resolvable:$true] %s227
          %233 = dma.hbm_to_vmem [thread:$0]  %s4, 1024, %s228, [#allocation9], 64, 64, 4
        $region28: #{tpu_custom_call.1} parent=11 // pred_fallthru
          _
        // Predicated region
        $region29: #{tpu_custom_call.1} parent=11 // pred_check
          %p234 = pneg %p151
        $region30: #{tpu_custom_call.1} parent=11 // pred_check_branch
          %236 = sbr.rel (%p234) target = $region32
        $region31: #{tpu_custom_call.1} parent=11 // pred_region
          _
        $region32: #{tpu_custom_call.1} parent=11 // pred_fallthru
          _
      $region12: #{tpu_custom_call.1} parent=5 // pred_fallthru
        _
      %p237 = scmp.lt.s32.totalorder %s20, 2
      // Predicated region
      $region33: #{tpu_custom_call.1} parent=5 // pred_check
        %p238 = pneg %p237
      $region34: #{tpu_custom_call.1} parent=5 // pred_check_branch
        %240 = sbr.rel (%p238) target = $region36
      $region35: #{tpu_custom_call.1} parent=5 // pred_region
        // Predicated region
        $region37: #{tpu_custom_call.1} parent=35 // pred_check
          %p241 = pneg %p40
        $region38: #{tpu_custom_call.1} parent=35 // pred_check_branch
          %243 = sbr.rel (%p241) target = $region40
        $region39: #{tpu_custom_call.1} parent=35 // pred_region
          %s244 = sand.u32 %s30, 1
          %s245 = scalar_lea.sflag [#allocation3], %s244
          %s246 = sand.u32 %s30, 1
          %s247 = smul.addr %s246, 256
          %s248 = scalar_lea.vmem [#allocation2], %s247
          %s249 = smul.u32 64, %s20
          %s251 = ssub.s32 4096, 4096
          %252 = vsyncadd %s245, %s251
          %s253 = smul.addr %s249, 64
          %s254 = scalar_lea.hbm %s0, %s253
          %s255 = sshll.u32 %s248, 4
          %s256 = int_to_ptr.vmem [resolvable:$true] %s255
          %261 = dma.hbm_to_vmem [thread:$0]  %s254, 4096, %s256, %s245, 64, 64, 4
        $region40: #{tpu_custom_call.1} parent=35 // pred_fallthru
          _
      $region36: #{tpu_custom_call.1} parent=5 // pred_fallthru
        _
      %p262 = scmp.le.s32.totalorder 1, %s20
      %p263 = scmp.lt.s32.totalorder %s20, 3
      %p264 = pnand %p262, %p263
      %p265 = pneg %p264
      // Predicated region
      $region41: #{tpu_custom_call.1} parent=5 // pred_check
        _
      $region42: #{tpu_custom_call.1} parent=5 // pred_check_branch
        %267 = sbr.rel (%p264) target = $region44
      $region43: #{tpu_custom_call.1} parent=5 // pred_region
        %s268 = ssub.s32 %s20, 1
        %s269 = sand.u32 %s33, 1
        %s270 = scalar_lea.sflag [#allocation3], %s269
        %s271 = sand.u32 %s33, 1
        %s272 = smul.addr %s271, 256
        %s273 = scalar_lea.vmem [#allocation2], %s272
        // Predicated region
        $region45: #{tpu_custom_call.1} parent=43 // pred_check
          %p274 = pneg %p46
        $region46: #{tpu_custom_call.1} parent=43 // pred_check_branch
          %276 = sbr.rel (%p274) target = $region48
        $region47: #{tpu_custom_call.1} parent=43 // pred_region
          %277 = dma.done %s270, 4096
        $region48: #{tpu_custom_call.1} parent=43 // pred_fallthru
          _
        // Predicated region
        $region49: #{tpu_custom_call.1} parent=43 // pred_check
          %p278 = pneg %p67
        $region50: #{tpu_custom_call.1} parent=43 // pred_check_branch
          %280 = sbr.rel (%p278) target = $region52
        $region51: #{tpu_custom_call.1} parent=43 // pred_region
          %281 = dma.done [#allocation6], 1024
        $region52: #{tpu_custom_call.1} parent=43 // pred_fallthru
          _
        // Predicated region
        $region53: #{tpu_custom_call.1} parent=43 // pred_check
          %p282 = pneg %p88
        $region54: #{tpu_custom_call.1} parent=43 // pred_check_branch
          %284 = sbr.rel (%p282) target = $region56
        $region55: #{tpu_custom_call.1} parent=43 // pred_region
          %285 = dma.done [#allocation6], 1024
        $region56: #{tpu_custom_call.1} parent=43 // pred_fallthru
          _
        // Predicated region
        $region57: #{tpu_custom_call.1} parent=43 // pred_check
          %p286 = pneg %p130
        $region58: #{tpu_custom_call.1} parent=43 // pred_check_branch
          %288 = sbr.rel (%p286) target = $region60
        $region59: #{tpu_custom_call.1} parent=43 // pred_region
          %289 = dma.done [#allocation9], 1024
        $region60: #{tpu_custom_call.1} parent=43 // pred_fallthru
          _
        %s290 = sand.u32 %s33, 1
        %s291 = scalar_lea.sflag [#allocation3], %s290
        %s292 = sand.u32 %s33, 1
        %s293 = smul.addr %s292, 256
        %s294 = scalar_lea.vmem [#allocation2], %s293
        %p295 = pneg %p46
        %p296 = pneg %p43
        %p297 = pneg %p67
        %p298 = pneg %p64
        %p299 = pneg %p88
        %p300 = pneg %p85
        %p301 = pneg %p109
        %p302 = pneg %p106
        %p303 = pneg %p130
        %p304 = pneg %p127
        %p305 = pneg %p151
        %p306 = pneg %p148
        %p307 = pneg %p177
        %p308 = pneg %p174
        %s309 = sand.u32 %s164, 1
        %s310 = scalar_lea.sflag [#allocation4], %s309
        %s311 = sand.u32 %s164, 1
        %s312 = smul.addr %s311, 512
        %s313 = scalar_lea.vmem [#allocation10], %s312
        %s314 = smul.u32 64, %s25
        %s315 = smul.u32 64, %s25
        %v318 = vld [vmem:[%s273] sm:$0xf]
        %v319 = vld [vmem:[%s273 + $0x4] sm:$0xf]
        %v320 = vld [vmem:[%s273 + $0x8] sm:$0xf]
        %v321 = vld [vmem:[%s273 + $0xc] sm:$0xf]
        %v322 = vld [vmem:[%s273 + $0x10] sm:$0xf]
        %v323 = vld [vmem:[%s273 + $0x14] sm:$0xf]
        %v324 = vld [vmem:[%s273 + $0x18] sm:$0xf]
        %v325 = vld [vmem:[%s273 + $0x1c] sm:$0xf]
        %v326 = vld [vmem:[%s273 + $0x20] sm:$0xf]
        %v327 = vld [vmem:[%s273 + $0x24] sm:$0xf]
        %v328 = vld [vmem:[%s273 + $0x28] sm:$0xf]
        %v329 = vld [vmem:[%s273 + $0x2c] sm:$0xf]
        %v330 = vld [vmem:[%s273 + $0x30] sm:$0xf]
        %v331 = vld [vmem:[%s273 + $0x34] sm:$0xf]
        %v332 = vld [vmem:[%s273 + $0x38] sm:$0xf]
        %v333 = vld [vmem:[%s273 + $0x3c] sm:$0xf]
        %v334 = vld [vmem:[%s273 + $0x40] sm:$0xf]
        %v335 = vld [vmem:[%s273 + $0x44] sm:$0xf]
        %v336 = vld [vmem:[%s273 + $0x48] sm:$0xf]
        %v337 = vld [vmem:[%s273 + $0x4c] sm:$0xf]
        %v338 = vld [vmem:[%s273 + $0x50] sm:$0xf]
        %v339 = vld [vmem:[%s273 + $0x54] sm:$0xf]
        %v340 = vld [vmem:[%s273 + $0x58] sm:$0xf]
        %v341 = vld [vmem:[%s273 + $0x5c] sm:$0xf]
        %v342 = vld [vmem:[%s273 + $0x60] sm:$0xf]
        %v343 = vld [vmem:[%s273 + $0x64] sm:$0xf]
        %v344 = vld [vmem:[%s273 + $0x68] sm:$0xf]
        %v345 = vld [vmem:[%s273 + $0x6c] sm:$0xf]
        %v346 = vld [vmem:[%s273 + $0x70] sm:$0xf]
        %v347 = vld [vmem:[%s273 + $0x74] sm:$0xf]
        %v348 = vld [vmem:[%s273 + $0x78] sm:$0xf]
        %v349 = vld [vmem:[%s273 + $0x7c] sm:$0xf]
        %v350 = vld [vmem:[%s273 + $0x80] sm:$0xf]
        %v351 = vld [vmem:[%s273 + $0x84] sm:$0xf]
        %v352 = vld [vmem:[%s273 + $0x88] sm:$0xf]
        %v353 = vld [vmem:[%s273 + $0x8c] sm:$0xf]
        %v354 = vld [vmem:[%s273 + $0x90] sm:$0xf]
        %v355 = vld [vmem:[%s273 + $0x94] sm:$0xf]
        %v356 = vld [vmem:[%s273 + $0x98] sm:$0xf]
        %v357 = vld [vmem:[%s273 + $0x9c] sm:$0xf]
        %v358 = vld [vmem:[%s273 + $0xa0] sm:$0xf]
        %v359 = vld [vmem:[%s273 + $0xa4] sm:$0xf]
        %v360 = vld [vmem:[%s273 + $0xa8] sm:$0xf]
        %v361 = vld [vmem:[%s273 + $0xac] sm:$0xf]
        %v362 = vld [vmem:[%s273 + $0xb0] sm:$0xf]
        %v363 = vld [vmem:[%s273 + $0xb4] sm:$0xf]
        %v364 = vld [vmem:[%s273 + $0xb8] sm:$0xf]
        %v365 = vld [vmem:[%s273 + $0xbc] sm:$0xf]
        %v366 = vld [vmem:[%s273 + $0xc0] sm:$0xf]
        %v367 = vld [vmem:[%s273 + $0xc4] sm:$0xf]
        %v368 = vld [vmem:[%s273 + $0xc8] sm:$0xf]
        %v369 = vld [vmem:[%s273 + $0xcc] sm:$0xf]
        %v370 = vld [vmem:[%s273 + $0xd0] sm:$0xf]
        %v371 = vld [vmem:[%s273 + $0xd4] sm:$0xf]
        %v372 = vld [vmem:[%s273 + $0xd8] sm:$0xf]
        %v373 = vld [vmem:[%s273 + $0xdc] sm:$0xf]
        %v374 = vld [vmem:[%s273 + $0xe0] sm:$0xf]
        %v375 = vld [vmem:[%s273 + $0xe4] sm:$0xf]
        %v376 = vld [vmem:[%s273 + $0xe8] sm:$0xf]
        %v377 = vld [vmem:[%s273 + $0xec] sm:$0xf]
        %v378 = vld [vmem:[%s273 + $0xf0] sm:$0xf]
        %v379 = vld [vmem:[%s273 + $0xf4] sm:$0xf]
        %v380 = vld [vmem:[%s273 + $0xf8] sm:$0xf]
        %v381 = vld [vmem:[%s273 + $0xfc] sm:$0xf]
        %v382 = vld [vmem:[#allocation5] sm:$0xf]
        %v383 = vld [vmem:[#allocation5 + $0x4] sm:$0xf]
        %v384 = vld [vmem:[#allocation5 + $0x8] sm:$0xf]
        %v385 = vld [vmem:[#allocation5 + $0xc] sm:$0xf]
        %v386 = vld [vmem:[#allocation5 + $0x10] sm:$0xf]
        %v387 = vld [vmem:[#allocation5 + $0x14] sm:$0xf]
        %v388 = vld [vmem:[#allocation5 + $0x18] sm:$0xf]
        %v389 = vld [vmem:[#allocation5 + $0x1c] sm:$0xf]
        %v390 = vld [vmem:[#allocation5 + $0x20] sm:$0xf]
        %v391 = vld [vmem:[#allocation5 + $0x24] sm:$0xf]
        %v392 = vld [vmem:[#allocation5 + $0x28] sm:$0xf]
        %v393 = vld [vmem:[#allocation5 + $0x2c] sm:$0xf]
        %v394 = vld [vmem:[#allocation5 + $0x30] sm:$0xf]
        %v395 = vld [vmem:[#allocation5 + $0x34] sm:$0xf]
        %v396 = vld [vmem:[#allocation5 + $0x38] sm:$0xf]
        %v397 = vld [vmem:[#allocation5 + $0x3c] sm:$0xf]
        %v462 = vunpack.c.l.b16 %v318
        %v463 = vunpack.c.l.b16 %v319
        %v464 = vunpack.c.l.b16 %v320
        %v465 = vunpack.c.l.b16 %v321
        %v466 = vunpack.c.l.b16 %v322
        %v467 = vunpack.c.l.b16 %v323
        %v468 = vunpack.c.l.b16 %v324
        %v469 = vunpack.c.l.b16 %v325
        %v470 = vunpack.c.l.b16 %v326
        %v471 = vunpack.c.l.b16 %v327
        %v472 = vunpack.c.l.b16 %v328
        %v473 = vunpack.c.l.b16 %v329
        %v474 = vunpack.c.l.b16 %v330
        %v475 = vunpack.c.l.b16 %v331
        %v476 = vunpack.c.l.b16 %v332
        %v477 = vunpack.c.l.b16 %v333
        %v478 = vunpack.c.l.b16 %v334
        %v479 = vunpack.c.l.b16 %v335
        %v480 = vunpack.c.l.b16 %v336
        %v481 = vunpack.c.l.b16 %v337
        %v482 = vunpack.c.l.b16 %v338
        %v483 = vunpack.c.l.b16 %v339
        %v484 = vunpack.c.l.b16 %v340
        %v485 = vunpack.c.l.b16 %v341
        %v486 = vunpack.c.l.b16 %v342
        %v487 = vunpack.c.l.b16 %v343
        %v488 = vunpack.c.l.b16 %v344
        %v489 = vunpack.c.l.b16 %v345
        %v490 = vunpack.c.l.b16 %v346
        %v491 = vunpack.c.l.b16 %v347
        %v492 = vunpack.c.l.b16 %v348
        %v493 = vunpack.c.l.b16 %v349
        %v494 = vunpack.c.l.b16 %v350
        %v495 = vunpack.c.l.b16 %v351
        %v496 = vunpack.c.l.b16 %v352
        %v497 = vunpack.c.l.b16 %v353
        %v498 = vunpack.c.l.b16 %v354
        %v499 = vunpack.c.l.b16 %v355
        %v500 = vunpack.c.l.b16 %v356
        %v501 = vunpack.c.l.b16 %v357
        %v502 = vunpack.c.l.b16 %v358
        %v503 = vunpack.c.l.b16 %v359
        %v504 = vunpack.c.l.b16 %v360
        %v505 = vunpack.c.l.b16 %v361
        %v506 = vunpack.c.l.b16 %v362
        %v507 = vunpack.c.l.b16 %v363
        %v508 = vunpack.c.l.b16 %v364
        %v509 = vunpack.c.l.b16 %v365
        %v510 = vunpack.c.l.b16 %v366
        %v511 = vunpack.c.l.b16 %v367
        %v512 = vunpack.c.l.b16 %v368
        %v513 = vunpack.c.l.b16 %v369
        %v514 = vunpack.c.l.b16 %v370
        %v515 = vunpack.c.l.b16 %v371
        %v516 = vunpack.c.l.b16 %v372
        %v517 = vunpack.c.l.b16 %v373
        %v518 = vunpack.c.l.b16 %v374
        %v519 = vunpack.c.l.b16 %v375
        %v520 = vunpack.c.l.b16 %v376
        %v521 = vunpack.c.l.b16 %v377
        %v522 = vunpack.c.l.b16 %v378
        %v523 = vunpack.c.l.b16 %v379
        %v524 = vunpack.c.l.b16 %v380
        %v525 = vunpack.c.l.b16 %v381
        %v526 = vpack.c.b16 %v463, %v462
        %v527 = vpack.c.b16 %v465, %v464
        %v528 = vpack.c.b16 %v467, %v466
        %v529 = vpack.c.b16 %v469, %v468
        %v530 = vpack.c.b16 %v471, %v470
        %v531 = vpack.c.b16 %v473, %v472
        %v532 = vpack.c.b16 %v475, %v474
        %v533 = vpack.c.b16 %v477, %v476
        %v534 = vpack.c.b16 %v479, %v478
        %v535 = vpack.c.b16 %v481, %v480
        %v536 = vpack.c.b16 %v483, %v482
        %v537 = vpack.c.b16 %v485, %v484
        %v538 = vpack.c.b16 %v487, %v486
        %v539 = vpack.c.b16 %v489, %v488
        %v540 = vpack.c.b16 %v491, %v490
        %v541 = vpack.c.b16 %v493, %v492
        %v542 = vpack.c.b16 %v495, %v494
        %v543 = vpack.c.b16 %v497, %v496
        %v544 = vpack.c.b16 %v499, %v498
        %v545 = vpack.c.b16 %v501, %v500
        %v546 = vpack.c.b16 %v503, %v502
        %v547 = vpack.c.b16 %v505, %v504
        %v548 = vpack.c.b16 %v507, %v506
        %v549 = vpack.c.b16 %v509, %v508
        %v550 = vpack.c.b16 %v511, %v510
        %v551 = vpack.c.b16 %v513, %v512
        %v552 = vpack.c.b16 %v515, %v514
        %v553 = vpack.c.b16 %v517, %v516
        %v554 = vpack.c.b16 %v519, %v518
        %v555 = vpack.c.b16 %v521, %v520
        %v556 = vpack.c.b16 %v523, %v522
        %v557 = vpack.c.b16 %v525, %v524
        %v606 = vunpack.c.l.b16 %v382
        %v607 = vunpack.c.l.b16 %v383
        %v608 = vunpack.c.l.b16 %v384
        %v609 = vunpack.c.l.b16 %v385
        %v610 = vunpack.c.l.b16 %v386
        %v611 = vunpack.c.l.b16 %v387
        %v612 = vunpack.c.l.b16 %v388
        %v613 = vunpack.c.l.b16 %v389
        %v614 = vunpack.c.l.b16 %v390
        %v615 = vunpack.c.l.b16 %v391
        %v616 = vunpack.c.l.b16 %v392
        %v617 = vunpack.c.l.b16 %v393
        %v618 = vunpack.c.l.b16 %v394
        %v619 = vunpack.c.l.b16 %v395
        %v620 = vunpack.c.l.b16 %v396
        %v621 = vunpack.c.l.b16 %v397
        %v622 = vpack.c.b16 %v607, %v606
        %v623 = vpack.c.b16 %v609, %v608
        %v624 = vpack.c.b16 %v611, %v610
        %v625 = vpack.c.b16 %v613, %v612
        %v626 = vpack.c.b16 %v615, %v614
        %v627 = vpack.c.b16 %v617, %v616
        %v628 = vpack.c.b16 %v619, %v618
        %v629 = vpack.c.b16 %v621, %v620
        %638 = vmatprep.subr.bf16.mxu0 0
        %639 = vmatpush1.bf16.msra.mxu0 %v622
        %640 = vmatprep.subr.bf16.mxu0 0
        %641 = vmatpush1.bf16.msra.mxu0 %v623
        %642 = vmatprep.subr.bf16.mxu0 0
        %643 = vmatpush1.bf16.msra.mxu0 %v624
        %644 = vmatprep.subr.bf16.mxu0 0
        %645 = vmatpush1.bf16.msra.mxu0 %v625
        %646 = vmatprep.subr.bf16.mxu0 0
        %647 = vmatpush1.bf16.msra.mxu0 %v626
        %648 = vmatprep.subr.bf16.mxu0 0
        %649 = vmatpush1.bf16.msra.mxu0 %v627
        %650 = vmatprep.subr.bf16.mxu0 0
        %651 = vmatpush1.bf16.msra.mxu0 %v628
        %652 = vmatprep.subr.bf16.mxu0 0
        %653 = vmatpush1.bf16.msra.mxu0 %v629
        %654 = vmatprep.subr.bf16.mxu0 0
        %655 = vmatpush1.bf16.msra.mxu0 0
        %656 = vmatprep.subr.bf16.mxu0 0
        %657 = vmatpush1.bf16.msra.mxu0 0
        %658 = vmatprep.subr.bf16.mxu0 0
        %659 = vmatpush1.bf16.msra.mxu0 0
        %660 = vmatprep.subr.bf16.mxu0 0
        %661 = vmatpush1.bf16.msra.mxu0 0
        %662 = vmatprep.subr.bf16.mxu0 0
        %663 = vmatpush1.bf16.msra.mxu0 0
        %664 = vmatprep.subr.bf16.mxu0 0
        %665 = vmatpush1.bf16.msra.mxu0 0
        %666 = vmatprep.subr.bf16.mxu0 0
        %667 = vmatpush1.bf16.msra.mxu0 0
        %668 = vmatprep.subr.bf16.mxu0 0
        %669 = vmatpush1.bf16.msra.mxu0 0
        %670 = vmatprep.mubr.bf16.mxu0 0
        %671 = vmatmul.mubr.bf16.gmra.mrb[0].mxu0 %v526
        %v672 = vpop.f32.mrb[0].mxu0
        %v673 = vadd.f32 0.0, %v672
        %v674 = vpop.f32.mrb[0].mxu0
        %v675 = vpop.f32.mrb[0].mxu0
        %v676 = vadd.f32 0.0, %v675
        %v677 = vpop.f32.mrb[0].mxu0
        %678 = vmatprep.mubr.bf16.mxu0 0
        %679 = vmatmul.mubr.bf16.gmra.mrb[0].mxu0 %v527
        %v680 = vpop.f32.mrb[0].mxu0
        %v681 = vadd.f32 0.0, %v680
        %v682 = vpop.f32.mrb[0].mxu0
        %v683 = vpop.f32.mrb[0].mxu0
        %v684 = vadd.f32 0.0, %v683
        %v685 = vpop.f32.mrb[0].mxu0
        %686 = vmatprep.mubr.bf16.mxu0 0
        %687 = vmatmul.mubr.bf16.gmra.mrb[0].mxu0 %v528
        %v688 = vpop.f32.mrb[0].mxu0
        %v689 = vadd.f32 0.0, %v688
        %v690 = vpop.f32.mrb[0].mxu0
        %v691 = vpop.f32.mrb[0].mxu0
        %v692 = vadd.f32 0.0, %v691
        %v693 = vpop.f32.mrb[0].mxu0
        %694 = vmatprep.mubr.bf16.mxu0 0
        %695 = vmatmul.mubr.bf16.gmra.mrb[0].mxu0 %v529
        %v696 = vpop.f32.mrb[0].mxu0
        %v697 = vadd.f32 0.0, %v696
        %v698 = vpop.f32.mrb[0].mxu0
        %v699 = vpop.f32.mrb[0].mxu0
        %v700 = vadd.f32 0.0, %v699
        %v701 = vpop.f32.mrb[0].mxu0
        %702 = vmatprep.mubr.bf16.mxu0 0
        %703 = vmatmul.mubr.bf16.gmra.mrb[0].mxu0 %v530
        %v704 = vpop.f32.mrb[0].mxu0
        %v705 = vadd.f32 0.0, %v704
        %v706 = vpop.f32.mrb[0].mxu0
        %v707 = vpop.f32.mrb[0].mxu0
        %v708 = vadd.f32 0.0, %v707
        %v709 = vpop.f32.mrb[0].mxu0
        %710 = vmatprep.mubr.bf16.mxu0 0
        %711 = vmatmul.mubr.bf16.gmra.mrb[0].mxu0 %v531
        %v712 = vpop.f32.mrb[0].mxu0
        %v713 = vadd.f32 0.0, %v712
        %v714 = vpop.f32.mrb[0].mxu0
        %v715 = vpop.f32.mrb[0].mxu0
        %v716 = vadd.f32 0.0, %v715
        %v717 = vpop.f32.mrb[0].mxu0
        %718 = vmatprep.mubr.bf16.mxu0 0
        %719 = vmatmul.mubr.bf16.gmra.mrb[0].mxu0 %v532
        %v720 = vpop.f32.mrb[0].mxu0
        %v721 = vadd.f32 0.0, %v720
        %v722 = vpop.f32.mrb[0].mxu0
        %v723 = vpop.f32.mrb[0].mxu0
        %v724 = vadd.f32 0.0, %v723
        %v725 = vpop.f32.mrb[0].mxu0
        %726 = vmatprep.mubr.bf16.mxu0 0
        %727 = vmatmul.mubr.bf16.gmra.mrb[0].mxu0 %v533
        %v728 = vpop.f32.mrb[0].mxu0
        %v729 = vadd.f32 0.0, %v728
        %v730 = vpop.f32.mrb[0].mxu0
        %v731 = vpop.f32.mrb[0].mxu0
        %v732 = vadd.f32 0.0, %v731
        %v733 = vpop.f32.mrb[0].mxu0
        %734 = vmatprep.mubr.bf16.mxu0 0
        %735 = vmatmul.mubr.bf16.gmra.mrb[0].mxu0 %v534
        %v736 = vpop.f32.mrb[0].mxu0
        %v737 = vadd.f32 0.0, %v736
        %v738 = vpop.f32.mrb[0].mxu0
        %v739 = vpop.f32.mrb[0].mxu0
        %v740 = vadd.f32 0.0, %v739
        %v741 = vpop.f32.mrb[0].mxu0
        %742 = vmatprep.mubr.bf16.mxu0 0
        %743 = vmatmul.mubr.bf16.gmra.mrb[0].mxu0 %v535
        %v744 = vpop.f32.mrb[0].mxu0
        %v745 = vadd.f32 0.0, %v744
        %v746 = vpop.f32.mrb[0].mxu0
        %v747 = vpop.f32.mrb[0].mxu0
        %v748 = vadd.f32 0.0, %v747
        %v749 = vpop.f32.mrb[0].mxu0
        %750 = vmatprep.mubr.bf16.mxu0 0
        %751 = vmatmul.mubr.bf16.gmra.mrb[0].mxu0 %v536
        %v752 = vpop.f32.mrb[0].mxu0
        %v753 = vadd.f32 0.0, %v752
        %v754 = vpop.f32.mrb[0].mxu0
        %v755 = vpop.f32.mrb[0].mxu0
        %v756 = vadd.f32 0.0, %v755
        %v757 = vpop.f32.mrb[0].mxu0
        %758 = vmatprep.mubr.bf16.mxu0 0
        %759 = vmatmul.mubr.bf16.gmra.mrb[0].mxu0 %v537
        %v760 = vpop.f32.mrb[0].mxu0
        %v761 = vadd.f32 0.0, %v760
        %v762 = vpop.f32.mrb[0].mxu0
        %v763 = vpop.f32.mrb[0].mxu0
        %v764 = vadd.f32 0.0, %v763
        %v765 = vpop.f32.mrb[0].mxu0
        %766 = vmatprep.mubr.bf16.mxu0 0
        %767 = vmatmul.mubr.bf16.gmra.mrb[0].mxu0 %v538
        %v768 = vpop.f32.mrb[0].mxu0
        %v769 = vadd.f32 0.0, %v768
        %v770 = vpop.f32.mrb[0].mxu0
        %v771 = vpop.f32.mrb[0].mxu0
        %v772 = vadd.f32 0.0, %v771
        %v773 = vpop.f32.mrb[0].mxu0
        %774 = vmatprep.mubr.bf16.mxu0 0
        %775 = vmatmul.mubr.bf16.gmra.mrb[0].mxu0 %v539
        %v776 = vpop.f32.mrb[0].mxu0
        %v777 = vadd.f32 0.0, %v776
        %v778 = vpop.f32.mrb[0].mxu0
        %v779 = vpop.f32.mrb[0].mxu0
        %v780 = vadd.f32 0.0, %v779
        %v781 = vpop.f32.mrb[0].mxu0
        %782 = vmatprep.mubr.bf16.mxu0 0
        %783 = vmatmul.mubr.bf16.gmra.mrb[0].mxu0 %v540
        %v784 = vpop.f32.mrb[0].mxu0
        %v785 = vadd.f32 0.0, %v784
        %v786 = vpop.f32.mrb[0].mxu0
        %v787 = vpop.f32.mrb[0].mxu0
        %v788 = vadd.f32 0.0, %v787
        %v789 = vpop.f32.mrb[0].mxu0
        %790 = vmatprep.mubr.bf16.mxu0 0
        %791 = vmatmul.mubr.bf16.gmra.mrb[0].mxu0 %v541
        %v792 = vpop.f32.mrb[0].mxu0
        %v793 = vadd.f32 0.0, %v792
        %v794 = vpop.f32.mrb[0].mxu0
        %v795 = vpop.f32.mrb[0].mxu0
        %v796 = vadd.f32 0.0, %v795
        %v797 = vpop.f32.mrb[0].mxu0
        %798 = vmatprep.mubr.bf16.mxu0 0
        %799 = vmatmul.mubr.bf16.gmra.mrb[0].mxu0 %v542
        %v800 = vpop.f32.mrb[0].mxu0
        %v801 = vadd.f32 0.0, %v800
        %v802 = vpop.f32.mrb[0].mxu0
        %v803 = vpop.f32.mrb[0].mxu0
        %v804 = vadd.f32 0.0, %v803
        %v805 = vpop.f32.mrb[0].mxu0
        %806 = vmatprep.mubr.bf16.mxu0 0
        %807 = vmatmul.mubr.bf16.gmra.mrb[0].mxu0 %v543
        %v808 = vpop.f32.mrb[0].mxu0
        %v809 = vadd.f32 0.0, %v808
        %v810 = vpop.f32.mrb[0].mxu0
        %v811 = vpop.f32.mrb[0].mxu0
        %v812 = vadd.f32 0.0, %v811
        %v813 = vpop.f32.mrb[0].mxu0
        %814 = vmatprep.mubr.bf16.mxu0 0
        %815 = vmatmul.mubr.bf16.gmra.mrb[0].mxu0 %v544
        %v816 = vpop.f32.mrb[0].mxu0
        %v817 = vadd.f32 0.0, %v816
        %v818 = vpop.f32.mrb[0].mxu0
        %v819 = vpop.f32.mrb[0].mxu0
        %v820 = vadd.f32 0.0, %v819
        %v821 = vpop.f32.mrb[0].mxu0
        %822 = vmatprep.mubr.bf16.mxu0 0
        %823 = vmatmul.mubr.bf16.gmra.mrb[0].mxu0 %v545
        %v824 = vpop.f32.mrb[0].mxu0
        %v825 = vadd.f32 0.0, %v824
        %v826 = vpop.f32.mrb[0].mxu0
        %v827 = vpop.f32.mrb[0].mxu0
        %v828 = vadd.f32 0.0, %v827
        %v829 = vpop.f32.mrb[0].mxu0
        %830 = vmatprep.mubr.bf16.mxu0 0
        %831 = vmatmul.mubr.bf16.gmra.mrb[0].mxu0 %v546
        %v832 = vpop.f32.mrb[0].mxu0
        %v833 = vadd.f32 0.0, %v832
        %v834 = vpop.f32.mrb[0].mxu0
        %v835 = vpop.f32.mrb[0].mxu0
        %v836 = vadd.f32 0.0, %v835
        %v837 = vpop.f32.mrb[0].mxu0
        %838 = vmatprep.mubr.bf16.mxu0 0
        %839 = vmatmul.mubr.bf16.gmra.mrb[0].mxu0 %v547
        %v840 = vpop.f32.mrb[0].mxu0
        %v841 = vadd.f32 0.0, %v840
        %v842 = vpop.f32.mrb[0].mxu0
        %v843 = vpop.f32.mrb[0].mxu0
        %v844 = vadd.f32 0.0, %v843
        %v845 = vpop.f32.mrb[0].mxu0
        %846 = vmatprep.mubr.bf16.mxu0 0
        %847 = vmatmul.mubr.bf16.gmra.mrb[0].mxu0 %v548
        %v848 = vpop.f32.mrb[0].mxu0
        %v849 = vadd.f32 0.0, %v848
        %v850 = vpop.f32.mrb[0].mxu0
        %v851 = vpop.f32.mrb[0].mxu0
        %v852 = vadd.f32 0.0, %v851
        %v853 = vpop.f32.mrb[0].mxu0
        %854 = vmatprep.mubr.bf16.mxu0 0
        %855 = vmatmul.mubr.bf16.gmra.mrb[0].mxu0 %v549
        %v856 = vpop.f32.mrb[0].mxu0
        %v857 = vadd.f32 0.0, %v856
        %v858 = vpop.f32.mrb[0].mxu0
        %v859 = vpop.f32.mrb[0].mxu0
        %v860 = vadd.f32 0.0, %v859
        %v861 = vpop.f32.mrb[0].mxu0
        %862 = vmatprep.mubr.bf16.mxu0 0
        %863 = vmatmul.mubr.bf16.gmra.mrb[0].mxu0 %v550
        %v864 = vpop.f32.mrb[0].mxu0
        %v865 = vadd.f32 0.0, %v864
        %v866 = vpop.f32.mrb[0].mxu0
        %v867 = vpop.f32.mrb[0].mxu0
        %v868 = vadd.f32 0.0, %v867
        %v869 = vpop.f32.mrb[0].mxu0
        %870 = vmatprep.mubr.bf16.mxu0 0
        %871 = vmatmul.mubr.bf16.gmra.mrb[0].mxu0 %v551
        %v872 = vpop.f32.mrb[0].mxu0
        %v873 = vadd.f32 0.0, %v872
        %v874 = vpop.f32.mrb[0].mxu0
        %v875 = vpop.f32.mrb[0].mxu0
        %v876 = vadd.f32 0.0, %v875
        %v877 = vpop.f32.mrb[0].mxu0
        %878 = vmatprep.mubr.bf16.mxu0 0
        %879 = vmatmul.mubr.bf16.gmra.mrb[0].mxu0 %v552
        %v880 = vpop.f32.mrb[0].mxu0
        %v881 = vadd.f32 0.0, %v880
        %v882 = vpop.f32.mrb[0].mxu0
        %v883 = vpop.f32.mrb[0].mxu0
        %v884 = vadd.f32 0.0, %v883
        %v885 = vpop.f32.mrb[0].mxu0
        %886 = vmatprep.mubr.bf16.mxu0 0
        %887 = vmatmul.mubr.bf16.gmra.mrb[0].mxu0 %v553
        %v888 = vpop.f32.mrb[0].mxu0
        %v889 = vadd.f32 0.0, %v888
        %v890 = vpop.f32.mrb[0].mxu0
        %v891 = vpop.f32.mrb[0].mxu0
        %v892 = vadd.f32 0.0, %v891
        %v893 = vpop.f32.mrb[0].mxu0
        %894 = vmatprep.mubr.bf16.mxu0 0
        %895 = vmatmul.mubr.bf16.gmra.mrb[0].mxu0 %v554
        %v896 = vpop.f32.mrb[0].mxu0
        %v897 = vadd.f32 0.0, %v896
        %v898 = vpop.f32.mrb[0].mxu0
        %v899 = vpop.f32.mrb[0].mxu0
        %v900 = vadd.f32 0.0, %v899
        %v901 = vpop.f32.mrb[0].mxu0
        %902 = vmatprep.mubr.bf16.mxu0 0
        %903 = vmatmul.mubr.bf16.gmra.mrb[0].mxu0 %v555
        %v904 = vpop.f32.mrb[0].mxu0
        %v905 = vadd.f32 0.0, %v904
        %v906 = vpop.f32.mrb[0].mxu0
        %v907 = vpop.f32.mrb[0].mxu0
        %v908 = vadd.f32 0.0, %v907
        %v909 = vpop.f32.mrb[0].mxu0
        %910 = vmatprep.mubr.bf16.mxu0 0
        %911 = vmatmul.mubr.bf16.gmra.mrb[0].mxu0 %v556
        %v912 = vpop.f32.mrb[0].mxu0
        %v913 = vadd.f32 0.0, %v912
        %v914 = vpop.f32.mrb[0].mxu0
        %v915 = vpop.f32.mrb[0].mxu0
        %v916 = vadd.f32 0.0, %v915
        %v917 = vpop.f32.mrb[0].mxu0
        %918 = vmatprep.mubr.bf16.mxu0 0
        %919 = vmatmul.mubr.bf16.gmra.mrb[0].mxu0 %v557
        %v920 = vpop.f32.mrb[0].mxu0
        %v921 = vadd.f32 0.0, %v920
        %v922 = vpop.f32.mrb[0].mxu0
        %v923 = vpop.f32.mrb[0].mxu0
        %v924 = vadd.f32 0.0, %v923
        %v925 = vpop.f32.mrb[0].mxu0
        %926 = vdwg.mxu0
        %v927 = vpack.c.bf16 %v676, %v673
        %v928 = vpack.c.bf16 %v684, %v681
        %v929 = vpack.c.bf16 %v692, %v689
        %v930 = vpack.c.bf16 %v700, %v697
        %v931 = vpack.c.bf16 %v708, %v705
        %v932 = vpack.c.bf16 %v716, %v713
        %v933 = vpack.c.bf16 %v724, %v721
        %v934 = vpack.c.bf16 %v732, %v729
        %v935 = vpack.c.bf16 %v740, %v737
        %v936 = vpack.c.bf16 %v748, %v745
        %v937 = vpack.c.bf16 %v756, %v753
        %v938 = vpack.c.bf16 %v764, %v761
        %v939 = vpack.c.bf16 %v772, %v769
        %v940 = vpack.c.bf16 %v780, %v777
        %v941 = vpack.c.bf16 %v788, %v785
        %v942 = vpack.c.bf16 %v796, %v793
        %v943 = vpack.c.bf16 %v804, %v801
        %v944 = vpack.c.bf16 %v812, %v809
        %v945 = vpack.c.bf16 %v820, %v817
        %v946 = vpack.c.bf16 %v828, %v825
        %v947 = vpack.c.bf16 %v836, %v833
        %v948 = vpack.c.bf16 %v844, %v841
        %v949 = vpack.c.bf16 %v852, %v849
        %v950 = vpack.c.bf16 %v860, %v857
        %v951 = vpack.c.bf16 %v868, %v865
        %v952 = vpack.c.bf16 %v876, %v873
        %v953 = vpack.c.bf16 %v884, %v881
        %v954 = vpack.c.bf16 %v892, %v889
        %v955 = vpack.c.bf16 %v900, %v897
        %v956 = vpack.c.bf16 %v908, %v905
        %v957 = vpack.c.bf16 %v916, %v913
        %v958 = vpack.c.bf16 %v924, %v921
        %v959 = vxor.u32 %v927, 2147516416
        %v960 = vxor.u32 %v928, 2147516416
        %v961 = vxor.u32 %v929, 2147516416
        %v962 = vxor.u32 %v930, 2147516416
        %v963 = vxor.u32 %v931, 2147516416
        %v964 = vxor.u32 %v932, 2147516416
        %v965 = vxor.u32 %v933, 2147516416
        %v966 = vxor.u32 %v934, 2147516416
        %v967 = vxor.u32 %v935, 2147516416
        %v968 = vxor.u32 %v936, 2147516416
        %v969 = vxor.u32 %v937, 2147516416
        %v970 = vxor.u32 %v938, 2147516416
        %v971 = vxor.u32 %v939, 2147516416
        %v972 = vxor.u32 %v940, 2147516416
        %v973 = vxor.u32 %v941, 2147516416
        %v974 = vxor.u32 %v942, 2147516416
        %v975 = vxor.u32 %v943, 2147516416
        %v976 = vxor.u32 %v944, 2147516416
        %v977 = vxor.u32 %v945, 2147516416
        %v978 = vxor.u32 %v946, 2147516416
        %v979 = vxor.u32 %v947, 2147516416
        %v980 = vxor.u32 %v948, 2147516416
        %v981 = vxor.u32 %v949, 2147516416
        %v982 = vxor.u32 %v950, 2147516416
        %v983 = vxor.u32 %v951, 2147516416
        %v984 = vxor.u32 %v952, 2147516416
        %v985 = vxor.u32 %v953, 2147516416
        %v986 = vxor.u32 %v954, 2147516416
        %v987 = vxor.u32 %v955, 2147516416
        %v988 = vxor.u32 %v956, 2147516416
        %v989 = vxor.u32 %v957, 2147516416
        %v990 = vxor.u32 %v958, 2147516416
        %v992 = vmul.bf16 %v959, 1069105081
        %v993 = vpow.bf16.pop %v992
        %v995 = vmul.bf16 %v960, 1069105081
        %v996 = vpow.bf16.pop %v995
        %v998 = vmul.bf16 %v961, 1069105081
        %v999 = vpow.bf16.pop %v998
        %v1001 = vmul.bf16 %v962, 1069105081
        %v1002 = vpow.bf16.pop %v1001
        %v1004 = vmul.bf16 %v963, 1069105081
        %v1005 = vpow.bf16.pop %v1004
        %v1007 = vmul.bf16 %v964, 1069105081
        %v1008 = vpow.bf16.pop %v1007
        %v1010 = vmul.bf16 %v965, 1069105081
        %v1011 = vpow.bf16.pop %v1010
        %v1013 = vmul.bf16 %v966, 1069105081
        %v1014 = vpow.bf16.pop %v1013
        %v1016 = vmul.bf16 %v967, 1069105081
        %v1017 = vpow.bf16.pop %v1016
        %v1019 = vmul.bf16 %v968, 1069105081
        %v1020 = vpow.bf16.pop %v1019
        %v1022 = vmul.bf16 %v969, 1069105081
        %v1023 = vpow.bf16.pop %v1022
        %v1025 = vmul.bf16 %v970, 1069105081
        %v1026 = vpow.bf16.pop %v1025
        %v1028 = vmul.bf16 %v971, 1069105081
        %v1029 = vpow.bf16.pop %v1028
        %v1031 = vmul.bf16 %v972, 1069105081
        %v1032 = vpow.bf16.pop %v1031
        %v1034 = vmul.bf16 %v973, 1069105081
        %v1035 = vpow.bf16.pop %v1034
        %v1037 = vmul.bf16 %v974, 1069105081
        %v1038 = vpow.bf16.pop %v1037
        %v1040 = vmul.bf16 %v975, 1069105081
        %v1041 = vpow.bf16.pop %v1040
        %v1043 = vmul.bf16 %v976, 1069105081
        %v1044 = vpow.bf16.pop %v1043
        %v1046 = vmul.bf16 %v977, 1069105081
        %v1047 = vpow.bf16.pop %v1046
        %v1049 = vmul.bf16 %v978, 1069105081
        %v1050 = vpow.bf16.pop %v1049
        %v1052 = vmul.bf16 %v979, 1069105081
        %v1053 = vpow.bf16.pop %v1052
        %v1055 = vmul.bf16 %v980, 1069105081
        %v1056 = vpow.bf16.pop %v1055
        %v1058 = vmul.bf16 %v981, 1069105081
        %v1059 = vpow.bf16.pop %v1058
        %v1061 = vmul.bf16 %v982, 1069105081
        %v1062 = vpow.bf16.pop %v1061
        %v1064 = vmul.bf16 %v983, 1069105081
        %v1065 = vpow.bf16.pop %v1064
        %v1067 = vmul.bf16 %v984, 1069105081
        %v1068 = vpow.bf16.pop %v1067
        %v1070 = vmul.bf16 %v985, 1069105081
        %v1071 = vpow.bf16.pop %v1070
        %v1073 = vmul.bf16 %v986, 1069105081
        %v1074 = vpow.bf16.pop %v1073
        %v1076 = vmul.bf16 %v987, 1069105081
        %v1077 = vpow.bf16.pop %v1076
        %v1079 = vmul.bf16 %v988, 1069105081
        %v1080 = vpow.bf16.pop %v1079
        %v1082 = vmul.bf16 %v989, 1069105081
        %v1083 = vpow.bf16.pop %v1082
        %v1085 = vmul.bf16 %v990, 1069105081
        %v1086 = vpow.bf16.pop %v1085
        %v1087 = vadd.bf16 %v993, 1065369472
        %v1088 = vadd.bf16 %v996, 1065369472
        %v1089 = vadd.bf16 %v999, 1065369472
        %v1090 = vadd.bf16 %v1002, 1065369472
        %v1091 = vadd.bf16 %v1005, 1065369472
        %v1092 = vadd.bf16 %v1008, 1065369472
        %v1093 = vadd.bf16 %v1011, 1065369472
        %v1094 = vadd.bf16 %v1014, 1065369472
        %v1095 = vadd.bf16 %v1017, 1065369472
        %v1096 = vadd.bf16 %v1020, 1065369472
        %v1097 = vadd.bf16 %v1023, 1065369472
        %v1098 = vadd.bf16 %v1026, 1065369472
        %v1099 = vadd.bf16 %v1029, 1065369472
        %v1100 = vadd.bf16 %v1032, 1065369472
        %v1101 = vadd.bf16 %v1035, 1065369472
        %v1102 = vadd.bf16 %v1038, 1065369472
        %v1103 = vadd.bf16 %v1041, 1065369472
        %v1104 = vadd.bf16 %v1044, 1065369472
        %v1105 = vadd.bf16 %v1047, 1065369472
        %v1106 = vadd.bf16 %v1050, 1065369472
        %v1107 = vadd.bf16 %v1053, 1065369472
        %v1108 = vadd.bf16 %v1056, 1065369472
        %v1109 = vadd.bf16 %v1059, 1065369472
        %v1110 = vadd.bf16 %v1062, 1065369472
        %v1111 = vadd.bf16 %v1065, 1065369472
        %v1112 = vadd.bf16 %v1068, 1065369472
        %v1113 = vadd.bf16 %v1071, 1065369472
        %v1114 = vadd.bf16 %v1074, 1065369472
        %v1115 = vadd.bf16 %v1077, 1065369472
        %v1116 = vadd.bf16 %v1080, 1065369472
        %v1117 = vadd.bf16 %v1083, 1065369472
        %v1118 = vadd.bf16 %v1086, 1065369472
        %v1119 = vrcp.bf16.pop %v1087
        %v1120 = vmul.bf16 1065369472, %v1119
        %v1121 = vrcp.bf16.pop %v1088
        %v1122 = vmul.bf16 1065369472, %v1121
        %v1123 = vrcp.bf16.pop %v1089
        %v1124 = vmul.bf16 1065369472, %v1123
        %v1125 = vrcp.bf16.pop %v1090
        %v1126 = vmul.bf16 1065369472, %v1125
        %v1127 = vrcp.bf16.pop %v1091
        %v1128 = vmul.bf16 1065369472, %v1127
        %v1129 = vrcp.bf16.pop %v1092
        %v1130 = vmul.bf16 1065369472, %v1129
        %v1131 = vrcp.bf16.pop %v1093
        %v1132 = vmul.bf16 1065369472, %v1131
        %v1133 = vrcp.bf16.pop %v1094
        %v1134 = vmul.bf16 1065369472, %v1133
        %v1135 = vrcp.bf16.pop %v1095
        %v1136 = vmul.bf16 1065369472, %v1135
        %v1137 = vrcp.bf16.pop %v1096
        %v1138 = vmul.bf16 1065369472, %v1137
        %v1139 = vrcp.bf16.pop %v1097
        %v1140 = vmul.bf16 1065369472, %v1139
        %v1141 = vrcp.bf16.pop %v1098
        %v1142 = vmul.bf16 1065369472, %v1141
        %v1143 = vrcp.bf16.pop %v1099
        %v1144 = vmul.bf16 1065369472, %v1143
        %v1145 = vrcp.bf16.pop %v1100
        %v1146 = vmul.bf16 1065369472, %v1145
        %v1147 = vrcp.bf16.pop %v1101
        %v1148 = vmul.bf16 1065369472, %v1147
        %v1149 = vrcp.bf16.pop %v1102
        %v1150 = vmul.bf16 1065369472, %v1149
        %v1151 = vrcp.bf16.pop %v1103
        %v1152 = vmul.bf16 1065369472, %v1151
        %v1153 = vrcp.bf16.pop %v1104
        %v1154 = vmul.bf16 1065369472, %v1153
        %v1155 = vrcp.bf16.pop %v1105
        %v1156 = vmul.bf16 1065369472, %v1155
        %v1157 = vrcp.bf16.pop %v1106
        %v1158 = vmul.bf16 1065369472, %v1157
        %v1159 = vrcp.bf16.pop %v1107
        %v1160 = vmul.bf16 1065369472, %v1159
        %v1161 = vrcp.bf16.pop %v1108
        %v1162 = vmul.bf16 1065369472, %v1161
        %v1163 = vrcp.bf16.pop %v1109
        %v1164 = vmul.bf16 1065369472, %v1163
        %v1165 = vrcp.bf16.pop %v1110
        %v1166 = vmul.bf16 1065369472, %v1165
        %v1167 = vrcp.bf16.pop %v1111
        %v1168 = vmul.bf16 1065369472, %v1167
        %v1169 = vrcp.bf16.pop %v1112
        %v1170 = vmul.bf16 1065369472, %v1169
        %v1171 = vrcp.bf16.pop %v1113
        %v1172 = vmul.bf16 1065369472, %v1171
        %v1173 = vrcp.bf16.pop %v1114
        %v1174 = vmul.bf16 1065369472, %v1173
        %v1175 = vrcp.bf16.pop %v1115
        %v1176 = vmul.bf16 1065369472, %v1175
        %v1177 = vrcp.bf16.pop %v1116
        %v1178 = vmul.bf16 1065369472, %v1177
        %v1179 = vrcp.bf16.pop %v1117
        %v1180 = vmul.bf16 1065369472, %v1179
        %v1181 = vrcp.bf16.pop %v1118
        %v1182 = vmul.bf16 1065369472, %v1181
        %v1183 = vmul.bf16 %v927, %v1120
        %v1184 = vmul.bf16 %v928, %v1122
        %v1185 = vmul.bf16 %v929, %v1124
        %v1186 = vmul.bf16 %v930, %v1126
        %v1187 = vmul.bf16 %v931, %v1128
        %v1188 = vmul.bf16 %v932, %v1130
        %v1189 = vmul.bf16 %v933, %v1132
        %v1190 = vmul.bf16 %v934, %v1134
        %v1191 = vmul.bf16 %v935, %v1136
        %v1192 = vmul.bf16 %v936, %v1138
        %v1193 = vmul.bf16 %v937, %v1140
        %v1194 = vmul.bf16 %v938, %v1142
        %v1195 = vmul.bf16 %v939, %v1144
        %v1196 = vmul.bf16 %v940, %v1146
        %v1197 = vmul.bf16 %v941, %v1148
        %v1198 = vmul.bf16 %v942, %v1150
        %v1199 = vmul.bf16 %v943, %v1152
        %v1200 = vmul.bf16 %v944, %v1154
        %v1201 = vmul.bf16 %v945, %v1156
        %v1202 = vmul.bf16 %v946, %v1158
        %v1203 = vmul.bf16 %v947, %v1160
        %v1204 = vmul.bf16 %v948, %v1162
        %v1205 = vmul.bf16 %v949, %v1164
        %v1206 = vmul.bf16 %v950, %v1166
        %v1207 = vmul.bf16 %v951, %v1168
        %v1208 = vmul.bf16 %v952, %v1170
        %v1209 = vmul.bf16 %v953, %v1172
        %v1210 = vmul.bf16 %v954, %v1174
        %v1211 = vmul.bf16 %v955, %v1176
        %v1212 = vmul.bf16 %v956, %v1178
        %v1213 = vmul.bf16 %v957, %v1180
        %v1214 = vmul.bf16 %v958, %v1182
        %v1215 = vld [vmem:[#allocation7] sm:$0xf]
        %v1216 = vld [vmem:[#allocation7 + $0x4] sm:$0xf]
        %v1217 = vld [vmem:[#allocation7 + $0x8] sm:$0xf]
        %v1218 = vld [vmem:[#allocation7 + $0xc] sm:$0xf]
        %v1219 = vld [vmem:[#allocation7 + $0x10] sm:$0xf]
        %v1220 = vld [vmem:[#allocation7 + $0x14] sm:$0xf]
        %v1221 = vld [vmem:[#allocation7 + $0x18] sm:$0xf]
        %v1222 = vld [vmem:[#allocation7 + $0x1c] sm:$0xf]
        %v1223 = vld [vmem:[#allocation7 + $0x20] sm:$0xf]
        %v1224 = vld [vmem:[#allocation7 + $0x24] sm:$0xf]
        %v1225 = vld [vmem:[#allocation7 + $0x28] sm:$0xf]
        %v1226 = vld [vmem:[#allocation7 + $0x2c] sm:$0xf]
        %v1227 = vld [vmem:[#allocation7 + $0x30] sm:$0xf]
        %v1228 = vld [vmem:[#allocation7 + $0x34] sm:$0xf]
        %v1229 = vld [vmem:[#allocation7 + $0x38] sm:$0xf]
        %v1230 = vld [vmem:[#allocation7 + $0x3c] sm:$0xf]
        %v1231 = vld [vmem:[%s3] sm:$0x1]
        %v1233 = vlaneseq
        %v1234 = vshrl.u32 %v1233, 7
        %v1235 = vsub.s32 0, %v1234
        %v1236 = vrot.slane %v1231, %v1235
        %v1254 = vunpack.c.l.b16 %v1215
        %v1255 = vunpack.c.l.b16 %v1216
        %v1256 = vunpack.c.l.b16 %v1217
        %v1257 = vunpack.c.l.b16 %v1218
        %v1258 = vunpack.c.l.b16 %v1219
        %v1259 = vunpack.c.l.b16 %v1220
        %v1260 = vunpack.c.l.b16 %v1221
        %v1261 = vunpack.c.l.b16 %v1222
        %v1262 = vunpack.c.l.b16 %v1223
        %v1263 = vunpack.c.l.b16 %v1224
        %v1264 = vunpack.c.l.b16 %v1225
        %v1265 = vunpack.c.l.b16 %v1226
        %v1266 = vunpack.c.l.b16 %v1227
        %v1267 = vunpack.c.l.b16 %v1228
        %v1268 = vunpack.c.l.b16 %v1229
        %v1269 = vunpack.c.l.b16 %v1230
        %v1270 = vpack.c.b16 %v1255, %v1254
        %v1271 = vpack.c.b16 %v1257, %v1256
        %v1272 = vpack.c.b16 %v1259, %v1258
        %v1273 = vpack.c.b16 %v1261, %v1260
        %v1274 = vpack.c.b16 %v1263, %v1262
        %v1275 = vpack.c.b16 %v1265, %v1264
        %v1276 = vpack.c.b16 %v1267, %v1266
        %v1277 = vpack.c.b16 %v1269, %v1268
        %1286 = vmatprep.subr.bf16.mxu0 0
        %1287 = vmatpush1.bf16.msra.mxu0 %v1270
        %1288 = vmatprep.subr.bf16.mxu0 0
        %1289 = vmatpush1.bf16.msra.mxu0 %v1271
        %1290 = vmatprep.subr.bf16.mxu0 0
        %1291 = vmatpush1.bf16.msra.mxu0 %v1272
        %1292 = vmatprep.subr.bf16.mxu0 0
        %1293 = vmatpush1.bf16.msra.mxu0 %v1273
        %1294 = vmatprep.subr.bf16.mxu0 0
        %1295 = vmatpush1.bf16.msra.mxu0 %v1274
        %1296 = vmatprep.subr.bf16.mxu0 0
        %1297 = vmatpush1.bf16.msra.mxu0 %v1275
        %1298 = vmatprep.subr.bf16.mxu0 0
        %1299 = vmatpush1.bf16.msra.mxu0 %v1276
        %1300 = vmatprep.subr.bf16.mxu0 0
        %1301 = vmatpush1.bf16.msra.mxu0 %v1277
        %1302 = vmatprep.subr.bf16.mxu0 0
        %1303 = vmatpush1.bf16.msra.mxu0 0
        %1304 = vmatprep.subr.bf16.mxu0 0
        %1305 = vmatpush1.bf16.msra.mxu0 0
        %1306 = vmatprep.subr.bf16.mxu0 0
        %1307 = vmatpush1.bf16.msra.mxu0 0
        %1308 = vmatprep.subr.bf16.mxu0 0
        %1309 = vmatpush1.bf16.msra.mxu0 0
        %1310 = vmatprep.subr.bf16.mxu0 0
        %1311 = vmatpush1.bf16.msra.mxu0 0
        %1312 = vmatprep.subr.bf16.mxu0 0
        %1313 = vmatpush1.bf16.msra.mxu0 0
        %1314 = vmatprep.subr.bf16.mxu0 0
        %1315 = vmatpush1.bf16.msra.mxu0 0
        %1316 = vmatprep.subr.bf16.mxu0 0
        %1317 = vmatpush1.bf16.msra.mxu0 0
        %1318 = vmatprep.mubr.bf16.mxu0 0
        %1319 = vmatmul.mubr.bf16.gmra.mrb[0].mxu0 %v1183
        %v1320 = vpop.f32.mrb[0].mxu0
        %v1321 = vadd.f32 %v1236, %v1320
        %v1322 = vpop.f32.mrb[0].mxu0
        %v1323 = vpop.f32.mrb[0].mxu0
        %v1324 = vadd.f32 %v1236, %v1323
        %v1325 = vpop.f32.mrb[0].mxu0
        %1326 = vmatprep.mubr.bf16.mxu0 0
        %1327 = vmatmul.mubr.bf16.gmra.mrb[0].mxu0 %v1184
        %v1328 = vpop.f32.mrb[0].mxu0
        %v1329 = vadd.f32 %v1236, %v1328
        %v1330 = vpop.f32.mrb[0].mxu0
        %v1331 = vpop.f32.mrb[0].mxu0
        %v1332 = vadd.f32 %v1236, %v1331
        %v1333 = vpop.f32.mrb[0].mxu0
        %1334 = vmatprep.mubr.bf16.mxu0 0
        %1335 = vmatmul.mubr.bf16.gmra.mrb[0].mxu0 %v1185
        %v1336 = vpop.f32.mrb[0].mxu0
        %v1337 = vadd.f32 %v1236, %v1336
        %v1338 = vpop.f32.mrb[0].mxu0
        %v1339 = vpop.f32.mrb[0].mxu0
        %v1340 = vadd.f32 %v1236, %v1339
        %v1341 = vpop.f32.mrb[0].mxu0
        %1342 = vmatprep.mubr.bf16.mxu0 0
        %1343 = vmatmul.mubr.bf16.gmra.mrb[0].mxu0 %v1186
        %v1344 = vpop.f32.mrb[0].mxu0
        %v1345 = vadd.f32 %v1236, %v1344
        %v1346 = vpop.f32.mrb[0].mxu0
        %v1347 = vpop.f32.mrb[0].mxu0
        %v1348 = vadd.f32 %v1236, %v1347
        %v1349 = vpop.f32.mrb[0].mxu0
        %1350 = vmatprep.mubr.bf16.mxu0 0
        %1351 = vmatmul.mubr.bf16.gmra.mrb[0].mxu0 %v1187
        %v1352 = vpop.f32.mrb[0].mxu0
        %v1353 = vadd.f32 %v1236, %v1352
        %v1354 = vpop.f32.mrb[0].mxu0
        %v1355 = vpop.f32.mrb[0].mxu0
        %v1356 = vadd.f32 %v1236, %v1355
        %v1357 = vpop.f32.mrb[0].mxu0
        %1358 = vmatprep.mubr.bf16.mxu0 0
        %1359 = vmatmul.mubr.bf16.gmra.mrb[0].mxu0 %v1188
        %v1360 = vpop.f32.mrb[0].mxu0
        %v1361 = vadd.f32 %v1236, %v1360
        %v1362 = vpop.f32.mrb[0].mxu0
        %v1363 = vpop.f32.mrb[0].mxu0
        %v1364 = vadd.f32 %v1236, %v1363
        %v1365 = vpop.f32.mrb[0].mxu0
        %1366 = vmatprep.mubr.bf16.mxu0 0
        %1367 = vmatmul.mubr.bf16.gmra.mrb[0].mxu0 %v1189
        %v1368 = vpop.f32.mrb[0].mxu0
        %v1369 = vadd.f32 %v1236, %v1368
        %v1370 = vpop.f32.mrb[0].mxu0
        %v1371 = vpop.f32.mrb[0].mxu0
        %v1372 = vadd.f32 %v1236, %v1371
        %v1373 = vpop.f32.mrb[0].mxu0
        %1374 = vmatprep.mubr.bf16.mxu0 0
        %1375 = vmatmul.mubr.bf16.gmra.mrb[0].mxu0 %v1190
        %v1376 = vpop.f32.mrb[0].mxu0
        %v1377 = vadd.f32 %v1236, %v1376
        %v1378 = vpop.f32.mrb[0].mxu0
        %v1379 = vpop.f32.mrb[0].mxu0
        %v1380 = vadd.f32 %v1236, %v1379
        %v1381 = vpop.f32.mrb[0].mxu0
        %1382 = vmatprep.mubr.bf16.mxu0 0
        %1383 = vmatmul.mubr.bf16.gmra.mrb[0].mxu0 %v1191
        %v1384 = vpop.f32.mrb[0].mxu0
        %v1385 = vadd.f32 %v1236, %v1384
        %v1386 = vpop.f32.mrb[0].mxu0
        %v1387 = vpop.f32.mrb[0].mxu0
        %v1388 = vadd.f32 %v1236, %v1387
        %v1389 = vpop.f32.mrb[0].mxu0
        %1390 = vmatprep.mubr.bf16.mxu0 0
        %1391 = vmatmul.mubr.bf16.gmra.mrb[0].mxu0 %v1192
        %v1392 = vpop.f32.mrb[0].mxu0
        %v1393 = vadd.f32 %v1236, %v1392
        %v1394 = vpop.f32.mrb[0].mxu0
        %v1395 = vpop.f32.mrb[0].mxu0
        %v1396 = vadd.f32 %v1236, %v1395
        %v1397 = vpop.f32.mrb[0].mxu0
        %1398 = vmatprep.mubr.bf16.mxu0 0
        %1399 = vmatmul.mubr.bf16.gmra.mrb[0].mxu0 %v1193
        %v1400 = vpop.f32.mrb[0].mxu0
        %v1401 = vadd.f32 %v1236, %v1400
        %v1402 = vpop.f32.mrb[0].mxu0
        %v1403 = vpop.f32.mrb[0].mxu0
        %v1404 = vadd.f32 %v1236, %v1403
        %v1405 = vpop.f32.mrb[0].mxu0
        %1406 = vmatprep.mubr.bf16.mxu0 0
        %1407 = vmatmul.mubr.bf16.gmra.mrb[0].mxu0 %v1194
        %v1408 = vpop.f32.mrb[0].mxu0
        %v1409 = vadd.f32 %v1236, %v1408
        %v1410 = vpop.f32.mrb[0].mxu0
        %v1411 = vpop.f32.mrb[0].mxu0
        %v1412 = vadd.f32 %v1236, %v1411
        %v1413 = vpop.f32.mrb[0].mxu0
        %1414 = vmatprep.mubr.bf16.mxu0 0
        %1415 = vmatmul.mubr.bf16.gmra.mrb[0].mxu0 %v1195
        %v1416 = vpop.f32.mrb[0].mxu0
        %v1417 = vadd.f32 %v1236, %v1416
        %v1418 = vpop.f32.mrb[0].mxu0
        %v1419 = vpop.f32.mrb[0].mxu0
        %v1420 = vadd.f32 %v1236, %v1419
        %v1421 = vpop.f32.mrb[0].mxu0
        %1422 = vmatprep.mubr.bf16.mxu0 0
        %1423 = vmatmul.mubr.bf16.gmra.mrb[0].mxu0 %v1196
        %v1424 = vpop.f32.mrb[0].mxu0
        %v1425 = vadd.f32 %v1236, %v1424
        %v1426 = vpop.f32.mrb[0].mxu0
        %v1427 = vpop.f32.mrb[0].mxu0
        %v1428 = vadd.f32 %v1236, %v1427
        %v1429 = vpop.f32.mrb[0].mxu0
        %1430 = vmatprep.mubr.bf16.mxu0 0
        %1431 = vmatmul.mubr.bf16.gmra.mrb[0].mxu0 %v1197
        %v1432 = vpop.f32.mrb[0].mxu0
        %v1433 = vadd.f32 %v1236, %v1432
        %v1434 = vpop.f32.mrb[0].mxu0
        %v1435 = vpop.f32.mrb[0].mxu0
        %v1436 = vadd.f32 %v1236, %v1435
        %v1437 = vpop.f32.mrb[0].mxu0
        %1438 = vmatprep.mubr.bf16.mxu0 0
        %1439 = vmatmul.mubr.bf16.gmra.mrb[0].mxu0 %v1198
        %v1440 = vpop.f32.mrb[0].mxu0
        %v1441 = vadd.f32 %v1236, %v1440
        %v1442 = vpop.f32.mrb[0].mxu0
        %v1443 = vpop.f32.mrb[0].mxu0
        %v1444 = vadd.f32 %v1236, %v1443
        %v1445 = vpop.f32.mrb[0].mxu0
        %1446 = vmatprep.mubr.bf16.mxu0 0
        %1447 = vmatmul.mubr.bf16.gmra.mrb[0].mxu0 %v1199
        %v1448 = vpop.f32.mrb[0].mxu0
        %v1449 = vadd.f32 %v1236, %v1448
        %v1450 = vpop.f32.mrb[0].mxu0
        %v1451 = vpop.f32.mrb[0].mxu0
        %v1452 = vadd.f32 %v1236, %v1451
        %v1453 = vpop.f32.mrb[0].mxu0
        %1454 = vmatprep.mubr.bf16.mxu0 0
        %1455 = vmatmul.mubr.bf16.gmra.mrb[0].mxu0 %v1200
        %v1456 = vpop.f32.mrb[0].mxu0
        %v1457 = vadd.f32 %v1236, %v1456
        %v1458 = vpop.f32.mrb[0].mxu0
        %v1459 = vpop.f32.mrb[0].mxu0
        %v1460 = vadd.f32 %v1236, %v1459
        %v1461 = vpop.f32.mrb[0].mxu0
        %1462 = vmatprep.mubr.bf16.mxu0 0
        %1463 = vmatmul.mubr.bf16.gmra.mrb[0].mxu0 %v1201
        %v1464 = vpop.f32.mrb[0].mxu0
        %v1465 = vadd.f32 %v1236, %v1464
        %v1466 = vpop.f32.mrb[0].mxu0
        %v1467 = vpop.f32.mrb[0].mxu0
        %v1468 = vadd.f32 %v1236, %v1467
        %v1469 = vpop.f32.mrb[0].mxu0
        %1470 = vmatprep.mubr.bf16.mxu0 0
        %1471 = vmatmul.mubr.bf16.gmra.mrb[0].mxu0 %v1202
        %v1472 = vpop.f32.mrb[0].mxu0
        %v1473 = vadd.f32 %v1236, %v1472
        %v1474 = vpop.f32.mrb[0].mxu0
        %v1475 = vpop.f32.mrb[0].mxu0
        %v1476 = vadd.f32 %v1236, %v1475
        %v1477 = vpop.f32.mrb[0].mxu0
        %1478 = vmatprep.mubr.bf16.mxu0 0
        %1479 = vmatmul.mubr.bf16.gmra.mrb[0].mxu0 %v1203
        %v1480 = vpop.f32.mrb[0].mxu0
        %v1481 = vadd.f32 %v1236, %v1480
        %v1482 = vpop.f32.mrb[0].mxu0
        %v1483 = vpop.f32.mrb[0].mxu0
        %v1484 = vadd.f32 %v1236, %v1483
        %v1485 = vpop.f32.mrb[0].mxu0
        %1486 = vmatprep.mubr.bf16.mxu0 0
        %1487 = vmatmul.mubr.bf16.gmra.mrb[0].mxu0 %v1204
        %v1488 = vpop.f32.mrb[0].mxu0
        %v1489 = vadd.f32 %v1236, %v1488
        %v1490 = vpop.f32.mrb[0].mxu0
        %v1491 = vpop.f32.mrb[0].mxu0
        %v1492 = vadd.f32 %v1236, %v1491
        %v1493 = vpop.f32.mrb[0].mxu0
        %1494 = vmatprep.mubr.bf16.mxu0 0
        %1495 = vmatmul.mubr.bf16.gmra.mrb[0].mxu0 %v1205
        %v1496 = vpop.f32.mrb[0].mxu0
        %v1497 = vadd.f32 %v1236, %v1496
        %v1498 = vpop.f32.mrb[0].mxu0
        %v1499 = vpop.f32.mrb[0].mxu0
        %v1500 = vadd.f32 %v1236, %v1499
        %v1501 = vpop.f32.mrb[0].mxu0
        %1502 = vmatprep.mubr.bf16.mxu0 0
        %1503 = vmatmul.mubr.bf16.gmra.mrb[0].mxu0 %v1206
        %v1504 = vpop.f32.mrb[0].mxu0
        %v1505 = vadd.f32 %v1236, %v1504
        %v1506 = vpop.f32.mrb[0].mxu0
        %v1507 = vpop.f32.mrb[0].mxu0
        %v1508 = vadd.f32 %v1236, %v1507
        %v1509 = vpop.f32.mrb[0].mxu0
        %1510 = vmatprep.mubr.bf16.mxu0 0
        %1511 = vmatmul.mubr.bf16.gmra.mrb[0].mxu0 %v1207
        %v1512 = vpop.f32.mrb[0].mxu0
        %v1513 = vadd.f32 %v1236, %v1512
        %v1514 = vpop.f32.mrb[0].mxu0
        %v1515 = vpop.f32.mrb[0].mxu0
        %v1516 = vadd.f32 %v1236, %v1515
        %v1517 = vpop.f32.mrb[0].mxu0
        %1518 = vmatprep.mubr.bf16.mxu0 0
        %1519 = vmatmul.mubr.bf16.gmra.mrb[0].mxu0 %v1208
        %v1520 = vpop.f32.mrb[0].mxu0
        %v1521 = vadd.f32 %v1236, %v1520
        %v1522 = vpop.f32.mrb[0].mxu0
        %v1523 = vpop.f32.mrb[0].mxu0
        %v1524 = vadd.f32 %v1236, %v1523
        %v1525 = vpop.f32.mrb[0].mxu0
        %1526 = vmatprep.mubr.bf16.mxu0 0
        %1527 = vmatmul.mubr.bf16.gmra.mrb[0].mxu0 %v1209
        %v1528 = vpop.f32.mrb[0].mxu0
        %v1529 = vadd.f32 %v1236, %v1528
        %v1530 = vpop.f32.mrb[0].mxu0
        %v1531 = vpop.f32.mrb[0].mxu0
        %v1532 = vadd.f32 %v1236, %v1531
        %v1533 = vpop.f32.mrb[0].mxu0
        %1534 = vmatprep.mubr.bf16.mxu0 0
        %1535 = vmatmul.mubr.bf16.gmra.mrb[0].mxu0 %v1210
        %v1536 = vpop.f32.mrb[0].mxu0
        %v1537 = vadd.f32 %v1236, %v1536
        %v1538 = vpop.f32.mrb[0].mxu0
        %v1539 = vpop.f32.mrb[0].mxu0
        %v1540 = vadd.f32 %v1236, %v1539
        %v1541 = vpop.f32.mrb[0].mxu0
        %1542 = vmatprep.mubr.bf16.mxu0 0
        %1543 = vmatmul.mubr.bf16.gmra.mrb[0].mxu0 %v1211
        %v1544 = vpop.f32.mrb[0].mxu0
        %v1545 = vadd.f32 %v1236, %v1544
        %v1546 = vpop.f32.mrb[0].mxu0
        %v1547 = vpop.f32.mrb[0].mxu0
        %v1548 = vadd.f32 %v1236, %v1547
        %v1549 = vpop.f32.mrb[0].mxu0
        %1550 = vmatprep.mubr.bf16.mxu0 0
        %1551 = vmatmul.mubr.bf16.gmra.mrb[0].mxu0 %v1212
        %v1552 = vpop.f32.mrb[0].mxu0
        %v1553 = vadd.f32 %v1236, %v1552
        %v1554 = vpop.f32.mrb[0].mxu0
        %v1555 = vpop.f32.mrb[0].mxu0
        %v1556 = vadd.f32 %v1236, %v1555
        %v1557 = vpop.f32.mrb[0].mxu0
        %1558 = vmatprep.mubr.bf16.mxu0 0
        %1559 = vmatmul.mubr.bf16.gmra.mrb[0].mxu0 %v1213
        %v1560 = vpop.f32.mrb[0].mxu0
        %v1561 = vadd.f32 %v1236, %v1560
        %v1562 = vpop.f32.mrb[0].mxu0
        %v1563 = vpop.f32.mrb[0].mxu0
        %v1564 = vadd.f32 %v1236, %v1563
        %v1565 = vpop.f32.mrb[0].mxu0
        %1566 = vmatprep.mubr.bf16.mxu0 0
        %1567 = vmatmul.mubr.bf16.gmra.mrb[0].mxu0 %v1214
        %v1568 = vpop.f32.mrb[0].mxu0
        %v1569 = vadd.f32 %v1236, %v1568
        %v1570 = vpop.f32.mrb[0].mxu0
        %v1571 = vpop.f32.mrb[0].mxu0
        %v1572 = vadd.f32 %v1236, %v1571
        %v1573 = vpop.f32.mrb[0].mxu0
        %1574 = vdwg.mxu0
        %v1575 = vpack.c.bf16 %v1324, %v1321
        %v1576 = vpack.c.bf16 %v1332, %v1329
        %v1577 = vpack.c.bf16 %v1340, %v1337
        %v1578 = vpack.c.bf16 %v1348, %v1345
        %v1579 = vpack.c.bf16 %v1356, %v1353
        %v1580 = vpack.c.bf16 %v1364, %v1361
        %v1581 = vpack.c.bf16 %v1372, %v1369
        %v1582 = vpack.c.bf16 %v1380, %v1377
        %v1583 = vpack.c.bf16 %v1388, %v1385
        %v1584 = vpack.c.bf16 %v1396, %v1393
        %v1585 = vpack.c.bf16 %v1404, %v1401
        %v1586 = vpack.c.bf16 %v1412, %v1409
        %v1587 = vpack.c.bf16 %v1420, %v1417
        %v1588 = vpack.c.bf16 %v1428, %v1425
        %v1589 = vpack.c.bf16 %v1436, %v1433
        %v1590 = vpack.c.bf16 %v1444, %v1441
        %v1591 = vpack.c.bf16 %v1452, %v1449
        %v1592 = vpack.c.bf16 %v1460, %v1457
        %v1593 = vpack.c.bf16 %v1468, %v1465
        %v1594 = vpack.c.bf16 %v1476, %v1473
        %v1595 = vpack.c.bf16 %v1484, %v1481
        %v1596 = vpack.c.bf16 %v1492, %v1489
        %v1597 = vpack.c.bf16 %v1500, %v1497
        %v1598 = vpack.c.bf16 %v1508, %v1505
        %v1599 = vpack.c.bf16 %v1516, %v1513
        %v1600 = vpack.c.bf16 %v1524, %v1521
        %v1601 = vpack.c.bf16 %v1532, %v1529
        %v1602 = vpack.c.bf16 %v1540, %v1537
        %v1603 = vpack.c.bf16 %v1548, %v1545
        %v1604 = vpack.c.bf16 %v1556, %v1553
        %v1605 = vpack.c.bf16 %v1564, %v1561
        %v1606 = vpack.c.bf16 %v1572, %v1569
        %v1607 = vxor.u32 %v1575, 2147516416
        %v1608 = vxor.u32 %v1576, 2147516416
        %v1609 = vxor.u32 %v1577, 2147516416
        %v1610 = vxor.u32 %v1578, 2147516416
        %v1611 = vxor.u32 %v1579, 2147516416
        %v1612 = vxor.u32 %v1580, 2147516416
        %v1613 = vxor.u32 %v1581, 2147516416
        %v1614 = vxor.u32 %v1582, 2147516416
        %v1615 = vxor.u32 %v1583, 2147516416
        %v1616 = vxor.u32 %v1584, 2147516416
        %v1617 = vxor.u32 %v1585, 2147516416
        %v1618 = vxor.u32 %v1586, 2147516416
        %v1619 = vxor.u32 %v1587, 2147516416
        %v1620 = vxor.u32 %v1588, 2147516416
        %v1621 = vxor.u32 %v1589, 2147516416
        %v1622 = vxor.u32 %v1590, 2147516416
        %v1623 = vxor.u32 %v1591, 2147516416
        %v1624 = vxor.u32 %v1592, 2147516416
        %v1625 = vxor.u32 %v1593, 2147516416
        %v1626 = vxor.u32 %v1594, 2147516416
        %v1627 = vxor.u32 %v1595, 2147516416
        %v1628 = vxor.u32 %v1596, 2147516416
        %v1629 = vxor.u32 %v1597, 2147516416
        %v1630 = vxor.u32 %v1598, 2147516416
        %v1631 = vxor.u32 %v1599, 2147516416
        %v1632 = vxor.u32 %v1600, 2147516416
        %v1633 = vxor.u32 %v1601, 2147516416
        %v1634 = vxor.u32 %v1602, 2147516416
        %v1635 = vxor.u32 %v1603, 2147516416
        %v1636 = vxor.u32 %v1604, 2147516416
        %v1637 = vxor.u32 %v1605, 2147516416
        %v1638 = vxor.u32 %v1606, 2147516416
        %v1640 = vmul.bf16 %v1607, 1069105081
        %v1641 = vpow.bf16.pop %v1640
        %v1643 = vmul.bf16 %v1608, 1069105081
        %v1644 = vpow.bf16.pop %v1643
        %v1646 = vmul.bf16 %v1609, 1069105081
        %v1647 = vpow.bf16.pop %v1646
        %v1649 = vmul.bf16 %v1610, 1069105081
        %v1650 = vpow.bf16.pop %v1649
        %v1652 = vmul.bf16 %v1611, 1069105081
        %v1653 = vpow.bf16.pop %v1652
        %v1655 = vmul.bf16 %v1612, 1069105081
        %v1656 = vpow.bf16.pop %v1655
        %v1658 = vmul.bf16 %v1613, 1069105081
        %v1659 = vpow.bf16.pop %v1658
        %v1661 = vmul.bf16 %v1614, 1069105081
        %v1662 = vpow.bf16.pop %v1661
        %v1664 = vmul.bf16 %v1615, 1069105081
        %v1665 = vpow.bf16.pop %v1664
        %v1667 = vmul.bf16 %v1616, 1069105081
        %v1668 = vpow.bf16.pop %v1667
        %v1670 = vmul.bf16 %v1617, 1069105081
        %v1671 = vpow.bf16.pop %v1670
        %v1673 = vmul.bf16 %v1618, 1069105081
        %v1674 = vpow.bf16.pop %v1673
        %v1676 = vmul.bf16 %v1619, 1069105081
        %v1677 = vpow.bf16.pop %v1676
        %v1679 = vmul.bf16 %v1620, 1069105081
        %v1680 = vpow.bf16.pop %v1679
        %v1682 = vmul.bf16 %v1621, 1069105081
        %v1683 = vpow.bf16.pop %v1682
        %v1685 = vmul.bf16 %v1622, 1069105081
        %v1686 = vpow.bf16.pop %v1685
        %v1688 = vmul.bf16 %v1623, 1069105081
        %v1689 = vpow.bf16.pop %v1688
        %v1691 = vmul.bf16 %v1624, 1069105081
        %v1692 = vpow.bf16.pop %v1691
        %v1694 = vmul.bf16 %v1625, 1069105081
        %v1695 = vpow.bf16.pop %v1694
        %v1697 = vmul.bf16 %v1626, 1069105081
        %v1698 = vpow.bf16.pop %v1697
        %v1700 = vmul.bf16 %v1627, 1069105081
        %v1701 = vpow.bf16.pop %v1700
        %v1703 = vmul.bf16 %v1628, 1069105081
        %v1704 = vpow.bf16.pop %v1703
        %v1706 = vmul.bf16 %v1629, 1069105081
        %v1707 = vpow.bf16.pop %v1706
        %v1709 = vmul.bf16 %v1630, 1069105081
        %v1710 = vpow.bf16.pop %v1709
        %v1712 = vmul.bf16 %v1631, 1069105081
        %v1713 = vpow.bf16.pop %v1712
        %v1715 = vmul.bf16 %v1632, 1069105081
        %v1716 = vpow.bf16.pop %v1715
        %v1718 = vmul.bf16 %v1633, 1069105081
        %v1719 = vpow.bf16.pop %v1718
        %v1721 = vmul.bf16 %v1634, 1069105081
        %v1722 = vpow.bf16.pop %v1721
        %v1724 = vmul.bf16 %v1635, 1069105081
        %v1725 = vpow.bf16.pop %v1724
        %v1727 = vmul.bf16 %v1636, 1069105081
        %v1728 = vpow.bf16.pop %v1727
        %v1730 = vmul.bf16 %v1637, 1069105081
        %v1731 = vpow.bf16.pop %v1730
        %v1733 = vmul.bf16 %v1638, 1069105081
        %v1734 = vpow.bf16.pop %v1733
        %v1735 = vadd.bf16 %v1641, 1065369472
        %v1736 = vadd.bf16 %v1644, 1065369472
        %v1737 = vadd.bf16 %v1647, 1065369472
        %v1738 = vadd.bf16 %v1650, 1065369472
        %v1739 = vadd.bf16 %v1653, 1065369472
        %v1740 = vadd.bf16 %v1656, 1065369472
        %v1741 = vadd.bf16 %v1659, 1065369472
        %v1742 = vadd.bf16 %v1662, 1065369472
        %v1743 = vadd.bf16 %v1665, 1065369472
        %v1744 = vadd.bf16 %v1668, 1065369472
        %v1745 = vadd.bf16 %v1671, 1065369472
        %v1746 = vadd.bf16 %v1674, 1065369472
        %v1747 = vadd.bf16 %v1677, 1065369472
        %v1748 = vadd.bf16 %v1680, 1065369472
        %v1749 = vadd.bf16 %v1683, 1065369472
        %v1750 = vadd.bf16 %v1686, 1065369472
        %v1751 = vadd.bf16 %v1689, 1065369472
        %v1752 = vadd.bf16 %v1692, 1065369472
        %v1753 = vadd.bf16 %v1695, 1065369472
        %v1754 = vadd.bf16 %v1698, 1065369472
        %v1755 = vadd.bf16 %v1701, 1065369472
        %v1756 = vadd.bf16 %v1704, 1065369472
        %v1757 = vadd.bf16 %v1707, 1065369472
        %v1758 = vadd.bf16 %v1710, 1065369472
        %v1759 = vadd.bf16 %v1713, 1065369472
        %v1760 = vadd.bf16 %v1716, 1065369472
        %v1761 = vadd.bf16 %v1719, 1065369472
        %v1762 = vadd.bf16 %v1722, 1065369472
        %v1763 = vadd.bf16 %v1725, 1065369472
        %v1764 = vadd.bf16 %v1728, 1065369472
        %v1765 = vadd.bf16 %v1731, 1065369472
        %v1766 = vadd.bf16 %v1734, 1065369472
        %v1767 = vrcp.bf16.pop %v1735
        %v1768 = vmul.bf16 1065369472, %v1767
        %v1769 = vrcp.bf16.pop %v1736
        %v1770 = vmul.bf16 1065369472, %v1769
        %v1771 = vrcp.bf16.pop %v1737
        %v1772 = vmul.bf16 1065369472, %v1771
        %v1773 = vrcp.bf16.pop %v1738
        %v1774 = vmul.bf16 1065369472, %v1773
        %v1775 = vrcp.bf16.pop %v1739
        %v1776 = vmul.bf16 1065369472, %v1775
        %v1777 = vrcp.bf16.pop %v1740
        %v1778 = vmul.bf16 1065369472, %v1777
        %v1779 = vrcp.bf16.pop %v1741
        %v1780 = vmul.bf16 1065369472, %v1779
        %v1781 = vrcp.bf16.pop %v1742
        %v1782 = vmul.bf16 1065369472, %v1781
        %v1783 = vrcp.bf16.pop %v1743
        %v1784 = vmul.bf16 1065369472, %v1783
        %v1785 = vrcp.bf16.pop %v1744
        %v1786 = vmul.bf16 1065369472, %v1785
        %v1787 = vrcp.bf16.pop %v1745
        %v1788 = vmul.bf16 1065369472, %v1787
        %v1789 = vrcp.bf16.pop %v1746
        %v1790 = vmul.bf16 1065369472, %v1789
        %v1791 = vrcp.bf16.pop %v1747
        %v1792 = vmul.bf16 1065369472, %v1791
        %v1793 = vrcp.bf16.pop %v1748
        %v1794 = vmul.bf16 1065369472, %v1793
        %v1795 = vrcp.bf16.pop %v1749
        %v1796 = vmul.bf16 1065369472, %v1795
        %v1797 = vrcp.bf16.pop %v1750
        %v1798 = vmul.bf16 1065369472, %v1797
        %v1799 = vrcp.bf16.pop %v1751
        %v1800 = vmul.bf16 1065369472, %v1799
        %v1801 = vrcp.bf16.pop %v1752
        %v1802 = vmul.bf16 1065369472, %v1801
        %v1803 = vrcp.bf16.pop %v1753
        %v1804 = vmul.bf16 1065369472, %v1803
        %v1805 = vrcp.bf16.pop %v1754
        %v1806 = vmul.bf16 1065369472, %v1805
        %v1807 = vrcp.bf16.pop %v1755
        %v1808 = vmul.bf16 1065369472, %v1807
        %v1809 = vrcp.bf16.pop %v1756
        %v1810 = vmul.bf16 1065369472, %v1809
        %v1811 = vrcp.bf16.pop %v1757
        %v1812 = vmul.bf16 1065369472, %v1811
        %v1813 = vrcp.bf16.pop %v1758
        %v1814 = vmul.bf16 1065369472, %v1813
        %v1815 = vrcp.bf16.pop %v1759
        %v1816 = vmul.bf16 1065369472, %v1815
        %v1817 = vrcp.bf16.pop %v1760
        %v1818 = vmul.bf16 1065369472, %v1817
        %v1819 = vrcp.bf16.pop %v1761
        %v1820 = vmul.bf16 1065369472, %v1819
        %v1821 = vrcp.bf16.pop %v1762
        %v1822 = vmul.bf16 1065369472, %v1821
        %v1823 = vrcp.bf16.pop %v1763
        %v1824 = vmul.bf16 1065369472, %v1823
        %v1825 = vrcp.bf16.pop %v1764
        %v1826 = vmul.bf16 1065369472, %v1825
        %v1827 = vrcp.bf16.pop %v1765
        %v1828 = vmul.bf16 1065369472, %v1827
        %v1829 = vrcp.bf16.pop %v1766
        %v1830 = vmul.bf16 1065369472, %v1829
        %v1831 = vmul.bf16 %v1575, %v1768
        %v1832 = vmul.bf16 %v1576, %v1770
        %v1833 = vmul.bf16 %v1577, %v1772
        %v1834 = vmul.bf16 %v1578, %v1774
        %v1835 = vmul.bf16 %v1579, %v1776
        %v1836 = vmul.bf16 %v1580, %v1778
        %v1837 = vmul.bf16 %v1581, %v1780
        %v1838 = vmul.bf16 %v1582, %v1782
        %v1839 = vmul.bf16 %v1583, %v1784
        %v1840 = vmul.bf16 %v1584, %v1786
        %v1841 = vmul.bf16 %v1585, %v1788
        %v1842 = vmul.bf16 %v1586, %v1790
        %v1843 = vmul.bf16 %v1587, %v1792
        %v1844 = vmul.bf16 %v1588, %v1794
        %v1845 = vmul.bf16 %v1589, %v1796
        %v1846 = vmul.bf16 %v1590, %v1798
        %v1847 = vmul.bf16 %v1591, %v1800
        %v1848 = vmul.bf16 %v1592, %v1802
        %v1849 = vmul.bf16 %v1593, %v1804
        %v1850 = vmul.bf16 %v1594, %v1806
        %v1851 = vmul.bf16 %v1595, %v1808
        %v1852 = vmul.bf16 %v1596, %v1810
        %v1853 = vmul.bf16 %v1597, %v1812
        %v1854 = vmul.bf16 %v1598, %v1814
        %v1855 = vmul.bf16 %v1599, %v1816
        %v1856 = vmul.bf16 %v1600, %v1818
        %v1857 = vmul.bf16 %v1601, %v1820
        %v1858 = vmul.bf16 %v1602, %v1822
        %v1859 = vmul.bf16 %v1603, %v1824
        %v1860 = vmul.bf16 %v1604, %v1826
        %v1861 = vmul.bf16 %v1605, %v1828
        %v1862 = vmul.bf16 %v1606, %v1830
        %v1863 = vld [vmem:[#allocation8] sm:$0xf]
        %v1864 = vld [vmem:[#allocation8 + $0x4] sm:$0xf]
        %v1865 = vld [vmem:[#allocation8 + $0x8] sm:$0xf]
        %v1866 = vld [vmem:[#allocation8 + $0xc] sm:$0xf]
        %v1867 = vld [vmem:[#allocation8 + $0x10] sm:$0xf]
        %v1868 = vld [vmem:[#allocation8 + $0x14] sm:$0xf]
        %v1869 = vld [vmem:[#allocation8 + $0x18] sm:$0xf]
        %v1870 = vld [vmem:[#allocation8 + $0x1c] sm:$0xf]
        %v1871 = vld [vmem:[#allocation8 + $0x20] sm:$0xf]
        %v1872 = vld [vmem:[#allocation8 + $0x24] sm:$0xf]
        %v1873 = vld [vmem:[#allocation8 + $0x28] sm:$0xf]
        %v1874 = vld [vmem:[#allocation8 + $0x2c] sm:$0xf]
        %v1875 = vld [vmem:[#allocation8 + $0x30] sm:$0xf]
        %v1876 = vld [vmem:[#allocation8 + $0x34] sm:$0xf]
        %v1877 = vld [vmem:[#allocation8 + $0x38] sm:$0xf]
        %v1878 = vld [vmem:[#allocation8 + $0x3c] sm:$0xf]
        %v1879 = vld [vmem:[%s5] sm:$0x1]
        %v1881 = vlaneseq
        %v1882 = vshrl.u32 %v1881, 7
        %v1883 = vsub.s32 0, %v1882
        %v1884 = vrot.slane %v1879, %v1883
        %v1902 = vunpack.c.l.b16 %v1863
        %v1903 = vunpack.c.l.b16 %v1864
        %v1904 = vunpack.c.l.b16 %v1865
        %v1905 = vunpack.c.l.b16 %v1866
        %v1906 = vunpack.c.l.b16 %v1867
        %v1907 = vunpack.c.l.b16 %v1868
        %v1908 = vunpack.c.l.b16 %v1869
        %v1909 = vunpack.c.l.b16 %v1870
        %v1910 = vunpack.c.l.b16 %v1871
        %v1911 = vunpack.c.l.b16 %v1872
        %v1912 = vunpack.c.l.b16 %v1873
        %v1913 = vunpack.c.l.b16 %v1874
        %v1914 = vunpack.c.l.b16 %v1875
        %v1915 = vunpack.c.l.b16 %v1876
        %v1916 = vunpack.c.l.b16 %v1877
        %v1917 = vunpack.c.l.b16 %v1878
        %v1918 = vpack.c.b16 %v1903, %v1902
        %v1919 = vpack.c.b16 %v1905, %v1904
        %v1920 = vpack.c.b16 %v1907, %v1906
        %v1921 = vpack.c.b16 %v1909, %v1908
        %v1922 = vpack.c.b16 %v1911, %v1910
        %v1923 = vpack.c.b16 %v1913, %v1912
        %v1924 = vpack.c.b16 %v1915, %v1914
        %v1925 = vpack.c.b16 %v1917, %v1916
        %1934 = vmatprep.subr.bf16.mxu0 0
        %1935 = vmatpush1.bf16.msra.mxu0 %v1918
        %1936 = vmatprep.subr.bf16.mxu0 0
        %1937 = vmatpush1.bf16.msra.mxu0 %v1919
        %1938 = vmatprep.subr.bf16.mxu0 0
        %1939 = vmatpush1.bf16.msra.mxu0 %v1920
        %1940 = vmatprep.subr.bf16.mxu0 0
        %1941 = vmatpush1.bf16.msra.mxu0 %v1921
        %1942 = vmatprep.subr.bf16.mxu0 0
        %1943 = vmatpush1.bf16.msra.mxu0 %v1922
        %1944 = vmatprep.subr.bf16.mxu0 0
        %1945 = vmatpush1.bf16.msra.mxu0 %v1923
        %1946 = vmatprep.subr.bf16.mxu0 0
        %1947 = vmatpush1.bf16.msra.mxu0 %v1924
        %1948 = vmatprep.subr.bf16.mxu0 0
        %1949 = vmatpush1.bf16.msra.mxu0 %v1925
        %1950 = vmatprep.subr.bf16.mxu0 0
        %1951 = vmatpush1.bf16.msra.mxu0 0
        %1952 = vmatprep.subr.bf16.mxu0 0
        %1953 = vmatpush1.bf16.msra.mxu0 0
        %1954 = vmatprep.subr.bf16.mxu0 0
        %1955 = vmatpush1.bf16.msra.mxu0 0
        %1956 = vmatprep.subr.bf16.mxu0 0
        %1957 = vmatpush1.bf16.msra.mxu0 0
        %1958 = vmatprep.subr.bf16.mxu0 0
        %1959 = vmatpush1.bf16.msra.mxu0 0
        %1960 = vmatprep.subr.bf16.mxu0 0
        %1961 = vmatpush1.bf16.msra.mxu0 0
        %1962 = vmatprep.subr.bf16.mxu0 0
        %1963 = vmatpush1.bf16.msra.mxu0 0
        %1964 = vmatprep.subr.bf16.mxu0 0
        %1965 = vmatpush1.bf16.msra.mxu0 0
        %1966 = vmatprep.mubr.bf16.mxu0 0
        %1967 = vmatmul.mubr.bf16.gmra.mrb[0].mxu0 %v1831
        %v1968 = vpop.f32.mrb[0].mxu0
        %v1969 = vadd.f32 %v1884, %v1968
        %v1970 = vpop.f32.mrb[0].mxu0
        %v1971 = vpop.f32.mrb[0].mxu0
        %v1972 = vadd.f32 %v1884, %v1971
        %v1973 = vpop.f32.mrb[0].mxu0
        %1974 = vmatprep.mubr.bf16.mxu0 0
        %1975 = vmatmul.mubr.bf16.gmra.mrb[0].mxu0 %v1832
        %v1976 = vpop.f32.mrb[0].mxu0
        %v1977 = vadd.f32 %v1884, %v1976
        %v1978 = vpop.f32.mrb[0].mxu0
        %v1979 = vpop.f32.mrb[0].mxu0
        %v1980 = vadd.f32 %v1884, %v1979
        %v1981 = vpop.f32.mrb[0].mxu0
        %1982 = vmatprep.mubr.bf16.mxu0 0
        %1983 = vmatmul.mubr.bf16.gmra.mrb[0].mxu0 %v1833
        %v1984 = vpop.f32.mrb[0].mxu0
        %v1985 = vadd.f32 %v1884, %v1984
        %v1986 = vpop.f32.mrb[0].mxu0
        %v1987 = vpop.f32.mrb[0].mxu0
        %v1988 = vadd.f32 %v1884, %v1987
        %v1989 = vpop.f32.mrb[0].mxu0
        %1990 = vmatprep.mubr.bf16.mxu0 0
        %1991 = vmatmul.mubr.bf16.gmra.mrb[0].mxu0 %v1834
        %v1992 = vpop.f32.mrb[0].mxu0
        %v1993 = vadd.f32 %v1884, %v1992
        %v1994 = vpop.f32.mrb[0].mxu0
        %v1995 = vpop.f32.mrb[0].mxu0
        %v1996 = vadd.f32 %v1884, %v1995
        %v1997 = vpop.f32.mrb[0].mxu0
        %1998 = vmatprep.mubr.bf16.mxu0 0
        %1999 = vmatmul.mubr.bf16.gmra.mrb[0].mxu0 %v1835
        %v2000 = vpop.f32.mrb[0].mxu0
        %v2001 = vadd.f32 %v1884, %v2000
        %v2002 = vpop.f32.mrb[0].mxu0
        %v2003 = vpop.f32.mrb[0].mxu0
        %v2004 = vadd.f32 %v1884, %v2003
        %v2005 = vpop.f32.mrb[0].mxu0
        %2006 = vmatprep.mubr.bf16.mxu0 0
        %2007 = vmatmul.mubr.bf16.gmra.mrb[0].mxu0 %v1836
        %v2008 = vpop.f32.mrb[0].mxu0
        %v2009 = vadd.f32 %v1884, %v2008
        %v2010 = vpop.f32.mrb[0].mxu0
        %v2011 = vpop.f32.mrb[0].mxu0
        %v2012 = vadd.f32 %v1884, %v2011
        %v2013 = vpop.f32.mrb[0].mxu0
        %2014 = vmatprep.mubr.bf16.mxu0 0
        %2015 = vmatmul.mubr.bf16.gmra.mrb[0].mxu0 %v1837
        %v2016 = vpop.f32.mrb[0].mxu0
        %v2017 = vadd.f32 %v1884, %v2016
        %v2018 = vpop.f32.mrb[0].mxu0
        %v2019 = vpop.f32.mrb[0].mxu0
        %v2020 = vadd.f32 %v1884, %v2019
        %v2021 = vpop.f32.mrb[0].mxu0
        %2022 = vmatprep.mubr.bf16.mxu0 0
        %2023 = vmatmul.mubr.bf16.gmra.mrb[0].mxu0 %v1838
        %v2024 = vpop.f32.mrb[0].mxu0
        %v2025 = vadd.f32 %v1884, %v2024
        %v2026 = vpop.f32.mrb[0].mxu0
        %v2027 = vpop.f32.mrb[0].mxu0
        %v2028 = vadd.f32 %v1884, %v2027
        %v2029 = vpop.f32.mrb[0].mxu0
        %2030 = vmatprep.mubr.bf16.mxu0 0
        %2031 = vmatmul.mubr.bf16.gmra.mrb[0].mxu0 %v1839
        %v2032 = vpop.f32.mrb[0].mxu0
        %v2033 = vadd.f32 %v1884, %v2032
        %v2034 = vpop.f32.mrb[0].mxu0
        %v2035 = vpop.f32.mrb[0].mxu0
        %v2036 = vadd.f32 %v1884, %v2035
        %v2037 = vpop.f32.mrb[0].mxu0
        %2038 = vmatprep.mubr.bf16.mxu0 0
        %2039 = vmatmul.mubr.bf16.gmra.mrb[0].mxu0 %v1840
        %v2040 = vpop.f32.mrb[0].mxu0
        %v2041 = vadd.f32 %v1884, %v2040
        %v2042 = vpop.f32.mrb[0].mxu0
        %v2043 = vpop.f32.mrb[0].mxu0
        %v2044 = vadd.f32 %v1884, %v2043
        %v2045 = vpop.f32.mrb[0].mxu0
        %2046 = vmatprep.mubr.bf16.mxu0 0
        %2047 = vmatmul.mubr.bf16.gmra.mrb[0].mxu0 %v1841
        %v2048 = vpop.f32.mrb[0].mxu0
        %v2049 = vadd.f32 %v1884, %v2048
        %v2050 = vpop.f32.mrb[0].mxu0
        %v2051 = vpop.f32.mrb[0].mxu0
        %v2052 = vadd.f32 %v1884, %v2051
        %v2053 = vpop.f32.mrb[0].mxu0
        %2054 = vmatprep.mubr.bf16.mxu0 0
        %2055 = vmatmul.mubr.bf16.gmra.mrb[0].mxu0 %v1842
        %v2056 = vpop.f32.mrb[0].mxu0
        %v2057 = vadd.f32 %v1884, %v2056
        %v2058 = vpop.f32.mrb[0].mxu0
        %v2059 = vpop.f32.mrb[0].mxu0
        %v2060 = vadd.f32 %v1884, %v2059
        %v2061 = vpop.f32.mrb[0].mxu0
        %2062 = vmatprep.mubr.bf16.mxu0 0
        %2063 = vmatmul.mubr.bf16.gmra.mrb[0].mxu0 %v1843
        %v2064 = vpop.f32.mrb[0].mxu0
        %v2065 = vadd.f32 %v1884, %v2064
        %v2066 = vpop.f32.mrb[0].mxu0
        %v2067 = vpop.f32.mrb[0].mxu0
        %v2068 = vadd.f32 %v1884, %v2067
        %v2069 = vpop.f32.mrb[0].mxu0
        %2070 = vmatprep.mubr.bf16.mxu0 0
        %2071 = vmatmul.mubr.bf16.gmra.mrb[0].mxu0 %v1844
        %v2072 = vpop.f32.mrb[0].mxu0
        %v2073 = vadd.f32 %v1884, %v2072
        %v2074 = vpop.f32.mrb[0].mxu0
        %v2075 = vpop.f32.mrb[0].mxu0
        %v2076 = vadd.f32 %v1884, %v2075
        %v2077 = vpop.f32.mrb[0].mxu0
        %2078 = vmatprep.mubr.bf16.mxu0 0
        %2079 = vmatmul.mubr.bf16.gmra.mrb[0].mxu0 %v1845
        %v2080 = vpop.f32.mrb[0].mxu0
        %v2081 = vadd.f32 %v1884, %v2080
        %v2082 = vpop.f32.mrb[0].mxu0
        %v2083 = vpop.f32.mrb[0].mxu0
        %v2084 = vadd.f32 %v1884, %v2083
        %v2085 = vpop.f32.mrb[0].mxu0
        %2086 = vmatprep.mubr.bf16.mxu0 0
        %2087 = vmatmul.mubr.bf16.gmra.mrb[0].mxu0 %v1846
        %v2088 = vpop.f32.mrb[0].mxu0
        %v2089 = vadd.f32 %v1884, %v2088
        %v2090 = vpop.f32.mrb[0].mxu0
        %v2091 = vpop.f32.mrb[0].mxu0
        %v2092 = vadd.f32 %v1884, %v2091
        %v2093 = vpop.f32.mrb[0].mxu0
        %2094 = vmatprep.mubr.bf16.mxu0 0
        %2095 = vmatmul.mubr.bf16.gmra.mrb[0].mxu0 %v1847
        %v2096 = vpop.f32.mrb[0].mxu0
        %v2097 = vadd.f32 %v1884, %v2096
        %v2098 = vpop.f32.mrb[0].mxu0
        %v2099 = vpop.f32.mrb[0].mxu0
        %v2100 = vadd.f32 %v1884, %v2099
        %v2101 = vpop.f32.mrb[0].mxu0
        %2102 = vmatprep.mubr.bf16.mxu0 0
        %2103 = vmatmul.mubr.bf16.gmra.mrb[0].mxu0 %v1848
        %v2104 = vpop.f32.mrb[0].mxu0
        %v2105 = vadd.f32 %v1884, %v2104
        %v2106 = vpop.f32.mrb[0].mxu0
        %v2107 = vpop.f32.mrb[0].mxu0
        %v2108 = vadd.f32 %v1884, %v2107
        %v2109 = vpop.f32.mrb[0].mxu0
        %2110 = vmatprep.mubr.bf16.mxu0 0
        %2111 = vmatmul.mubr.bf16.gmra.mrb[0].mxu0 %v1849
        %v2112 = vpop.f32.mrb[0].mxu0
        %v2113 = vadd.f32 %v1884, %v2112
        %v2114 = vpop.f32.mrb[0].mxu0
        %v2115 = vpop.f32.mrb[0].mxu0
        %v2116 = vadd.f32 %v1884, %v2115
        %v2117 = vpop.f32.mrb[0].mxu0
        %2118 = vmatprep.mubr.bf16.mxu0 0
        %2119 = vmatmul.mubr.bf16.gmra.mrb[0].mxu0 %v1850
        %v2120 = vpop.f32.mrb[0].mxu0
        %v2121 = vadd.f32 %v1884, %v2120
        %v2122 = vpop.f32.mrb[0].mxu0
        %v2123 = vpop.f32.mrb[0].mxu0
        %v2124 = vadd.f32 %v1884, %v2123
        %v2125 = vpop.f32.mrb[0].mxu0
        %2126 = vmatprep.mubr.bf16.mxu0 0
        %2127 = vmatmul.mubr.bf16.gmra.mrb[0].mxu0 %v1851
        %v2128 = vpop.f32.mrb[0].mxu0
        %v2129 = vadd.f32 %v1884, %v2128
        %v2130 = vpop.f32.mrb[0].mxu0
        %v2131 = vpop.f32.mrb[0].mxu0
        %v2132 = vadd.f32 %v1884, %v2131
        %v2133 = vpop.f32.mrb[0].mxu0
        %2134 = vmatprep.mubr.bf16.mxu0 0
        %2135 = vmatmul.mubr.bf16.gmra.mrb[0].mxu0 %v1852
        %v2136 = vpop.f32.mrb[0].mxu0
        %v2137 = vadd.f32 %v1884, %v2136
        %v2138 = vpop.f32.mrb[0].mxu0
        %v2139 = vpop.f32.mrb[0].mxu0
        %v2140 = vadd.f32 %v1884, %v2139
        %v2141 = vpop.f32.mrb[0].mxu0
        %2142 = vmatprep.mubr.bf16.mxu0 0
        %2143 = vmatmul.mubr.bf16.gmra.mrb[0].mxu0 %v1853
        %v2144 = vpop.f32.mrb[0].mxu0
        %v2145 = vadd.f32 %v1884, %v2144
        %v2146 = vpop.f32.mrb[0].mxu0
        %v2147 = vpop.f32.mrb[0].mxu0
        %v2148 = vadd.f32 %v1884, %v2147
        %v2149 = vpop.f32.mrb[0].mxu0
        %2150 = vmatprep.mubr.bf16.mxu0 0
        %2151 = vmatmul.mubr.bf16.gmra.mrb[0].mxu0 %v1854
        %v2152 = vpop.f32.mrb[0].mxu0
        %v2153 = vadd.f32 %v1884, %v2152
        %v2154 = vpop.f32.mrb[0].mxu0
        %v2155 = vpop.f32.mrb[0].mxu0
        %v2156 = vadd.f32 %v1884, %v2155
        %v2157 = vpop.f32.mrb[0].mxu0
        %2158 = vmatprep.mubr.bf16.mxu0 0
        %2159 = vmatmul.mubr.bf16.gmra.mrb[0].mxu0 %v1855
        %v2160 = vpop.f32.mrb[0].mxu0
        %v2161 = vadd.f32 %v1884, %v2160
        %v2162 = vpop.f32.mrb[0].mxu0
        %v2163 = vpop.f32.mrb[0].mxu0
        %v2164 = vadd.f32 %v1884, %v2163
        %v2165 = vpop.f32.mrb[0].mxu0
        %2166 = vmatprep.mubr.bf16.mxu0 0
        %2167 = vmatmul.mubr.bf16.gmra.mrb[0].mxu0 %v1856
        %v2168 = vpop.f32.mrb[0].mxu0
        %v2169 = vadd.f32 %v1884, %v2168
        %v2170 = vpop.f32.mrb[0].mxu0
        %v2171 = vpop.f32.mrb[0].mxu0
        %v2172 = vadd.f32 %v1884, %v2171
        %v2173 = vpop.f32.mrb[0].mxu0
        %2174 = vmatprep.mubr.bf16.mxu0 0
        %2175 = vmatmul.mubr.bf16.gmra.mrb[0].mxu0 %v1857
        %v2176 = vpop.f32.mrb[0].mxu0
        %v2177 = vadd.f32 %v1884, %v2176
        %v2178 = vpop.f32.mrb[0].mxu0
        %v2179 = vpop.f32.mrb[0].mxu0
        %v2180 = vadd.f32 %v1884, %v2179
        %v2181 = vpop.f32.mrb[0].mxu0
        %2182 = vmatprep.mubr.bf16.mxu0 0
        %2183 = vmatmul.mubr.bf16.gmra.mrb[0].mxu0 %v1858
        %v2184 = vpop.f32.mrb[0].mxu0
        %v2185 = vadd.f32 %v1884, %v2184
        %v2186 = vpop.f32.mrb[0].mxu0
        %v2187 = vpop.f32.mrb[0].mxu0
        %v2188 = vadd.f32 %v1884, %v2187
        %v2189 = vpop.f32.mrb[0].mxu0
        %2190 = vmatprep.mubr.bf16.mxu0 0
        %2191 = vmatmul.mubr.bf16.gmra.mrb[0].mxu0 %v1859
        %v2192 = vpop.f32.mrb[0].mxu0
        %v2193 = vadd.f32 %v1884, %v2192
        %v2194 = vpop.f32.mrb[0].mxu0
        %v2195 = vpop.f32.mrb[0].mxu0
        %v2196 = vadd.f32 %v1884, %v2195
        %v2197 = vpop.f32.mrb[0].mxu0
        %2198 = vmatprep.mubr.bf16.mxu0 0
        %2199 = vmatmul.mubr.bf16.gmra.mrb[0].mxu0 %v1860
        %v2200 = vpop.f32.mrb[0].mxu0
        %v2201 = vadd.f32 %v1884, %v2200
        %v2202 = vpop.f32.mrb[0].mxu0
        %v2203 = vpop.f32.mrb[0].mxu0
        %v2204 = vadd.f32 %v1884, %v2203
        %v2205 = vpop.f32.mrb[0].mxu0
        %2206 = vmatprep.mubr.bf16.mxu0 0
        %2207 = vmatmul.mubr.bf16.gmra.mrb[0].mxu0 %v1861
        %v2208 = vpop.f32.mrb[0].mxu0
        %v2209 = vadd.f32 %v1884, %v2208
        %v2210 = vpop.f32.mrb[0].mxu0
        %v2211 = vpop.f32.mrb[0].mxu0
        %v2212 = vadd.f32 %v1884, %v2211
        %v2213 = vpop.f32.mrb[0].mxu0
        %2214 = vmatprep.mubr.bf16.mxu0 0
        %2215 = vmatmul.mubr.bf16.gmra.mrb[0].mxu0 %v1862
        %v2216 = vpop.f32.mrb[0].mxu0
        %v2217 = vadd.f32 %v1884, %v2216
        %v2218 = vpop.f32.mrb[0].mxu0
        %v2219 = vpop.f32.mrb[0].mxu0
        %v2220 = vadd.f32 %v1884, %v2219
        %v2221 = vpop.f32.mrb[0].mxu0
        %2222 = vdwg.mxu0
        %2223 = vst [vmem:[%s313] sm:$0xff] %v1969
        %2224 = vst [vmem:[%s313 + $0x8] sm:$0xff] %v1972
        %2225 = vst [vmem:[%s313 + $0x10] sm:$0xff] %v1977
        %2226 = vst [vmem:[%s313 + $0x18] sm:$0xff] %v1980
        %2227 = vst [vmem:[%s313 + $0x20] sm:$0xff] %v1985
        %2228 = vst [vmem:[%s313 + $0x28] sm:$0xff] %v1988
        %2229 = vst [vmem:[%s313 + $0x30] sm:$0xff] %v1993
        %2230 = vst [vmem:[%s313 + $0x38] sm:$0xff] %v1996
        %2231 = vst [vmem:[%s313 + $0x40] sm:$0xff] %v2001
        %2232 = vst [vmem:[%s313 + $0x48] sm:$0xff] %v2004
        %2233 = vst [vmem:[%s313 + $0x50] sm:$0xff] %v2009
        %2234 = vst [vmem:[%s313 + $0x58] sm:$0xff] %v2012
        %2235 = vst [vmem:[%s313 + $0x60] sm:$0xff] %v2017
        %2236 = vst [vmem:[%s313 + $0x68] sm:$0xff] %v2020
        %2237 = vst [vmem:[%s313 + $0x70] sm:$0xff] %v2025
        %2238 = vst [vmem:[%s313 + $0x78] sm:$0xff] %v2028
        %2239 = vst [vmem:[%s313 + $0x80] sm:$0xff] %v2033
        %2240 = vst [vmem:[%s313 + $0x88] sm:$0xff] %v2036
        %2241 = vst [vmem:[%s313 + $0x90] sm:$0xff] %v2041
        %2242 = vst [vmem:[%s313 + $0x98] sm:$0xff] %v2044
        %2243 = vst [vmem:[%s313 + $0xa0] sm:$0xff] %v2049
        %2244 = vst [vmem:[%s313 + $0xa8] sm:$0xff] %v2052
        %2245 = vst [vmem:[%s313 + $0xb0] sm:$0xff] %v2057
        %2246 = vst [vmem:[%s313 + $0xb8] sm:$0xff] %v2060
        %2247 = vst [vmem:[%s313 + $0xc0] sm:$0xff] %v2065
        %2248 = vst [vmem:[%s313 + $0xc8] sm:$0xff] %v2068
        %2249 = vst [vmem:[%s313 + $0xd0] sm:$0xff] %v2073
        %2250 = vst [vmem:[%s313 + $0xd8] sm:$0xff] %v2076
        %2251 = vst [vmem:[%s313 + $0xe0] sm:$0xff] %v2081
        %2252 = vst [vmem:[%s313 + $0xe8] sm:$0xff] %v2084
        %2253 = vst [vmem:[%s313 + $0xf0] sm:$0xff] %v2089
        %2254 = vst [vmem:[%s313 + $0xf8] sm:$0xff] %v2092
        %2255 = vst [vmem:[%s313 + $0x100] sm:$0xff] %v2097
        %2256 = vst [vmem:[%s313 + $0x108] sm:$0xff] %v2100
        %2257 = vst [vmem:[%s313 + $0x110] sm:$0xff] %v2105
        %2258 = vst [vmem:[%s313 + $0x118] sm:$0xff] %v2108
        %2259 = vst [vmem:[%s313 + $0x120] sm:$0xff] %v2113
        %2260 = vst [vmem:[%s313 + $0x128] sm:$0xff] %v2116
        %2261 = vst [vmem:[%s313 + $0x130] sm:$0xff] %v2121
        %2262 = vst [vmem:[%s313 + $0x138] sm:$0xff] %v2124
        %2263 = vst [vmem:[%s313 + $0x140] sm:$0xff] %v2129
        %2264 = vst [vmem:[%s313 + $0x148] sm:$0xff] %v2132
        %2265 = vst [vmem:[%s313 + $0x150] sm:$0xff] %v2137
        %2266 = vst [vmem:[%s313 + $0x158] sm:$0xff] %v2140
        %2267 = vst [vmem:[%s313 + $0x160] sm:$0xff] %v2145
        %2268 = vst [vmem:[%s313 + $0x168] sm:$0xff] %v2148
        %2269 = vst [vmem:[%s313 + $0x170] sm:$0xff] %v2153
        %2270 = vst [vmem:[%s313 + $0x178] sm:$0xff] %v2156
        %2271 = vst [vmem:[%s313 + $0x180] sm:$0xff] %v2161
        %2272 = vst [vmem:[%s313 + $0x188] sm:$0xff] %v2164
        %2273 = vst [vmem:[%s313 + $0x190] sm:$0xff] %v2169
        %2274 = vst [vmem:[%s313 + $0x198] sm:$0xff] %v2172
        %2275 = vst [vmem:[%s313 + $0x1a0] sm:$0xff] %v2177
        %2276 = vst [vmem:[%s313 + $0x1a8] sm:$0xff] %v2180
        %2277 = vst [vmem:[%s313 + $0x1b0] sm:$0xff] %v2185
        %2278 = vst [vmem:[%s313 + $0x1b8] sm:$0xff] %v2188
        %2279 = vst [vmem:[%s313 + $0x1c0] sm:$0xff] %v2193
        %2280 = vst [vmem:[%s313 + $0x1c8] sm:$0xff] %v2196
        %2281 = vst [vmem:[%s313 + $0x1d0] sm:$0xff] %v2201
        %2282 = vst [vmem:[%s313 + $0x1d8] sm:$0xff] %v2204
        %2283 = vst [vmem:[%s313 + $0x1e0] sm:$0xff] %v2209
        %2284 = vst [vmem:[%s313 + $0x1e8] sm:$0xff] %v2212
        %2285 = vst [vmem:[%s313 + $0x1f0] sm:$0xff] %v2217
        %2286 = vst [vmem:[%s313 + $0x1f8] sm:$0xff] %v2220
        %s2287 = sand.u32 %s164, 1
        %s2288 = scalar_lea.sflag [#allocation4], %s2287
        %s2289 = sand.u32 %s164, 1
        %s2290 = smul.addr %s2289, 512
        %s2291 = scalar_lea.vmem [#allocation10], %s2290
        // Predicated region
        $region61: #{tpu_custom_call.1} parent=43 // pred_check
          %p2292 = pneg %p174
        $region62: #{tpu_custom_call.1} parent=43 // pred_check_branch
          %2294 = sbr.rel (%p2292) target = $region64
        $region63: #{tpu_custom_call.1} parent=43 // pred_region
          %s2295 = smul.u32 64, %s25
          %s2297 = ssub.s32 8192, 8192
          %2298 = vsyncadd %s2288, %s2297
          %s2299 = smul.addr %s2295, 128
          %s2300 = scalar_lea.hbm %s6, %s2299
          %s2301 = sshll.u32 %s2291, 4
          %s2302 = int_to_ptr.vmem [resolvable:$true] %s2301
          %2307 = dma.vmem_to_hbm [thread:$0]  %s2302, 8192, %s2300, %s2288, 128, 128, 8
        $region64: #{tpu_custom_call.1} parent=43 // pred_fallthru
          _
      $region44: #{tpu_custom_call.1} parent=5 // pred_fallthru
        _
      %p2308 = scmp.le.s32.totalorder 2, %s20
      // Predicated region
      $region65: #{tpu_custom_call.1} parent=5 // pred_check
        %p2309 = pneg %p2308
      $region66: #{tpu_custom_call.1} parent=5 // pred_check_branch
        %2311 = sbr.rel (%p2309) target = $region68
      $region67: #{tpu_custom_call.1} parent=5 // pred_region
        %s2312 = ssub.s32 %s20, 2
        // Predicated region
        $region69: #{tpu_custom_call.1} parent=67 // pred_check
          %p2313 = pneg %p180
        $region70: #{tpu_custom_call.1} parent=67 // pred_check_branch
          %2315 = sbr.rel (%p2313) target = $region72
        $region71: #{tpu_custom_call.1} parent=67 // pred_region
          %s2316 = sand.u32 %s165, 1
          %s2317 = scalar_lea.sflag [#allocation4], %s2316
          %s2318 = sand.u32 %s165, 1
          %s2319 = smul.addr %s2318, 512
          %s2320 = scalar_lea.vmem [#allocation10], %s2319
          %2321 = dma.done %s2317, 8192
        $region72: #{tpu_custom_call.1} parent=67 // pred_fallthru
          _
      $region68: #{tpu_custom_call.1} parent=5 // pred_fallthru
        _
    $region6: #{tpu_custom_call.1} parent=1 // loop_footer
      %s24 = sadd.s32 1, %s20
    $region7: #{tpu_custom_call.1} parent=1 // loop_footer_branch
      %19 = sbr.rel target = $region3
    $region8: #{tpu_custom_call.1} parent=1 // loop_exit
      _
    %2322 = vsyncpa [#allocation3], 1
    %s2323 = scalar_lea.sflag [#allocation3], 1
    %2324 = vsyncpa %s2323, 1
    %2325 = vsyncpa [#allocation6], 1
    %2326 = vsyncpa [#allocation9], 1
    %2327 = vsyncpa [#allocation4], 1
    %s2328 = scalar_lea.sflag [#allocation4], 1
    %2329 = vsyncpa %s2328, 1

// kernel: tpu_custom_call.1
$region0: #{tpu_custom_call.1}
  #allocation0 [shape = 'u32[]', space=smem, size = 0x4, offset = 0x4, fixed_abs, tag = 'smem constant byte address 0x4 - core index']
  #allocation1 [shape = 'u32[144,128]{1,0:T(1,128)}', space=vmem, size = 0x12000, scoped, tag = 'internal scratch']
  %s0 = inlined_call_operand.hbm [shape: bf16[1024,128], index: 0, kind: input, shape index: {}]
  %s1 = inlined_call_operand.hbm [shape: bf16[128,128], index: 1, kind: input, shape index: {}]
  %s2 = inlined_call_operand.hbm [shape: bf16[128,128], index: 2, kind: input, shape index: {}]
  %s3 = inlined_call_operand.vmem [shape: f32[1,128], index: 3, kind: input, shape index: {}]
  %s4 = inlined_call_operand.hbm [shape: bf16[128,128], index: 4, kind: input, shape index: {}]
  %s5 = inlined_call_operand.vmem [shape: f32[1,128], index: 5, kind: input, shape index: {}]
  %s6 = inlined_call_operand.hbm [shape: f32[1024,128], index: 6, kind: output, shape index: {}]
  %s7 = sld [smem:[#allocation0]]
  $region73: #{tpu_custom_call.1} parent=0
    _
  %s9 = ssub.s32 1, %s7
  %s10 = scalar_select 0, %s9, %s7
  $region1: #{tpu_custom_call.1} parent=0
    #allocation2 [shape = 'u8[262144]{0}', space=vmem, size = 0x40000, scoped, tag = 'input window, operand 0']
    #allocation3 [shape = 's32[2]{0}', space=sflag, size = 0x8, scoped, tag = 'scoped memory for tpu_custom_call.1']
    #allocation4 [shape = 's32[2]{0}', space=sflag, size = 0x8, scoped, tag = 'scoped memory for tpu_custom_call.1']
    #allocation5 [shape = 'u8[32768]{0}', space=vmem, size = 0x8000, scoped, tag = 'input window, operand 1, single buffered']
    #allocation6 [shape = 's32[1]{0}', space=sflag, size = 0x4, scoped, tag = 'scoped memory for tpu_custom_call.1']
    #allocation7 [shape = 'u8[32768]{0}', space=vmem, size = 0x8000, scoped, tag = 'input window, operand 2, single buffered']
    #allocation8 [shape = 'u8[32768]{0}', space=vmem, size = 0x8000, scoped, tag = 'input window, operand 4, single buffered']
    #allocation9 [shape = 's32[1]{0}', space=sflag, size = 0x4, scoped, tag = 'scoped memory for tpu_custom_call.1']
    #allocation10 [shape = 'u8[524288]{0}', space=vmem, size = 0x80000, scoped, tag = 'output window, operand 0']
    %11 = vsyncpa [#allocation3], 0
    %s12 = scalar_lea.sflag [#allocation3], 1
    %13 = vsyncpa %s12, 0
    %14 = vsyncpa [#allocation6], 0
    %15 = vsyncpa [#allocation9], 0
    %16 = vsyncpa [#allocation4], 0
    %s17 = scalar_lea.sflag [#allocation4], 1
    %18 = vsyncpa %s17, 0
    loop: start=0, step=1, limit=4
    $region2: #{tpu_custom_call.1} parent=1 // loop_pre_header
      _
    $region3: #{tpu_custom_call.1} parent=1 // loop_header
      %s20 = sphi 0, %s24
      %p21 = scmp.ge.s32.totalorder %s20, 4
      %s30 = sphi 0, %s32
      %s33 = sphi 0, %s30
      %s34 = sphi 0, %s33
      %s50 = sphi 0, %s34
      %s54 = sphi 0, %s54
      %s56 = sphi 0, %s54
      %s57 = sphi 0, %s56
      %s71 = sphi 0, %s57
      %s75 = sphi 0, %s75
      %s77 = sphi 0, %s75
      %s78 = sphi 0, %s77
      %s92 = sphi 0, %s78
      %s96 = sphi 0, %s96
      %s98 = sphi 0, %s96
      %s99 = sphi 0, %s98
      %s113 = sphi 0, %s99
      %s117 = sphi 0, %s117
      %s119 = sphi 0, %s117
      %s120 = sphi 0, %s119
      %s134 = sphi 0, %s120
      %s138 = sphi 0, %s138
      %s140 = sphi 0, %s138
      %s141 = sphi 0, %s140
      %s155 = sphi 0, %s141
      %s161 = sphi 0, %s163
      %s164 = sphi 0, %s161
      %s165 = sphi 0, %s164
      %s181 = sphi 0, %s165
    $region4: #{tpu_custom_call.1} parent=1 // loop_header_branch
      %23 = sbr.rel (%p21) target = $region8
    $region5: #{tpu_custom_call.1} parent=1 // loop_body
      %s25 = ssub.s32 %s20, 1
      %s26 = ssub.s32 %s20, 2
      %s27 = sadd.s32 %s20, 1
      %s28 = ssub.s32 %s20, %s27
      %p29 = scmp.eq.s32.totalorder %s28, 0
      %s31 = sadd.s32 %s30, 1
      %s32 = scalar_select %p29, %s30, %s31
      %p35 = pneg %p29
      %p36 = scmp.eq.s32.totalorder %s20, 1
      %p37 = por %p35, %p36
      %p38 = scmp.ne.s32.totalorder %s30, %s33
      %p39 = scmp.eq.s32.totalorder %s20, 0
      %p40 = por %p38, %p39
      %p41 = scmp.ne.s32.totalorder %s30, %s33
      %p42 = scmp.eq.s32.totalorder %s25, 1
      %p43 = por %p41, %p42
      %p44 = scmp.ne.s32.totalorder %s33, %s34
      %p45 = scmp.eq.s32.totalorder %s25, 0
      %p46 = por %p44, %p45
      %p47 = scmp.ne.s32.totalorder %s33, %s34
      %p48 = scmp.eq.s32.totalorder %s26, 1
      %p49 = por %p47, %p48
      %p51 = scmp.ne.s32.totalorder %s34, %s50
      %p52 = scmp.eq.s32.totalorder %s26, 0
      %p53 = por %p51, %p52
      %s55 = sadd.s32 %s54, 1
      %p58 = scmp.eq.s32.totalorder %s20, 1
      %p59 = scmp.ne.s32.totalorder %s54, %s56
      %p60 = scmp.eq.s32.totalorder %s20, 0
      %p61 = por %p59, %p60
      %p62 = scmp.ne.s32.totalorder %s54, %s56
      %p63 = scmp.eq.s32.totalorder %s25, 1
      %p64 = por %p62, %p63
      %p65 = scmp.ne.s32.totalorder %s56, %s57
      %p66 = scmp.eq.s32.totalorder %s25, 0
      %p67 = por %p65, %p66
      %p68 = scmp.ne.s32.totalorder %s56, %s57
      %p69 = scmp.eq.s32.totalorder %s26, 1
      %p70 = por %p68, %p69
      %p72 = scmp.ne.s32.totalorder %s57, %s71
      %p73 = scmp.eq.s32.totalorder %s26, 0
      %p74 = por %p72, %p73
      %s76 = sadd.s32 %s75, 1
      %p79 = scmp.eq.s32.totalorder %s20, 1
      %p80 = scmp.ne.s32.totalorder %s75, %s77
      %p81 = scmp.eq.s32.totalorder %s20, 0
      %p82 = por %p80, %p81
      %p83 = scmp.ne.s32.totalorder %s75, %s77
      %p84 = scmp.eq.s32.totalorder %s25, 1
      %p85 = por %p83, %p84
      %p86 = scmp.ne.s32.totalorder %s77, %s78
      %p87 = scmp.eq.s32.totalorder %s25, 0
      %p88 = por %p86, %p87
      %p89 = scmp.ne.s32.totalorder %s77, %s78
      %p90 = scmp.eq.s32.totalorder %s26, 1
      %p91 = por %p89, %p90
      %p93 = scmp.ne.s32.totalorder %s78, %s92
      %p94 = scmp.eq.s32.totalorder %s26, 0
      %p95 = por %p93, %p94
      %s97 = sadd.s32 %s96, 1
      %p100 = scmp.eq.s32.totalorder %s20, 1
      %p101 = scmp.ne.s32.totalorder %s96, %s98
      %p102 = scmp.eq.s32.totalorder %s20, 0
      %p103 = por %p101, %p102
      %p104 = scmp.ne.s32.totalorder %s96, %s98
      %p105 = scmp.eq.s32.totalorder %s25, 1
      %p106 = por %p104, %p105
      %p107 = scmp.ne.s32.totalorder %s98, %s99
      %p108 = scmp.eq.s32.totalorder %s25, 0
      %p109 = por %p107, %p108
      %p110 = scmp.ne.s32.totalorder %s98, %s99
      %p111 = scmp.eq.s32.totalorder %s26, 1
      %p112 = por %p110, %p111
      %p114 = scmp.ne.s32.totalorder %s99, %s113
      %p115 = scmp.eq.s32.totalorder %s26, 0
      %p116 = por %p114, %p115
      %s118 = sadd.s32 %s117, 1
      %p121 = scmp.eq.s32.totalorder %s20, 1
      %p122 = scmp.ne.s32.totalorder %s117, %s119
      %p123 = scmp.eq.s32.totalorder %s20, 0
      %p124 = por %p122, %p123
      %p125 = scmp.ne.s32.totalorder %s117, %s119
      %p126 = scmp.eq.s32.totalorder %s25, 1
      %p127 = por %p125, %p126
      %p128 = scmp.ne.s32.totalorder %s119, %s120
      %p129 = scmp.eq.s32.totalorder %s25, 0
      %p130 = por %p128, %p129
      %p131 = scmp.ne.s32.totalorder %s119, %s120
      %p132 = scmp.eq.s32.totalorder %s26, 1
      %p133 = por %p131, %p132
      %p135 = scmp.ne.s32.totalorder %s120, %s134
      %p136 = scmp.eq.s32.totalorder %s26, 0
      %p137 = por %p135, %p136
      %s139 = sadd.s32 %s138, 1
      %p142 = scmp.eq.s32.totalorder %s20, 1
      %p143 = scmp.ne.s32.totalorder %s138, %s140
      %p144 = scmp.eq.s32.totalorder %s20, 0
      %p145 = por %p143, %p144
      %p146 = scmp.ne.s32.totalorder %s138, %s140
      %p147 = scmp.eq.s32.totalorder %s25, 1
      %p148 = por %p146, %p147
      %p149 = scmp.ne.s32.totalorder %s140, %s141
      %p150 = scmp.eq.s32.totalorder %s25, 0
      %p151 = por %p149, %p150
      %p152 = scmp.ne.s32.totalorder %s140, %s141
      %p153 = scmp.eq.s32.totalorder %s26, 1
      %p154 = por %p152, %p153
      %p156 = scmp.ne.s32.totalorder %s141, %s155
      %p157 = scmp.eq.s32.totalorder %s26, 0
      %p158 = por %p156, %p157
      %s159 = ssub.s32 %s20, %s27
      %p160 = scmp.eq.s32.totalorder %s159, 0
      %s162 = sadd.s32 %s161, 1
      %s163 = scalar_select %p160, %s161, %s162
      %p166 = pneg %p160
      %p167 = scmp.eq.s32.totalorder %s20, 1
      %p168 = por %p166, %p167
      %p169 = scmp.ne.s32.totalorder %s161, %s164
      %p170 = scmp.eq.s32.totalorder %s20, 0
      %p171 = por %p169, %p170
      %p172 = scmp.ne.s32.totalorder %s161, %s164
      %p173 = scmp.eq.s32.totalorder %s25, 1
      %p174 = por %p172, %p173
      %p175 = scmp.ne.s32.totalorder %s164, %s165
      %p176 = scmp.eq.s32.totalorder %s25, 0
      %p177 = por %p175, %p176
      %p178 = scmp.ne.s32.totalorder %s164, %s165
      %p179 = scmp.eq.s32.totalorder %s26, 1
      %p180 = por %p178, %p179
      %p182 = scmp.ne.s32.totalorder %s165, %s181
      %p183 = scmp.eq.s32.totalorder %s26, 0
      %p184 = por %p182, %p183
      %p185 = scmp.le.s32.totalorder 1, %s20
      %p186 = scmp.lt.s32.totalorder %s20, 3
      %p187 = pnand %p185, %p186
      %p188 = pneg %p187
      // Predicated region
      $region9: #{tpu_custom_call.1} parent=5 // pred_check
        _
      $region10: #{tpu_custom_call.1} parent=5 // pred_check_branch
        %190 = sbr.rel (%p187) target = $region12
      $region11: #{tpu_custom_call.1} parent=5 // pred_region
        %s191 = ssub.s32 %s20, 1
        // Predicated region
        $region13: #{tpu_custom_call.1} parent=11 // pred_check
          %p192 = pneg %p67
        $region14: #{tpu_custom_call.1} parent=11 // pred_check_branch
          %194 = sbr.rel (%p192) target = $region16
        $region15: #{tpu_custom_call.1} parent=11 // pred_region
          %s196 = ssub.s32 1024, 1024
          %197 = vsyncadd [#allocation6], %s196
          %s198 = sshll.u32 [#allocation5], 4
          %s199 = int_to_ptr.vmem [resolvable:$true] %s198
          %204 = dma.hbm_to_vmem [thread:$0]  %s1, 1024, %s199, [#allocation6], 64, 64, 4
        $region16: #{tpu_custom_call.1} parent=11 // pred_fallthru
          _
        // Predicated region
        $region17: #{tpu_custom_call.1} parent=11 // pred_check
          %p205 = pneg %p88
        $region18: #{tpu_custom_call.1} parent=11 // pred_check_branch
          %207 = sbr.rel (%p205) target = $region20
        $region19: #{tpu_custom_call.1} parent=11 // pred_region
          %s209 = ssub.s32 1024, 1024
          %210 = vsyncadd [#allocation6], %s209
          %s211 = sshll.u32 [#allocation7], 4
          %s212 = int_to_ptr.vmem [resolvable:$true] %s211
          %217 = dma.hbm_to_vmem [thread:$0]  %s2, 1024, %s212, [#allocation6], 64, 64, 4
        $region20: #{tpu_custom_call.1} parent=11 // pred_fallthru
          _
        // Predicated region
        $region21: #{tpu_custom_call.1} parent=11 // pred_check
          %p218 = pneg %p109
        $region22: #{tpu_custom_call.1} parent=11 // pred_check_branch
          %220 = sbr.rel (%p218) target = $region24
        $region23: #{tpu_custom_call.1} parent=11 // pred_region
          _
        $region24: #{tpu_custom_call.1} parent=11 // pred_fallthru
          _
        // Predicated region
        $region25: #{tpu_custom_call.1} parent=11 // pred_check
          %p221 = pneg %p130
        $region26: #{tpu_custom_call.1} parent=11 // pred_check_branch
          %223 = sbr.rel (%p221) target = $region28
        $region27: #{tpu_custom_call.1} parent=11 // pred_region
          %s225 = ssub.s32 1024, 1024
          %226 = vsyncadd [#allocation9], %s225
          %s227 = sshll.u32 [#allocation8], 4
          %s228 = int_to_ptr.vmem [resolvable:$true] %s227
          %233 = dma.hbm_to_vmem [thread:$0]  %s4, 1024, %s228, [#allocation9], 64, 64, 4
        $region28: #{tpu_custom_call.1} parent=11 // pred_fallthru
          _
        // Predicated region
        $region29: #{tpu_custom_call.1} parent=11 // pred_check
          %p234 = pneg %p151
        $region30: #{tpu_custom_call.1} parent=11 // pred_check_branch
          %236 = sbr.rel (%p234) target = $region32
        $region31: #{tpu_custom_call.1} parent=11 // pred_region
          _
        $region32: #{tpu_custom_call.1} parent=11 // pred_fallthru
          _
      $region12: #{tpu_custom_call.1} parent=5 // pred_fallthru
        _
      %p237 = scmp.lt.s32.totalorder %s20, 2
      // Predicated region
      $region33: #{tpu_custom_call.1} parent=5 // pred_check
        %p238 = pneg %p237
      $region34: #{tpu_custom_call.1} parent=5 // pred_check_branch
        %240 = sbr.rel (%p238) target = $region36
      $region35: #{tpu_custom_call.1} parent=5 // pred_region
        // Predicated region
        $region37: #{tpu_custom_call.1} parent=35 // pred_check
          %p241 = pneg %p40
        $region38: #{tpu_custom_call.1} parent=35 // pred_check_branch
          %243 = sbr.rel (%p241) target = $region40
        $region39: #{tpu_custom_call.1} parent=35 // pred_region
          %s244 = sand.u32 %s30, 1
          %s245 = scalar_lea.sflag [#allocation3], %s244
          %s246 = sand.u32 %s30, 1
          %s247 = smul.addr %s246, 256
          %s248 = scalar_lea.vmem [#allocation2], %s247
          %s249 = smul.u32 64, %s20
          %s251 = ssub.s32 4096, 4096
          %252 = vsyncadd %s245, %s251
          %s253 = smul.addr %s249, 64
          %s254 = scalar_lea.hbm %s0, %s253
          %s255 = sshll.u32 %s248, 4
          %s256 = int_to_ptr.vmem [resolvable:$true] %s255
          %261 = dma.hbm_to_vmem [thread:$0]  %s254, 4096, %s256, %s245, 64, 64, 4
        $region40: #{tpu_custom_call.1} parent=35 // pred_fallthru
          _
      $region36: #{tpu_custom_call.1} parent=5 // pred_fallthru
        _
      %p262 = scmp.le.s32.totalorder 1, %s20
      %p263 = scmp.lt.s32.totalorder %s20, 3
      %p264 = pnand %p262, %p263
      %p265 = pneg %p264
      // Predicated region
      $region41: #{tpu_custom_call.1} parent=5 // pred_check
        _
      $region42: #{tpu_custom_call.1} parent=5 // pred_check_branch
        %267 = sbr.rel (%p264) target = $region44
      $region43: #{tpu_custom_call.1} parent=5 // pred_region
        %s268 = ssub.s32 %s20, 1
        %s269 = sand.u32 %s33, 1
        %s270 = scalar_lea.sflag [#allocation3], %s269
        %s271 = sand.u32 %s33, 1
        %s272 = smul.addr %s271, 256
        %s273 = scalar_lea.vmem [#allocation2], %s272
        // Predicated region
        $region45: #{tpu_custom_call.1} parent=43 // pred_check
          %p274 = pneg %p46
        $region46: #{tpu_custom_call.1} parent=43 // pred_check_branch
          %276 = sbr.rel (%p274) target = $region48
        $region47: #{tpu_custom_call.1} parent=43 // pred_region
          %277 = dma.done %s270, 4096
        $region48: #{tpu_custom_call.1} parent=43 // pred_fallthru
          _
        // Predicated region
        $region49: #{tpu_custom_call.1} parent=43 // pred_check
          %p278 = pneg %p67
        $region50: #{tpu_custom_call.1} parent=43 // pred_check_branch
          %280 = sbr.rel (%p278) target = $region52
        $region51: #{tpu_custom_call.1} parent=43 // pred_region
          %281 = dma.done [#allocation6], 1024
        $region52: #{tpu_custom_call.1} parent=43 // pred_fallthru
          _
        // Predicated region
        $region53: #{tpu_custom_call.1} parent=43 // pred_check
          %p282 = pneg %p88
        $region54: #{tpu_custom_call.1} parent=43 // pred_check_branch
          %284 = sbr.rel (%p282) target = $region56
        $region55: #{tpu_custom_call.1} parent=43 // pred_region
          %285 = dma.done [#allocation6], 1024
        $region56: #{tpu_custom_call.1} parent=43 // pred_fallthru
          _
        // Predicated region
        $region57: #{tpu_custom_call.1} parent=43 // pred_check
          %p286 = pneg %p130
        $region58: #{tpu_custom_call.1} parent=43 // pred_check_branch
          %288 = sbr.rel (%p286) target = $region60
        $region59: #{tpu_custom_call.1} parent=43 // pred_region
          %289 = dma.done [#allocation9], 1024
        $region60: #{tpu_custom_call.1} parent=43 // pred_fallthru
          _
        %s290 = sand.u32 %s33, 1
        %s291 = scalar_lea.sflag [#allocation3], %s290
        %s292 = sand.u32 %s33, 1
        %s293 = smul.addr %s292, 256
        %s294 = scalar_lea.vmem [#allocation2], %s293
        %p295 = pneg %p46
        %p296 = pneg %p43
        %p297 = pneg %p67
        %p298 = pneg %p64
        %p299 = pneg %p88
        %p300 = pneg %p85
        %p301 = pneg %p109
        %p302 = pneg %p106
        %p303 = pneg %p130
        %p304 = pneg %p127
        %p305 = pneg %p151
        %p306 = pneg %p148
        %p307 = pneg %p177
        %p308 = pneg %p174
        %s309 = sand.u32 %s164, 1
        %s310 = scalar_lea.sflag [#allocation4], %s309
        %s311 = sand.u32 %s164, 1
        %s312 = smul.addr %s311, 512
        %s313 = scalar_lea.vmem [#allocation10], %s312
        %s314 = smul.u32 64, %s25
        %s315 = smul.u32 64, %s25
        %v318 = vld [vmem:[%s273] sm:$0xf]
        %v319 = vld [vmem:[%s273 + $0x4] sm:$0xf]
        %v320 = vld [vmem:[%s273 + $0x8] sm:$0xf]
        %v321 = vld [vmem:[%s273 + $0xc] sm:$0xf]
        %v322 = vld [vmem:[%s273 + $0x10] sm:$0xf]
        %v323 = vld [vmem:[%s273 + $0x14] sm:$0xf]
        %v324 = vld [vmem:[%s273 + $0x18] sm:$0xf]
        %v325 = vld [vmem:[%s273 + $0x1c] sm:$0xf]
        %v326 = vld [vmem:[%s273 + $0x20] sm:$0xf]
        %v327 = vld [vmem:[%s273 + $0x24] sm:$0xf]
        %v328 = vld [vmem:[%s273 + $0x28] sm:$0xf]
        %v329 = vld [vmem:[%s273 + $0x2c] sm:$0xf]
        %v330 = vld [vmem:[%s273 + $0x30] sm:$0xf]
        %v331 = vld [vmem:[%s273 + $0x34] sm:$0xf]
        %v332 = vld [vmem:[%s273 + $0x38] sm:$0xf]
        %v333 = vld [vmem:[%s273 + $0x3c] sm:$0xf]
        %v334 = vld [vmem:[%s273 + $0x40] sm:$0xf]
        %v335 = vld [vmem:[%s273 + $0x44] sm:$0xf]
        %v336 = vld [vmem:[%s273 + $0x48] sm:$0xf]
        %v337 = vld [vmem:[%s273 + $0x4c] sm:$0xf]
        %v338 = vld [vmem:[%s273 + $0x50] sm:$0xf]
        %v339 = vld [vmem:[%s273 + $0x54] sm:$0xf]
        %v340 = vld [vmem:[%s273 + $0x58] sm:$0xf]
        %v341 = vld [vmem:[%s273 + $0x5c] sm:$0xf]
        %v342 = vld [vmem:[%s273 + $0x60] sm:$0xf]
        %v343 = vld [vmem:[%s273 + $0x64] sm:$0xf]
        %v344 = vld [vmem:[%s273 + $0x68] sm:$0xf]
        %v345 = vld [vmem:[%s273 + $0x6c] sm:$0xf]
        %v346 = vld [vmem:[%s273 + $0x70] sm:$0xf]
        %v347 = vld [vmem:[%s273 + $0x74] sm:$0xf]
        %v348 = vld [vmem:[%s273 + $0x78] sm:$0xf]
        %v349 = vld [vmem:[%s273 + $0x7c] sm:$0xf]
        %v350 = vld [vmem:[%s273 + $0x80] sm:$0xf]
        %v351 = vld [vmem:[%s273 + $0x84] sm:$0xf]
        %v352 = vld [vmem:[%s273 + $0x88] sm:$0xf]
        %v353 = vld [vmem:[%s273 + $0x8c] sm:$0xf]
        %v354 = vld [vmem:[%s273 + $0x90] sm:$0xf]
        %v355 = vld [vmem:[%s273 + $0x94] sm:$0xf]
        %v356 = vld [vmem:[%s273 + $0x98] sm:$0xf]
        %v357 = vld [vmem:[%s273 + $0x9c] sm:$0xf]
        %v358 = vld [vmem:[%s273 + $0xa0] sm:$0xf]
        %v359 = vld [vmem:[%s273 + $0xa4] sm:$0xf]
        %v360 = vld [vmem:[%s273 + $0xa8] sm:$0xf]
        %v361 = vld [vmem:[%s273 + $0xac] sm:$0xf]
        %v362 = vld [vmem:[%s273 + $0xb0] sm:$0xf]
        %v363 = vld [vmem:[%s273 + $0xb4] sm:$0xf]
        %v364 = vld [vmem:[%s273 + $0xb8] sm:$0xf]
        %v365 = vld [vmem:[%s273 + $0xbc] sm:$0xf]
        %v366 = vld [vmem:[%s273 + $0xc0] sm:$0xf]
        %v367 = vld [vmem:[%s273 + $0xc4] sm:$0xf]
        %v368 = vld [vmem:[%s273 + $0xc8] sm:$0xf]
        %v369 = vld [vmem:[%s273 + $0xcc] sm:$0xf]
        %v370 = vld [vmem:[%s273 + $0xd0] sm:$0xf]
        %v371 = vld [vmem:[%s273 + $0xd4] sm:$0xf]
        %v372 = vld [vmem:[%s273 + $0xd8] sm:$0xf]
        %v373 = vld [vmem:[%s273 + $0xdc] sm:$0xf]
        %v374 = vld [vmem:[%s273 + $0xe0] sm:$0xf]
        %v375 = vld [vmem:[%s273 + $0xe4] sm:$0xf]
        %v376 = vld [vmem:[%s273 + $0xe8] sm:$0xf]
        %v377 = vld [vmem:[%s273 + $0xec] sm:$0xf]
        %v378 = vld [vmem:[%s273 + $0xf0] sm:$0xf]
        %v379 = vld [vmem:[%s273 + $0xf4] sm:$0xf]
        %v380 = vld [vmem:[%s273 + $0xf8] sm:$0xf]
        %v381 = vld [vmem:[%s273 + $0xfc] sm:$0xf]
        %v382 = vld [vmem:[#allocation5] sm:$0xf]
        %v383 = vld [vmem:[#allocation5 + $0x4] sm:$0xf]
        %v384 = vld [vmem:[#allocation5 + $0x8] sm:$0xf]
        %v385 = vld [vmem:[#allocation5 + $0xc] sm:$0xf]
        %v386 = vld [vmem:[#allocation5 + $0x10] sm:$0xf]
        %v387 = vld [vmem:[#allocation5 + $0x14] sm:$0xf]
        %v388 = vld [vmem:[#allocation5 + $0x18] sm:$0xf]
        %v389 = vld [vmem:[#allocation5 + $0x1c] sm:$0xf]
        %v390 = vld [vmem:[#allocation5 + $0x20] sm:$0xf]
        %v391 = vld [vmem:[#allocation5 + $0x24] sm:$0xf]
        %v392 = vld [vmem:[#allocation5 + $0x28] sm:$0xf]
        %v393 = vld [vmem:[#allocation5 + $0x2c] sm:$0xf]
        %v394 = vld [vmem:[#allocation5 + $0x30] sm:$0xf]
        %v395 = vld [vmem:[#allocation5 + $0x34] sm:$0xf]
        %v396 = vld [vmem:[#allocation5 + $0x38] sm:$0xf]
        %v397 = vld [vmem:[#allocation5 + $0x3c] sm:$0xf]
        %v462 = vunpack.c.l.b16 %v318
        %v463 = vunpack.c.l.b16 %v319
        %v464 = vunpack.c.l.b16 %v320
        %v465 = vunpack.c.l.b16 %v321
        %v466 = vunpack.c.l.b16 %v322
        %v467 = vunpack.c.l.b16 %v323
        %v468 = vunpack.c.l.b16 %v324
        %v469 = vunpack.c.l.b16 %v325
        %v470 = vunpack.c.l.b16 %v326
        %v471 = vunpack.c.l.b16 %v327
        %v472 = vunpack.c.l.b16 %v328
        %v473 = vunpack.c.l.b16 %v329
        %v474 = vunpack.c.l.b16 %v330
        %v475 = vunpack.c.l.b16 %v331
        %v476 = vunpack.c.l.b16 %v332
        %v477 = vunpack.c.l.b16 %v333
        %v478 = vunpack.c.l.b16 %v334
        %v479 = vunpack.c.l.b16 %v335
        %v480 = vunpack.c.l.b16 %v336
        %v481 = vunpack.c.l.b16 %v337
        %v482 = vunpack.c.l.b16 %v338
        %v483 = vunpack.c.l.b16 %v339
        %v484 = vunpack.c.l.b16 %v340
        %v485 = vunpack.c.l.b16 %v341
        %v486 = vunpack.c.l.b16 %v342
        %v487 = vunpack.c.l.b16 %v343
        %v488 = vunpack.c.l.b16 %v344
        %v489 = vunpack.c.l.b16 %v345
        %v490 = vunpack.c.l.b16 %v346
        %v491 = vunpack.c.l.b16 %v347
        %v492 = vunpack.c.l.b16 %v348
        %v493 = vunpack.c.l.b16 %v349
        %v494 = vunpack.c.l.b16 %v350
        %v495 = vunpack.c.l.b16 %v351
        %v496 = vunpack.c.l.b16 %v352
        %v497 = vunpack.c.l.b16 %v353
        %v498 = vunpack.c.l.b16 %v354
        %v499 = vunpack.c.l.b16 %v355
        %v500 = vunpack.c.l.b16 %v356
        %v501 = vunpack.c.l.b16 %v357
        %v502 = vunpack.c.l.b16 %v358
        %v503 = vunpack.c.l.b16 %v359
        %v504 = vunpack.c.l.b16 %v360
        %v505 = vunpack.c.l.b16 %v361
        %v506 = vunpack.c.l.b16 %v362
        %v507 = vunpack.c.l.b16 %v363
        %v508 = vunpack.c.l.b16 %v364
        %v509 = vunpack.c.l.b16 %v365
        %v510 = vunpack.c.l.b16 %v366
        %v511 = vunpack.c.l.b16 %v367
        %v512 = vunpack.c.l.b16 %v368
        %v513 = vunpack.c.l.b16 %v369
        %v514 = vunpack.c.l.b16 %v370
        %v515 = vunpack.c.l.b16 %v371
        %v516 = vunpack.c.l.b16 %v372
        %v517 = vunpack.c.l.b16 %v373
        %v518 = vunpack.c.l.b16 %v374
        %v519 = vunpack.c.l.b16 %v375
        %v520 = vunpack.c.l.b16 %v376
        %v521 = vunpack.c.l.b16 %v377
        %v522 = vunpack.c.l.b16 %v378
        %v523 = vunpack.c.l.b16 %v379
        %v524 = vunpack.c.l.b16 %v380
        %v525 = vunpack.c.l.b16 %v381
        %v526 = vpack.c.b16 %v463, %v462
        %v527 = vpack.c.b16 %v465, %v464
        %v528 = vpack.c.b16 %v467, %v466
        %v529 = vpack.c.b16 %v469, %v468
        %v530 = vpack.c.b16 %v471, %v470
        %v531 = vpack.c.b16 %v473, %v472
        %v532 = vpack.c.b16 %v475, %v474
        %v533 = vpack.c.b16 %v477, %v476
        %v534 = vpack.c.b16 %v479, %v478
        %v535 = vpack.c.b16 %v481, %v480
        %v536 = vpack.c.b16 %v483, %v482
        %v537 = vpack.c.b16 %v485, %v484
        %v538 = vpack.c.b16 %v487, %v486
        %v539 = vpack.c.b16 %v489, %v488
        %v540 = vpack.c.b16 %v491, %v490
        %v541 = vpack.c.b16 %v493, %v492
        %v542 = vpack.c.b16 %v495, %v494
        %v543 = vpack.c.b16 %v497, %v496
        %v544 = vpack.c.b16 %v499, %v498
        %v545 = vpack.c.b16 %v501, %v500
        %v546 = vpack.c.b16 %v503, %v502
        %v547 = vpack.c.b16 %v505, %v504
        %v548 = vpack.c.b16 %v507, %v506
        %v549 = vpack.c.b16 %v509, %v508
        %v550 = vpack.c.b16 %v511, %v510
        %v551 = vpack.c.b16 %v513, %v512
        %v552 = vpack.c.b16 %v515, %v514
        %v553 = vpack.c.b16 %v517, %v516
        %v554 = vpack.c.b16 %v519, %v518
        %v555 = vpack.c.b16 %v521, %v520
        %v556 = vpack.c.b16 %v523, %v522
        %v557 = vpack.c.b16 %v525, %v524
        %v606 = vunpack.c.l.b16 %v382
        %v607 = vunpack.c.l.b16 %v383
        %v608 = vunpack.c.l.b16 %v384
        %v609 = vunpack.c.l.b16 %v385
        %v610 = vunpack.c.l.b16 %v386
        %v611 = vunpack.c.l.b16 %v387
        %v612 = vunpack.c.l.b16 %v388
        %v613 = vunpack.c.l.b16 %v389
        %v614 = vunpack.c.l.b16 %v390
        %v615 = vunpack.c.l.b16 %v391
        %v616 = vunpack.c.l.b16 %v392
        %v617 = vunpack.c.l.b16 %v393
        %v618 = vunpack.c.l.b16 %v394
        %v619 = vunpack.c.l.b16 %v395
        %v620 = vunpack.c.l.b16 %v396
        %v621 = vunpack.c.l.b16 %v397
        %v622 = vpack.c.b16 %v607, %v606
        %v623 = vpack.c.b16 %v609, %v608
        %v624 = vpack.c.b16 %v611, %v610
        %v625 = vpack.c.b16 %v613, %v612
        %v626 = vpack.c.b16 %v615, %v614
        %v627 = vpack.c.b16 %v617, %v616
        %v628 = vpack.c.b16 %v619, %v618
        %v629 = vpack.c.b16 %v621, %v620
        %638 = vmatprep.subr.bf16.mxu0 0
        %639 = vmatpush1.bf16.msra.mxu0 %v622
        %640 = vmatprep.subr.bf16.mxu0 0
        %641 = vmatpush1.bf16.msra.mxu0 %v623
        %642 = vmatprep.subr.bf16.mxu0 0
        %643 = vmatpush1.bf16.msra.mxu0 %v624
        %644 = vmatprep.subr.bf16.mxu0 0
        %645 = vmatpush1.bf16.msra.mxu0 %v625
        %646 = vmatprep.subr.bf16.mxu0 0
        %647 = vmatpush1.bf16.msra.mxu0 %v626
        %648 = vmatprep.subr.bf16.mxu0 0
        %649 = vmatpush1.bf16.msra.mxu0 %v627
        %650 = vmatprep.subr.bf16.mxu0 0
        %651 = vmatpush1.bf16.msra.mxu0 %v628
        %652 = vmatprep.subr.bf16.mxu0 0
        %653 = vmatpush1.bf16.msra.mxu0 %v629
        %654 = vmatprep.subr.bf16.mxu0 0
        %655 = vmatpush1.bf16.msra.mxu0 0
        %656 = vmatprep.subr.bf16.mxu0 0
        %657 = vmatpush1.bf16.msra.mxu0 0
        %658 = vmatprep.subr.bf16.mxu0 0
        %659 = vmatpush1.bf16.msra.mxu0 0
        %660 = vmatprep.subr.bf16.mxu0 0
        %661 = vmatpush1.bf16.msra.mxu0 0
        %662 = vmatprep.subr.bf16.mxu0 0
        %663 = vmatpush1.bf16.msra.mxu0 0
        %664 = vmatprep.subr.bf16.mxu0 0
        %665 = vmatpush1.bf16.msra.mxu0 0
        %666 = vmatprep.subr.bf16.mxu0 0
        %667 = vmatpush1.bf16.msra.mxu0 0
        %668 = vmatprep.subr.bf16.mxu0 0
        %669 = vmatpush1.bf16.msra.mxu0 0
        %670 = vmatprep.mubr.bf16.mxu0 0
        %671 = vmatmul.mubr.bf16.gmra.mrb[0].mxu0 %v526
        %v672 = vpop.f32.mrb[0].mxu0
        %v673 = vadd.f32 0.0, %v672
        %v674 = vpop.f32.mrb[0].mxu0
        %v675 = vpop.f32.mrb[0].mxu0
        %v676 = vadd.f32 0.0, %v675
        %v677 = vpop.f32.mrb[0].mxu0
        %678 = vmatprep.mubr.bf16.mxu0 0
        %679 = vmatmul.mubr.bf16.gmra.mrb[0].mxu0 %v527
        %v680 = vpop.f32.mrb[0].mxu0
        %v681 = vadd.f32 0.0, %v680
        %v682 = vpop.f32.mrb[0].mxu0
        %v683 = vpop.f32.mrb[0].mxu0
        %v684 = vadd.f32 0.0, %v683
        %v685 = vpop.f32.mrb[0].mxu0
        %686 = vmatprep.mubr.bf16.mxu0 0
        %687 = vmatmul.mubr.bf16.gmra.mrb[0].mxu0 %v528
        %v688 = vpop.f32.mrb[0].mxu0
        %v689 = vadd.f32 0.0, %v688
        %v690 = vpop.f32.mrb[0].mxu0
        %v691 = vpop.f32.mrb[0].mxu0
        %v692 = vadd.f32 0.0, %v691
        %v693 = vpop.f32.mrb[0].mxu0
        %694 = vmatprep.mubr.bf16.mxu0 0
        %695 = vmatmul.mubr.bf16.gmra.mrb[0].mxu0 %v529
        %v696 = vpop.f32.mrb[0].mxu0
        %v697 = vadd.f32 0.0, %v696
        %v698 = vpop.f32.mrb[0].mxu0
        %v699 = vpop.f32.mrb[0].mxu0
        %v700 = vadd.f32 0.0, %v699
        %v701 = vpop.f32.mrb[0].mxu0
        %702 = vmatprep.mubr.bf16.mxu0 0
        %703 = vmatmul.mubr.bf16.gmra.mrb[0].mxu0 %v530
        %v704 = vpop.f32.mrb[0].mxu0
        %v705 = vadd.f32 0.0, %v704
        %v706 = vpop.f32.mrb[0].mxu0
        %v707 = vpop.f32.mrb[0].mxu0
        %v708 = vadd.f32 0.0, %v707
        %v709 = vpop.f32.mrb[0].mxu0
        %710 = vmatprep.mubr.bf16.mxu0 0
        %711 = vmatmul.mubr.bf16.gmra.mrb[0].mxu0 %v531
        %v712 = vpop.f32.mrb[0].mxu0
        %v713 = vadd.f32 0.0, %v712
        %v714 = vpop.f32.mrb[0].mxu0
        %v715 = vpop.f32.mrb[0].mxu0
        %v716 = vadd.f32 0.0, %v715
        %v717 = vpop.f32.mrb[0].mxu0
        %718 = vmatprep.mubr.bf16.mxu0 0
        %719 = vmatmul.mubr.bf16.gmra.mrb[0].mxu0 %v532
        %v720 = vpop.f32.mrb[0].mxu0
        %v721 = vadd.f32 0.0, %v720
        %v722 = vpop.f32.mrb[0].mxu0
        %v723 = vpop.f32.mrb[0].mxu0
        %v724 = vadd.f32 0.0, %v723
        %v725 = vpop.f32.mrb[0].mxu0
        %726 = vmatprep.mubr.bf16.mxu0 0
        %727 = vmatmul.mubr.bf16.gmra.mrb[0].mxu0 %v533
        %v728 = vpop.f32.mrb[0].mxu0
        %v729 = vadd.f32 0.0, %v728
        %v730 = vpop.f32.mrb[0].mxu0
        %v731 = vpop.f32.mrb[0].mxu0
        %v732 = vadd.f32 0.0, %v731
        %v733 = vpop.f32.mrb[0].mxu0
        %734 = vmatprep.mubr.bf16.mxu0 0
        %735 = vmatmul.mubr.bf16.gmra.mrb[0].mxu0 %v534
        %v736 = vpop.f32.mrb[0].mxu0
        %v737 = vadd.f32 0.0, %v736
        %v738 = vpop.f32.mrb[0].mxu0
        %v739 = vpop.f32.mrb[0].mxu0
        %v740 = vadd.f32 0.0, %v739
        %v741 = vpop.f32.mrb[0].mxu0
        %742 = vmatprep.mubr.bf16.mxu0 0
        %743 = vmatmul.mubr.bf16.gmra.mrb[0].mxu0 %v535
        %v744 = vpop.f32.mrb[0].mxu0
        %v745 = vadd.f32 0.0, %v744
        %v746 = vpop.f32.mrb[0].mxu0
        %v747 = vpop.f32.mrb[0].mxu0
        %v748 = vadd.f32 0.0, %v747
        %v749 = vpop.f32.mrb[0].mxu0
        %750 = vmatprep.mubr.bf16.mxu0 0
        %751 = vmatmul.mubr.bf16.gmra.mrb[0].mxu0 %v536
        %v752 = vpop.f32.mrb[0].mxu0
        %v753 = vadd.f32 0.0, %v752
        %v754 = vpop.f32.mrb[0].mxu0
        %v755 = vpop.f32.mrb[0].mxu0
        %v756 = vadd.f32 0.0, %v755
        %v757 = vpop.f32.mrb[0].mxu0
        %758 = vmatprep.mubr.bf16.mxu0 0
        %759 = vmatmul.mubr.bf16.gmra.mrb[0].mxu0 %v537
        %v760 = vpop.f32.mrb[0].mxu0
        %v761 = vadd.f32 0.0, %v760
        %v762 = vpop.f32.mrb[0].mxu0
        %v763 = vpop.f32.mrb[0].mxu0
        %v764 = vadd.f32 0.0, %v763
        %v765 = vpop.f32.mrb[0].mxu0
        %766 = vmatprep.mubr.bf16.mxu0 0
        %767 = vmatmul.mubr.bf16.gmra.mrb[0].mxu0 %v538
        %v768 = vpop.f32.mrb[0].mxu0
        %v769 = vadd.f32 0.0, %v768
        %v770 = vpop.f32.mrb[0].mxu0
        %v771 = vpop.f32.mrb[0].mxu0
        %v772 = vadd.f32 0.0, %v771
        %v773 = vpop.f32.mrb[0].mxu0
        %774 = vmatprep.mubr.bf16.mxu0 0
        %775 = vmatmul.mubr.bf16.gmra.mrb[0].mxu0 %v539
        %v776 = vpop.f32.mrb[0].mxu0
        %v777 = vadd.f32 0.0, %v776
        %v778 = vpop.f32.mrb[0].mxu0
        %v779 = vpop.f32.mrb[0].mxu0
        %v780 = vadd.f32 0.0, %v779
        %v781 = vpop.f32.mrb[0].mxu0
        %782 = vmatprep.mubr.bf16.mxu0 0
        %783 = vmatmul.mubr.bf16.gmra.mrb[0].mxu0 %v540
        %v784 = vpop.f32.mrb[0].mxu0
        %v785 = vadd.f32 0.0, %v784
        %v786 = vpop.f32.mrb[0].mxu0
        %v787 = vpop.f32.mrb[0].mxu0
        %v788 = vadd.f32 0.0, %v787
        %v789 = vpop.f32.mrb[0].mxu0
        %790 = vmatprep.mubr.bf16.mxu0 0
        %791 = vmatmul.mubr.bf16.gmra.mrb[0].mxu0 %v541
        %v792 = vpop.f32.mrb[0].mxu0
        %v793 = vadd.f32 0.0, %v792
        %v794 = vpop.f32.mrb[0].mxu0
        %v795 = vpop.f32.mrb[0].mxu0
        %v796 = vadd.f32 0.0, %v795
        %v797 = vpop.f32.mrb[0].mxu0
        %798 = vmatprep.mubr.bf16.mxu0 0
        %799 = vmatmul.mubr.bf16.gmra.mrb[0].mxu0 %v542
        %v800 = vpop.f32.mrb[0].mxu0
        %v801 = vadd.f32 0.0, %v800
        %v802 = vpop.f32.mrb[0].mxu0
        %v803 = vpop.f32.mrb[0].mxu0
        %v804 = vadd.f32 0.0, %v803
        %v805 = vpop.f32.mrb[0].mxu0
        %806 = vmatprep.mubr.bf16.mxu0 0
        %807 = vmatmul.mubr.bf16.gmra.mrb[0].mxu0 %v543
        %v808 = vpop.f32.mrb[0].mxu0
        %v809 = vadd.f32 0.0, %v808
        %v810 = vpop.f32.mrb[0].mxu0
        %v811 = vpop.f32.mrb[0].mxu0
        %v812 = vadd.f32 0.0, %v811
        %v813 = vpop.f32.mrb[0].mxu0
        %814 = vmatprep.mubr.bf16.mxu0 0
        %815 = vmatmul.mubr.bf16.gmra.mrb[0].mxu0 %v544
        %v816 = vpop.f32.mrb[0].mxu0
        %v817 = vadd.f32 0.0, %v816
        %v818 = vpop.f32.mrb[0].mxu0
        %v819 = vpop.f32.mrb[0].mxu0
        %v820 = vadd.f32 0.0, %v819
        %v821 = vpop.f32.mrb[0].mxu0
        %822 = vmatprep.mubr.bf16.mxu0 0
        %823 = vmatmul.mubr.bf16.gmra.mrb[0].mxu0 %v545
        %v824 = vpop.f32.mrb[0].mxu0
        %v825 = vadd.f32 0.0, %v824
        %v826 = vpop.f32.mrb[0].mxu0
        %v827 = vpop.f32.mrb[0].mxu0
        %v828 = vadd.f32 0.0, %v827
        %v829 = vpop.f32.mrb[0].mxu0
        %830 = vmatprep.mubr.bf16.mxu0 0
        %831 = vmatmul.mubr.bf16.gmra.mrb[0].mxu0 %v546
        %v832 = vpop.f32.mrb[0].mxu0
        %v833 = vadd.f32 0.0, %v832
        %v834 = vpop.f32.mrb[0].mxu0
        %v835 = vpop.f32.mrb[0].mxu0
        %v836 = vadd.f32 0.0, %v835
        %v837 = vpop.f32.mrb[0].mxu0
        %838 = vmatprep.mubr.bf16.mxu0 0
        %839 = vmatmul.mubr.bf16.gmra.mrb[0].mxu0 %v547
        %v840 = vpop.f32.mrb[0].mxu0
        %v841 = vadd.f32 0.0, %v840
        %v842 = vpop.f32.mrb[0].mxu0
        %v843 = vpop.f32.mrb[0].mxu0
        %v844 = vadd.f32 0.0, %v843
        %v845 = vpop.f32.mrb[0].mxu0
        %846 = vmatprep.mubr.bf16.mxu0 0
        %847 = vmatmul.mubr.bf16.gmra.mrb[0].mxu0 %v548
        %v848 = vpop.f32.mrb[0].mxu0
        %v849 = vadd.f32 0.0, %v848
        %v850 = vpop.f32.mrb[0].mxu0
        %v851 = vpop.f32.mrb[0].mxu0
        %v852 = vadd.f32 0.0, %v851
        %v853 = vpop.f32.mrb[0].mxu0
        %854 = vmatprep.mubr.bf16.mxu0 0
        %855 = vmatmul.mubr.bf16.gmra.mrb[0].mxu0 %v549
        %v856 = vpop.f32.mrb[0].mxu0
        %v857 = vadd.f32 0.0, %v856
        %v858 = vpop.f32.mrb[0].mxu0
        %v859 = vpop.f32.mrb[0].mxu0
        %v860 = vadd.f32 0.0, %v859
        %v861 = vpop.f32.mrb[0].mxu0
        %862 = vmatprep.mubr.bf16.mxu0 0
        %863 = vmatmul.mubr.bf16.gmra.mrb[0].mxu0 %v550
        %v864 = vpop.f32.mrb[0].mxu0
        %v865 = vadd.f32 0.0, %v864
        %v866 = vpop.f32.mrb[0].mxu0
        %v867 = vpop.f32.mrb[0].mxu0
        %v868 = vadd.f32 0.0, %v867
        %v869 = vpop.f32.mrb[0].mxu0
        %870 = vmatprep.mubr.bf16.mxu0 0
        %871 = vmatmul.mubr.bf16.gmra.mrb[0].mxu0 %v551
        %v872 = vpop.f32.mrb[0].mxu0
        %v873 = vadd.f32 0.0, %v872
        %v874 = vpop.f32.mrb[0].mxu0
        %v875 = vpop.f32.mrb[0].mxu0
        %v876 = vadd.f32 0.0, %v875
        %v877 = vpop.f32.mrb[0].mxu0
        %878 = vmatprep.mubr.bf16.mxu0 0
        %879 = vmatmul.mubr.bf16.gmra.mrb[0].mxu0 %v552
        %v880 = vpop.f32.mrb[0].mxu0
        %v881 = vadd.f32 0.0, %v880
        %v882 = vpop.f32.mrb[0].mxu0
        %v883 = vpop.f32.mrb[0].mxu0
        %v884 = vadd.f32 0.0, %v883
        %v885 = vpop.f32.mrb[0].mxu0
        %886 = vmatprep.mubr.bf16.mxu0 0
        %887 = vmatmul.mubr.bf16.gmra.mrb[0].mxu0 %v553
        %v888 = vpop.f32.mrb[0].mxu0
        %v889 = vadd.f32 0.0, %v888
        %v890 = vpop.f32.mrb[0].mxu0
        %v891 = vpop.f32.mrb[0].mxu0
        %v892 = vadd.f32 0.0, %v891
        %v893 = vpop.f32.mrb[0].mxu0
        %894 = vmatprep.mubr.bf16.mxu0 0
        %895 = vmatmul.mubr.bf16.gmra.mrb[0].mxu0 %v554
        %v896 = vpop.f32.mrb[0].mxu0
        %v897 = vadd.f32 0.0, %v896
        %v898 = vpop.f32.mrb[0].mxu0
        %v899 = vpop.f32.mrb[0].mxu0
        %v900 = vadd.f32 0.0, %v899
        %v901 = vpop.f32.mrb[0].mxu0
        %902 = vmatprep.mubr.bf16.mxu0 0
        %903 = vmatmul.mubr.bf16.gmra.mrb[0].mxu0 %v555
        %v904 = vpop.f32.mrb[0].mxu0
        %v905 = vadd.f32 0.0, %v904
        %v906 = vpop.f32.mrb[0].mxu0
        %v907 = vpop.f32.mrb[0].mxu0
        %v908 = vadd.f32 0.0, %v907
        %v909 = vpop.f32.mrb[0].mxu0
        %910 = vmatprep.mubr.bf16.mxu0 0
        %911 = vmatmul.mubr.bf16.gmra.mrb[0].mxu0 %v556
        %v912 = vpop.f32.mrb[0].mxu0
        %v913 = vadd.f32 0.0, %v912
        %v914 = vpop.f32.mrb[0].mxu0
        %v915 = vpop.f32.mrb[0].mxu0
        %v916 = vadd.f32 0.0, %v915
        %v917 = vpop.f32.mrb[0].mxu0
        %918 = vmatprep.mubr.bf16.mxu0 0
        %919 = vmatmul.mubr.bf16.gmra.mrb[0].mxu0 %v557
        %v920 = vpop.f32.mrb[0].mxu0
        %v921 = vadd.f32 0.0, %v920
        %v922 = vpop.f32.mrb[0].mxu0
        %v923 = vpop.f32.mrb[0].mxu0
        %v924 = vadd.f32 0.0, %v923
        %v925 = vpop.f32.mrb[0].mxu0
        %926 = vdwg.mxu0
        %v927 = vpack.c.bf16 %v676, %v673
        %v928 = vpack.c.bf16 %v684, %v681
        %v929 = vpack.c.bf16 %v692, %v689
        %v930 = vpack.c.bf16 %v700, %v697
        %v931 = vpack.c.bf16 %v708, %v705
        %v932 = vpack.c.bf16 %v716, %v713
        %v933 = vpack.c.bf16 %v724, %v721
        %v934 = vpack.c.bf16 %v732, %v729
        %v935 = vpack.c.bf16 %v740, %v737
        %v936 = vpack.c.bf16 %v748, %v745
        %v937 = vpack.c.bf16 %v756, %v753
        %v938 = vpack.c.bf16 %v764, %v761
        %v939 = vpack.c.bf16 %v772, %v769
        %v940 = vpack.c.bf16 %v780, %v777
        %v941 = vpack.c.bf16 %v788, %v785
        %v942 = vpack.c.bf16 %v796, %v793
        %v943 = vpack.c.bf16 %v804, %v801
        %v944 = vpack.c.bf16 %v812, %v809
        %v945 = vpack.c.bf16 %v820, %v817
        %v946 = vpack.c.bf16 %v828, %v825
        %v947 = vpack.c.bf16 %v836, %v833
        %v948 = vpack.c.bf16 %v844, %v841
        %v949 = vpack.c.bf16 %v852, %v849
        %v950 = vpack.c.bf16 %v860, %v857
        %v951 = vpack.c.bf16 %v868, %v865
        %v952 = vpack.c.bf16 %v876, %v873
        %v953 = vpack.c.bf16 %v884, %v881
        %v954 = vpack.c.bf16 %v892, %v889
        %v955 = vpack.c.bf16 %v900, %v897
        %v956 = vpack.c.bf16 %v908, %v905
        %v957 = vpack.c.bf16 %v916, %v913
        %v958 = vpack.c.bf16 %v924, %v921
        %v959 = vxor.u32 %v927, 2147516416
        %v960 = vxor.u32 %v928, 2147516416
        %v961 = vxor.u32 %v929, 2147516416
        %v962 = vxor.u32 %v930, 2147516416
        %v963 = vxor.u32 %v931, 2147516416
        %v964 = vxor.u32 %v932, 2147516416
        %v965 = vxor.u32 %v933, 2147516416
        %v966 = vxor.u32 %v934, 2147516416
        %v967 = vxor.u32 %v935, 2147516416
        %v968 = vxor.u32 %v936, 2147516416
        %v969 = vxor.u32 %v937, 2147516416
        %v970 = vxor.u32 %v938, 2147516416
        %v971 = vxor.u32 %v939, 2147516416
        %v972 = vxor.u32 %v940, 2147516416
        %v973 = vxor.u32 %v941, 2147516416
        %v974 = vxor.u32 %v942, 2147516416
        %v975 = vxor.u32 %v943, 2147516416
        %v976 = vxor.u32 %v944, 2147516416
        %v977 = vxor.u32 %v945, 2147516416
        %v978 = vxor.u32 %v946, 2147516416
        %v979 = vxor.u32 %v947, 2147516416
        %v980 = vxor.u32 %v948, 2147516416
        %v981 = vxor.u32 %v949, 2147516416
        %v982 = vxor.u32 %v950, 2147516416
        %v983 = vxor.u32 %v951, 2147516416
        %v984 = vxor.u32 %v952, 2147516416
        %v985 = vxor.u32 %v953, 2147516416
        %v986 = vxor.u32 %v954, 2147516416
        %v987 = vxor.u32 %v955, 2147516416
        %v988 = vxor.u32 %v956, 2147516416
        %v989 = vxor.u32 %v957, 2147516416
        %v990 = vxor.u32 %v958, 2147516416
        %v992 = vmul.bf16 %v959, 1069105081
        %v993 = vpow.bf16.pop %v992
        %v995 = vmul.bf16 %v960, 1069105081
        %v996 = vpow.bf16.pop %v995
        %v998 = vmul.bf16 %v961, 1069105081
        %v999 = vpow.bf16.pop %v998
        %v1001 = vmul.bf16 %v962, 1069105081
        %v1002 = vpow.bf16.pop %v1001
        %v1004 = vmul.bf16 %v963, 1069105081
        %v1005 = vpow.bf16.pop %v1004
        %v1007 = vmul.bf16 %v964, 1069105081
        %v1008 = vpow.bf16.pop %v1007
        %v1010 = vmul.bf16 %v965, 1069105081
        %v1011 = vpow.bf16.pop %v1010
        %v1013 = vmul.bf16 %v966, 1069105081
        %v1014 = vpow.bf16.pop %v1013
        %v1016 = vmul.bf16 %v967, 1069105081
        %v1017 = vpow.bf16.pop %v1016
        %v1019 = vmul.bf16 %v968, 1069105081
        %v1020 = vpow.bf16.pop %v1019
        %v1022 = vmul.bf16 %v969, 1069105081
        %v1023 = vpow.bf16.pop %v1022
        %v1025 = vmul.bf16 %v970, 1069105081
        %v1026 = vpow.bf16.pop %v1025
        %v1028 = vmul.bf16 %v971, 1069105081
        %v1029 = vpow.bf16.pop %v1028
        %v1031 = vmul.bf16 %v972, 1069105081
        %v1032 = vpow.bf16.pop %v1031
        %v1034 = vmul.bf16 %v973, 1069105081
        %v1035 = vpow.bf16.pop %v1034
        %v1037 = vmul.bf16 %v974, 1069105081
        %v1038 = vpow.bf16.pop %v1037
        %v1040 = vmul.bf16 %v975, 1069105081
        %v1041 = vpow.bf16.pop %v1040
        %v1043 = vmul.bf16 %v976, 1069105081
        %v1044 = vpow.bf16.pop %v1043
        %v1046 = vmul.bf16 %v977, 1069105081
        %v1047 = vpow.bf16.pop %v1046
        %v1049 = vmul.bf16 %v978, 1069105081
        %v1050 = vpow.bf16.pop %v1049
        %v1052 = vmul.bf16 %v979, 1069105081
        %v1053 = vpow.bf16.pop %v1052
        %v1055 = vmul.bf16 %v980, 1069105081
        %v1056 = vpow.bf16.pop %v1055
        %v1058 = vmul.bf16 %v981, 1069105081
        %v1059 = vpow.bf16.pop %v1058
        %v1061 = vmul.bf16 %v982, 1069105081
        %v1062 = vpow.bf16.pop %v1061
        %v1064 = vmul.bf16 %v983, 1069105081
        %v1065 = vpow.bf16.pop %v1064
        %v1067 = vmul.bf16 %v984, 1069105081
        %v1068 = vpow.bf16.pop %v1067
        %v1070 = vmul.bf16 %v985, 1069105081
        %v1071 = vpow.bf16.pop %v1070
        %v1073 = vmul.bf16 %v986, 1069105081
        %v1074 = vpow.bf16.pop %v1073
        %v1076 = vmul.bf16 %v987, 1069105081
        %v1077 = vpow.bf16.pop %v1076
        %v1079 = vmul.bf16 %v988, 1069105081
        %v1080 = vpow.bf16.pop %v1079
        %v1082 = vmul.bf16 %v989, 1069105081
        %v1083 = vpow.bf16.pop %v1082
        %v1085 = vmul.bf16 %v990, 1069105081
        %v1086 = vpow.bf16.pop %v1085
        %v1087 = vadd.bf16 %v993, 1065369472
        %v1088 = vadd.bf16 %v996, 1065369472
        %v1089 = vadd.bf16 %v999, 1065369472
        %v1090 = vadd.bf16 %v1002, 1065369472
        %v1091 = vadd.bf16 %v1005, 1065369472
        %v1092 = vadd.bf16 %v1008, 1065369472
        %v1093 = vadd.bf16 %v1011, 1065369472
        %v1094 = vadd.bf16 %v1014, 1065369472
        %v1095 = vadd.bf16 %v1017, 1065369472
        %v1096 = vadd.bf16 %v1020, 1065369472
        %v1097 = vadd.bf16 %v1023, 1065369472
        %v1098 = vadd.bf16 %v1026, 1065369472
        %v1099 = vadd.bf16 %v1029, 1065369472
        %v1100 = vadd.bf16 %v1032, 1065369472
        %v1101 = vadd.bf16 %v1035, 1065369472
        %v1102 = vadd.bf16 %v1038, 1065369472
        %v1103 = vadd.bf16 %v1041, 1065369472
        %v1104 = vadd.bf16 %v1044, 1065369472
        %v1105 = vadd.bf16 %v1047, 1065369472
        %v1106 = vadd.bf16 %v1050, 1065369472
        %v1107 = vadd.bf16 %v1053, 1065369472
        %v1108 = vadd.bf16 %v1056, 1065369472
        %v1109 = vadd.bf16 %v1059, 1065369472
        %v1110 = vadd.bf16 %v1062, 1065369472
        %v1111 = vadd.bf16 %v1065, 1065369472
        %v1112 = vadd.bf16 %v1068, 1065369472
        %v1113 = vadd.bf16 %v1071, 1065369472
        %v1114 = vadd.bf16 %v1074, 1065369472
        %v1115 = vadd.bf16 %v1077, 1065369472
        %v1116 = vadd.bf16 %v1080, 1065369472
        %v1117 = vadd.bf16 %v1083, 1065369472
        %v1118 = vadd.bf16 %v1086, 1065369472
        %v1119 = vrcp.bf16.pop %v1087
        %v1120 = vmul.bf16 1065369472, %v1119
        %v1121 = vrcp.bf16.pop %v1088
        %v1122 = vmul.bf16 1065369472, %v1121
        %v1123 = vrcp.bf16.pop %v1089
        %v1124 = vmul.bf16 1065369472, %v1123
        %v1125 = vrcp.bf16.pop %v1090
        %v1126 = vmul.bf16 1065369472, %v1125
        %v1127 = vrcp.bf16.pop %v1091
        %v1128 = vmul.bf16 1065369472, %v1127
        %v1129 = vrcp.bf16.pop %v1092
        %v1130 = vmul.bf16 1065369472, %v1129
        %v1131 = vrcp.bf16.pop %v1093
        %v1132 = vmul.bf16 1065369472, %v1131
        %v1133 = vrcp.bf16.pop %v1094
        %v1134 = vmul.bf16 1065369472, %v1133
        %v1135 = vrcp.bf16.pop %v1095
        %v1136 = vmul.bf16 1065369472, %v1135
        %v1137 = vrcp.bf16.pop %v1096
        %v1138 = vmul.bf16 1065369472, %v1137
        %v1139 = vrcp.bf16.pop %v1097
        %v1140 = vmul.bf16 1065369472, %v1139
        %v1141 = vrcp.bf16.pop %v1098
        %v1142 = vmul.bf16 1065369472, %v1141
        %v1143 = vrcp.bf16.pop %v1099
        %v1144 = vmul.bf16 1065369472, %v1143
        %v1145 = vrcp.bf16.pop %v1100
        %v1146 = vmul.bf16 1065369472, %v1145
        %v1147 = vrcp.bf16.pop %v1101
        %v1148 = vmul.bf16 1065369472, %v1147
        %v1149 = vrcp.bf16.pop %v1102
        %v1150 = vmul.bf16 1065369472, %v1149
        %v1151 = vrcp.bf16.pop %v1103
        %v1152 = vmul.bf16 1065369472, %v1151
        %v1153 = vrcp.bf16.pop %v1104
        %v1154 = vmul.bf16 1065369472, %v1153
        %v1155 = vrcp.bf16.pop %v1105
        %v1156 = vmul.bf16 1065369472, %v1155
        %v1157 = vrcp.bf16.pop %v1106
        %v1158 = vmul.bf16 1065369472, %v1157
        %v1159 = vrcp.bf16.pop %v1107
        %v1160 = vmul.bf16 1065369472, %v1159
        %v1161 = vrcp.bf16.pop %v1108
        %v1162 = vmul.bf16 1065369472, %v1161
        %v1163 = vrcp.bf16.pop %v1109
        %v1164 = vmul.bf16 1065369472, %v1163
        %v1165 = vrcp.bf16.pop %v1110
        %v1166 = vmul.bf16 1065369472, %v1165
        %v1167 = vrcp.bf16.pop %v1111
        %v1168 = vmul.bf16 1065369472, %v1167
        %v1169 = vrcp.bf16.pop %v1112
        %v1170 = vmul.bf16 1065369472, %v1169
        %v1171 = vrcp.bf16.pop %v1113
        %v1172 = vmul.bf16 1065369472, %v1171
        %v1173 = vrcp.bf16.pop %v1114
        %v1174 = vmul.bf16 1065369472, %v1173
        %v1175 = vrcp.bf16.pop %v1115
        %v1176 = vmul.bf16 1065369472, %v1175
        %v1177 = vrcp.bf16.pop %v1116
        %v1178 = vmul.bf16 1065369472, %v1177
        %v1179 = vrcp.bf16.pop %v1117
        %v1180 = vmul.bf16 1065369472, %v1179
        %v1181 = vrcp.bf16.pop %v1118
        %v1182 = vmul.bf16 1065369472, %v1181
        %v1183 = vmul.bf16 %v927, %v1120
        %v1184 = vmul.bf16 %v928, %v1122
        %v1185 = vmul.bf16 %v929, %v1124
        %v1186 = vmul.bf16 %v930, %v1126
        %v1187 = vmul.bf16 %v931, %v1128
        %v1188 = vmul.bf16 %v932, %v1130
        %v1189 = vmul.bf16 %v933, %v1132
        %v1190 = vmul.bf16 %v934, %v1134
        %v1191 = vmul.bf16 %v935, %v1136
        %v1192 = vmul.bf16 %v936, %v1138
        %v1193 = vmul.bf16 %v937, %v1140
        %v1194 = vmul.bf16 %v938, %v1142
        %v1195 = vmul.bf16 %v939, %v1144
        %v1196 = vmul.bf16 %v940, %v1146
        %v1197 = vmul.bf16 %v941, %v1148
        %v1198 = vmul.bf16 %v942, %v1150
        %v1199 = vmul.bf16 %v943, %v1152
        %v1200 = vmul.bf16 %v944, %v1154
        %v1201 = vmul.bf16 %v945, %v1156
        %v1202 = vmul.bf16 %v946, %v1158
        %v1203 = vmul.bf16 %v947, %v1160
        %v1204 = vmul.bf16 %v948, %v1162
        %v1205 = vmul.bf16 %v949, %v1164
        %v1206 = vmul.bf16 %v950, %v1166
        %v1207 = vmul.bf16 %v951, %v1168
        %v1208 = vmul.bf16 %v952, %v1170
        %v1209 = vmul.bf16 %v953, %v1172
        %v1210 = vmul.bf16 %v954, %v1174
        %v1211 = vmul.bf16 %v955, %v1176
        %v1212 = vmul.bf16 %v956, %v1178
        %v1213 = vmul.bf16 %v957, %v1180
        %v1214 = vmul.bf16 %v958, %v1182
        %v1215 = vld [vmem:[#allocation7] sm:$0xf]
        %v1216 = vld [vmem:[#allocation7 + $0x4] sm:$0xf]
        %v1217 = vld [vmem:[#allocation7 + $0x8] sm:$0xf]
        %v1218 = vld [vmem:[#allocation7 + $0xc] sm:$0xf]
        %v1219 = vld [vmem:[#allocation7 + $0x10] sm:$0xf]
        %v1220 = vld [vmem:[#allocation7 + $0x14] sm:$0xf]
        %v1221 = vld [vmem:[#allocation7 + $0x18] sm:$0xf]
        %v1222 = vld [vmem:[#allocation7 + $0x1c] sm:$0xf]
        %v1223 = vld [vmem:[#allocation7 + $0x20] sm:$0xf]
        %v1224 = vld [vmem:[#allocation7 + $0x24] sm:$0xf]
        %v1225 = vld [vmem:[#allocation7 + $0x28] sm:$0xf]
        %v1226 = vld [vmem:[#allocation7 + $0x2c] sm:$0xf]
        %v1227 = vld [vmem:[#allocation7 + $0x30] sm:$0xf]
        %v1228 = vld [vmem:[#allocation7 + $0x34] sm:$0xf]
        %v1229 = vld [vmem:[#allocation7 + $0x38] sm:$0xf]
        %v1230 = vld [vmem:[#allocation7 + $0x3c] sm:$0xf]
        %v1231 = vld [vmem:[%s3] sm:$0x1]
        %v1233 = vlaneseq
        %v1234 = vshrl.u32 %v1233, 7
        %v1235 = vsub.s32 0, %v1234
        %v1236 = vrot.slane %v1231, %v1235
        %v1254 = vunpack.c.l.b16 %v1215
        %v1255 = vunpack.c.l.b16 %v1216
        %v1256 = vunpack.c.l.b16 %v1217
        %v1257 = vunpack.c.l.b16 %v1218
        %v1258 = vunpack.c.l.b16 %v1219
        %v1259 = vunpack.c.l.b16 %v1220
        %v1260 = vunpack.c.l.b16 %v1221
        %v1261 = vunpack.c.l.b16 %v1222
        %v1262 = vunpack.c.l.b16 %v1223
        %v1263 = vunpack.c.l.b16 %v1224
        %v1264 = vunpack.c.l.b16 %v1225
        %v1265 = vunpack.c.l.b16 %v1226
        %v1266 = vunpack.c.l.b16 %v1227
        %v1267 = vunpack.c.l.b16 %v1228
        %v1268 = vunpack.c.l.b16 %v1229
        %v1269 = vunpack.c.l.b16 %v1230
        %v1270 = vpack.c.b16 %v1255, %v1254
        %v1271 = vpack.c.b16 %v1257, %v1256
        %v1272 = vpack.c.b16 %v1259, %v1258
        %v1273 = vpack.c.b16 %v1261, %v1260
        %v1274 = vpack.c.b16 %v1263, %v1262
        %v1275 = vpack.c.b16 %v1265, %v1264
        %v1276 = vpack.c.b16 %v1267, %v1266
        %v1277 = vpack.c.b16 %v1269, %v1268
        %1286 = vmatprep.subr.bf16.mxu0 0
        %1287 = vmatpush1.bf16.msra.mxu0 %v1270
        %1288 = vmatprep.subr.bf16.mxu0 0
        %1289 = vmatpush1.bf16.msra.mxu0 %v1271
        %1290 = vmatprep.subr.bf16.mxu0 0
        %1291 = vmatpush1.bf16.msra.mxu0 %v1272
        %1292 = vmatprep.subr.bf16.mxu0 0
        %1293 = vmatpush1.bf16.msra.mxu0 %v1273
        %1294 = vmatprep.subr.bf16.mxu0 0
        %1295 = vmatpush1.bf16.msra.mxu0 %v1274
        %1296 = vmatprep.subr.bf16.mxu0 0
        %1297 = vmatpush1.bf16.msra.mxu0 %v1275
        %1298 = vmatprep.subr.bf16.mxu0 0
        %1299 = vmatpush1.bf16.msra.mxu0 %v1276
        %1300 = vmatprep.subr.bf16.mxu0 0
        %1301 = vmatpush1.bf16.msra.mxu0 %v1277
        %1302 = vmatprep.subr.bf16.mxu0 0
        %1303 = vmatpush1.bf16.msra.mxu0 0
        %1304 = vmatprep.subr.bf16.mxu0 0
        %1305 = vmatpush1.bf16.msra.mxu0 0
        %1306 = vmatprep.subr.bf16.mxu0 0
        %1307 = vmatpush1.bf16.msra.mxu0 0
        %1308 = vmatprep.subr.bf16.mxu0 0
        %1309 = vmatpush1.bf16.msra.mxu0 0
        %1310 = vmatprep.subr.bf16.mxu0 0
        %1311 = vmatpush1.bf16.msra.mxu0 0
        %1312 = vmatprep.subr.bf16.mxu0 0
        %1313 = vmatpush1.bf16.msra.mxu0 0
        %1314 = vmatprep.subr.bf16.mxu0 0
        %1315 = vmatpush1.bf16.msra.mxu0 0
        %1316 = vmatprep.subr.bf16.mxu0 0
        %1317 = vmatpush1.bf16.msra.mxu0 0
        %1318 = vmatprep.mubr.bf16.mxu0 0
        %1319 = vmatmul.mubr.bf16.gmra.mrb[0].mxu0 %v1183
        %v1320 = vpop.f32.mrb[0].mxu0
        %v1321 = vadd.f32 %v1236, %v1320
        %v1322 = vpop.f32.mrb[0].mxu0
        %v1323 = vpop.f32.mrb[0].mxu0
        %v1324 = vadd.f32 %v1236, %v1323
        %v1325 = vpop.f32.mrb[0].mxu0
        %1326 = vmatprep.mubr.bf16.mxu0 0
        %1327 = vmatmul.mubr.bf16.gmra.mrb[0].mxu0 %v1184
        %v1328 = vpop.f32.mrb[0].mxu0
        %v1329 = vadd.f32 %v1236, %v1328
        %v1330 = vpop.f32.mrb[0].mxu0
        %v1331 = vpop.f32.mrb[0].mxu0
        %v1332 = vadd.f32 %v1236, %v1331
        %v1333 = vpop.f32.mrb[0].mxu0
        %1334 = vmatprep.mubr.bf16.mxu0 0
        %1335 = vmatmul.mubr.bf16.gmra.mrb[0].mxu0 %v1185
        %v1336 = vpop.f32.mrb[0].mxu0
        %v1337 = vadd.f32 %v1236, %v1336
        %v1338 = vpop.f32.mrb[0].mxu0
        %v1339 = vpop.f32.mrb[0].mxu0
        %v1340 = vadd.f32 %v1236, %v1339
        %v1341 = vpop.f32.mrb[0].mxu0
        %1342 = vmatprep.mubr.bf16.mxu0 0
        %1343 = vmatmul.mubr.bf16.gmra.mrb[0].mxu0 %v1186
        %v1344 = vpop.f32.mrb[0].mxu0
        %v1345 = vadd.f32 %v1236, %v1344
        %v1346 = vpop.f32.mrb[0].mxu0
        %v1347 = vpop.f32.mrb[0].mxu0
        %v1348 = vadd.f32 %v1236, %v1347
        %v1349 = vpop.f32.mrb[0].mxu0
        %1350 = vmatprep.mubr.bf16.mxu0 0
        %1351 = vmatmul.mubr.bf16.gmra.mrb[0].mxu0 %v1187
        %v1352 = vpop.f32.mrb[0].mxu0
        %v1353 = vadd.f32 %v1236, %v1352
        %v1354 = vpop.f32.mrb[0].mxu0
        %v1355 = vpop.f32.mrb[0].mxu0
        %v1356 = vadd.f32 %v1236, %v1355
        %v1357 = vpop.f32.mrb[0].mxu0
        %1358 = vmatprep.mubr.bf16.mxu0 0
        %1359 = vmatmul.mubr.bf16.gmra.mrb[0].mxu0 %v1188
        %v1360 = vpop.f32.mrb[0].mxu0
        %v1361 = vadd.f32 %v1236, %v1360
        %v1362 = vpop.f32.mrb[0].mxu0
        %v1363 = vpop.f32.mrb[0].mxu0
        %v1364 = vadd.f32 %v1236, %v1363
        %v1365 = vpop.f32.mrb[0].mxu0
        %1366 = vmatprep.mubr.bf16.mxu0 0
        %1367 = vmatmul.mubr.bf16.gmra.mrb[0].mxu0 %v1189
        %v1368 = vpop.f32.mrb[0].mxu0
        %v1369 = vadd.f32 %v1236, %v1368
        %v1370 = vpop.f32.mrb[0].mxu0
        %v1371 = vpop.f32.mrb[0].mxu0
        %v1372 = vadd.f32 %v1236, %v1371
        %v1373 = vpop.f32.mrb[0].mxu0
        %1374 = vmatprep.mubr.bf16.mxu0 0
        %1375 = vmatmul.mubr.bf16.gmra.mrb[0].mxu0 %v1190
        %v1376 = vpop.f32.mrb[0].mxu0
        %v1377 = vadd.f32 %v1236, %v1376
        %v1378 = vpop.f32.mrb[0].mxu0
        %v1379 = vpop.f32.mrb[0].mxu0
        %v1380 = vadd.f32 %v1236, %v1379
        %v1381 = vpop.f32.mrb[0].mxu0
        %1382 = vmatprep.mubr.bf16.mxu0 0
        %1383 = vmatmul.mubr.bf16.gmra.mrb[0].mxu0 %v1191
        %v1384 = vpop.f32.mrb[0].mxu0
        %v1385 = vadd.f32 %v1236, %v1384
        %v1386 = vpop.f32.mrb[0].mxu0
        %v1387 = vpop.f32.mrb[0].mxu0
        %v1388 = vadd.f32 %v1236, %v1387
        %v1389 = vpop.f32.mrb[0].mxu0
        %1390 = vmatprep.mubr.bf16.mxu0 0
        %1391 = vmatmul.mubr.bf16.gmra.mrb[0].mxu0 %v1192
        %v1392 = vpop.f32.mrb[0].mxu0
        %v1393 = vadd.f32 %v1236, %v1392
        %v1394 = vpop.f32.mrb[0].mxu0
        %v1395 = vpop.f32.mrb[0].mxu0
        %v1396 = vadd.f32 %v1236, %v1395
        %v1397 = vpop.f32.mrb[0].mxu0
        %1398 = vmatprep.mubr.bf16.mxu0 0
        %1399 = vmatmul.mubr.bf16.gmra.mrb[0].mxu0 %v1193
        %v1400 = vpop.f32.mrb[0].mxu0
        %v1401 = vadd.f32 %v1236, %v1400
        %v1402 = vpop.f32.mrb[0].mxu0
        %v1403 = vpop.f32.mrb[0].mxu0
        %v1404 = vadd.f32 %v1236, %v1403
        %v1405 = vpop.f32.mrb[0].mxu0
        %1406 = vmatprep.mubr.bf16.mxu0 0
        %1407 = vmatmul.mubr.bf16.gmra.mrb[0].mxu0 %v1194
        %v1408 = vpop.f32.mrb[0].mxu0
        %v1409 = vadd.f32 %v1236, %v1408
        %v1410 = vpop.f32.mrb[0].mxu0
        %v1411 = vpop.f32.mrb[0].mxu0
        %v1412 = vadd.f32 %v1236, %v1411
        %v1413 = vpop.f32.mrb[0].mxu0
        %1414 = vmatprep.mubr.bf16.mxu0 0
        %1415 = vmatmul.mubr.bf16.gmra.mrb[0].mxu0 %v1195
        %v1416 = vpop.f32.mrb[0].mxu0
        %v1417 = vadd.f32 %v1236, %v1416
        %v1418 = vpop.f32.mrb[0].mxu0
        %v1419 = vpop.f32.mrb[0].mxu0
        %v1420 = vadd.f32 %v1236, %v1419
        %v1421 = vpop.f32.mrb[0].mxu0
        %1422 = vmatprep.mubr.bf16.mxu0 0
        %1423 = vmatmul.mubr.bf16.gmra.mrb[0].mxu0 %v1196
        %v1424 = vpop.f32.mrb[0].mxu0
        %v1425 = vadd.f32 %v1236, %v1424
        %v1426 = vpop.f32.mrb[0].mxu0
        %v1427 = vpop.f32.mrb[0].mxu0
        %v1428 = vadd.f32 %v1236, %v1427
        %v1429 = vpop.f32.mrb[0].mxu0
        %1430 = vmatprep.mubr.bf16.mxu0 0
        %1431 = vmatmul.mubr.bf16.gmra.mrb[0].mxu0 %v1197
        %v1432 = vpop.f32.mrb[0].mxu0
        %v1433 = vadd.f32 %v1236, %v1432
        %v1434 = vpop.f32.mrb[0].mxu0
        %v1435 = vpop.f32.mrb[0].mxu0
        %v1436 = vadd.f32 %v1236, %v1435
        %v1437 = vpop.f32.mrb[0].mxu0
        %1438 = vmatprep.mubr.bf16.mxu0 0
        %1439 = vmatmul.mubr.bf16.gmra.mrb[0].mxu0 %v1198
        %v1440 = vpop.f32.mrb[0].mxu0
        %v1441 = vadd.f32 %v1236, %v1440
        %v1442 = vpop.f32.mrb[0].mxu0
        %v1443 = vpop.f32.mrb[0].mxu0
        %v1444 = vadd.f32 %v1236, %v1443
        %v1445 = vpop.f32.mrb[0].mxu0
        %1446 = vmatprep.mubr.bf16.mxu0 0
        %1447 = vmatmul.mubr.bf16.gmra.mrb[0].mxu0 %v1199
        %v1448 = vpop.f32.mrb[0].mxu0
        %v1449 = vadd.f32 %v1236, %v1448
        %v1450 = vpop.f32.mrb[0].mxu0
        %v1451 = vpop.f32.mrb[0].mxu0
        %v1452 = vadd.f32 %v1236, %v1451
        %v1453 = vpop.f32.mrb[0].mxu0
        %1454 = vmatprep.mubr.bf16.mxu0 0
        %1455 = vmatmul.mubr.bf16.gmra.mrb[0].mxu0 %v1200
        %v1456 = vpop.f32.mrb[0].mxu0
        %v1457 = vadd.f32 %v1236, %v1456
        %v1458 = vpop.f32.mrb[0].mxu0
        %v1459 = vpop.f32.mrb[0].mxu0
        %v1460 = vadd.f32 %v1236, %v1459
        %v1461 = vpop.f32.mrb[0].mxu0
        %1462 = vmatprep.mubr.bf16.mxu0 0
        %1463 = vmatmul.mubr.bf16.gmra.mrb[0].mxu0 %v1201
        %v1464 = vpop.f32.mrb[0].mxu0
        %v1465 = vadd.f32 %v1236, %v1464
        %v1466 = vpop.f32.mrb[0].mxu0
        %v1467 = vpop.f32.mrb[0].mxu0
        %v1468 = vadd.f32 %v1236, %v1467
        %v1469 = vpop.f32.mrb[0].mxu0
        %1470 = vmatprep.mubr.bf16.mxu0 0
        %1471 = vmatmul.mubr.bf16.gmra.mrb[0].mxu0 %v1202
        %v1472 = vpop.f32.mrb[0].mxu0
        %v1473 = vadd.f32 %v1236, %v1472
        %v1474 = vpop.f32.mrb[0].mxu0
        %v1475 = vpop.f32.mrb[0].mxu0
        %v1476 = vadd.f32 %v1236, %v1475
        %v1477 = vpop.f32.mrb[0].mxu0
        %1478 = vmatprep.mubr.bf16.mxu0 0
        %1479 = vmatmul.mubr.bf16.gmra.mrb[0].mxu0 %v1203
        %v1480 = vpop.f32.mrb[0].mxu0
        %v1481 = vadd.f32 %v1236, %v1480
        %v1482 = vpop.f32.mrb[0].mxu0
        %v1483 = vpop.f32.mrb[0].mxu0
        %v1484 = vadd.f32 %v1236, %v1483
        %v1485 = vpop.f32.mrb[0].mxu0
        %1486 = vmatprep.mubr.bf16.mxu0 0
        %1487 = vmatmul.mubr.bf16.gmra.mrb[0].mxu0 %v1204
        %v1488 = vpop.f32.mrb[0].mxu0
        %v1489 = vadd.f32 %v1236, %v1488
        %v1490 = vpop.f32.mrb[0].mxu0
        %v1491 = vpop.f32.mrb[0].mxu0
        %v1492 = vadd.f32 %v1236, %v1491
        %v1493 = vpop.f32.mrb[0].mxu0
        %1494 = vmatprep.mubr.bf16.mxu0 0
        %1495 = vmatmul.mubr.bf16.gmra.mrb[0].mxu0 %v1205
        %v1496 = vpop.f32.mrb[0].mxu0
        %v1497 = vadd.f32 %v1236, %v1496
        %v1498 = vpop.f32.mrb[0].mxu0
        %v1499 = vpop.f32.mrb[0].mxu0
        %v1500 = vadd.f32 %v1236, %v1499
        %v1501 = vpop.f32.mrb[0].mxu0
        %1502 = vmatprep.mubr.bf16.mxu0 0
        %1503 = vmatmul.mubr.bf16.gmra.mrb[0].mxu0 %v1206
        %v1504 = vpop.f32.mrb[0].mxu0
        %v1505 = vadd.f32 %v1236, %v1504
        %v1506 = vpop.f32.mrb[0].mxu0
        %v1507 = vpop.f32.mrb[0].mxu0
        %v1508 = vadd.f32 %v1236, %v1507
        %v1509 = vpop.f32.mrb[0].mxu0
        %1510 = vmatprep.mubr.bf16.mxu0 0
        %1511 = vmatmul.mubr.bf16.gmra.mrb[0].mxu0 %v1207
        %v1512 = vpop.f32.mrb[0].mxu0
        %v1513 = vadd.f32 %v1236, %v1512
        %v1514 = vpop.f32.mrb[0].mxu0
        %v1515 = vpop.f32.mrb[0].mxu0
        %v1516 = vadd.f32 %v1236, %v1515
        %v1517 = vpop.f32.mrb[0].mxu0
        %1518 = vmatprep.mubr.bf16.mxu0 0
        %1519 = vmatmul.mubr.bf16.gmra.mrb[0].mxu0 %v1208
        %v1520 = vpop.f32.mrb[0].mxu0
        %v1521 = vadd.f32 %v1236, %v1520
        %v1522 = vpop.f32.mrb[0].mxu0
        %v1523 = vpop.f32.mrb[0].mxu0
        %v1524 = vadd.f32 %v1236, %v1523
        %v1525 = vpop.f32.mrb[0].mxu0
        %1526 = vmatprep.mubr.bf16.mxu0 0
        %1527 = vmatmul.mubr.bf16.gmra.mrb[0].mxu0 %v1209
        %v1528 = vpop.f32.mrb[0].mxu0
        %v1529 = vadd.f32 %v1236, %v1528
        %v1530 = vpop.f32.mrb[0].mxu0
        %v1531 = vpop.f32.mrb[0].mxu0
        %v1532 = vadd.f32 %v1236, %v1531
        %v1533 = vpop.f32.mrb[0].mxu0
        %1534 = vmatprep.mubr.bf16.mxu0 0
        %1535 = vmatmul.mubr.bf16.gmra.mrb[0].mxu0 %v1210
        %v1536 = vpop.f32.mrb[0].mxu0
        %v1537 = vadd.f32 %v1236, %v1536
        %v1538 = vpop.f32.mrb[0].mxu0
        %v1539 = vpop.f32.mrb[0].mxu0
        %v1540 = vadd.f32 %v1236, %v1539
        %v1541 = vpop.f32.mrb[0].mxu0
        %1542 = vmatprep.mubr.bf16.mxu0 0
        %1543 = vmatmul.mubr.bf16.gmra.mrb[0].mxu0 %v1211
        %v1544 = vpop.f32.mrb[0].mxu0
        %v1545 = vadd.f32 %v1236, %v1544
        %v1546 = vpop.f32.mrb[0].mxu0
        %v1547 = vpop.f32.mrb[0].mxu0
        %v1548 = vadd.f32 %v1236, %v1547
        %v1549 = vpop.f32.mrb[0].mxu0
        %1550 = vmatprep.mubr.bf16.mxu0 0
        %1551 = vmatmul.mubr.bf16.gmra.mrb[0].mxu0 %v1212
        %v1552 = vpop.f32.mrb[0].mxu0
        %v1553 = vadd.f32 %v1236, %v1552
        %v1554 = vpop.f32.mrb[0].mxu0
        %v1555 = vpop.f32.mrb[0].mxu0
        %v1556 = vadd.f32 %v1236, %v1555
        %v1557 = vpop.f32.mrb[0].mxu0
        %1558 = vmatprep.mubr.bf16.mxu0 0
        %1559 = vmatmul.mubr.bf16.gmra.mrb[0].mxu0 %v1213
        %v1560 = vpop.f32.mrb[0].mxu0
        %v1561 = vadd.f32 %v1236, %v1560
        %v1562 = vpop.f32.mrb[0].mxu0
        %v1563 = vpop.f32.mrb[0].mxu0
        %v1564 = vadd.f32 %v1236, %v1563
        %v1565 = vpop.f32.mrb[0].mxu0
        %1566 = vmatprep.mubr.bf16.mxu0 0
        %1567 = vmatmul.mubr.bf16.gmra.mrb[0].mxu0 %v1214
        %v1568 = vpop.f32.mrb[0].mxu0
        %v1569 = vadd.f32 %v1236, %v1568
        %v1570 = vpop.f32.mrb[0].mxu0
        %v1571 = vpop.f32.mrb[0].mxu0
        %v1572 = vadd.f32 %v1236, %v1571
        %v1573 = vpop.f32.mrb[0].mxu0
        %1574 = vdwg.mxu0
        %v1575 = vpack.c.bf16 %v1324, %v1321
        %v1576 = vpack.c.bf16 %v1332, %v1329
        %v1577 = vpack.c.bf16 %v1340, %v1337
        %v1578 = vpack.c.bf16 %v1348, %v1345
        %v1579 = vpack.c.bf16 %v1356, %v1353
        %v1580 = vpack.c.bf16 %v1364, %v1361
        %v1581 = vpack.c.bf16 %v1372, %v1369
        %v1582 = vpack.c.bf16 %v1380, %v1377
        %v1583 = vpack.c.bf16 %v1388, %v1385
        %v1584 = vpack.c.bf16 %v1396, %v1393
        %v1585 = vpack.c.bf16 %v1404, %v1401
        %v1586 = vpack.c.bf16 %v1412, %v1409
        %v1587 = vpack.c.bf16 %v1420, %v1417
        %v1588 = vpack.c.bf16 %v1428, %v1425
        %v1589 = vpack.c.bf16 %v1436, %v1433
        %v1590 = vpack.c.bf16 %v1444, %v1441
        %v1591 = vpack.c.bf16 %v1452, %v1449
        %v1592 = vpack.c.bf16 %v1460, %v1457
        %v1593 = vpack.c.bf16 %v1468, %v1465
        %v1594 = vpack.c.bf16 %v1476, %v1473
        %v1595 = vpack.c.bf16 %v1484, %v1481
        %v1596 = vpack.c.bf16 %v1492, %v1489
        %v1597 = vpack.c.bf16 %v1500, %v1497
        %v1598 = vpack.c.bf16 %v1508, %v1505
        %v1599 = vpack.c.bf16 %v1516, %v1513
        %v1600 = vpack.c.bf16 %v1524, %v1521
        %v1601 = vpack.c.bf16 %v1532, %v1529
        %v1602 = vpack.c.bf16 %v1540, %v1537
        %v1603 = vpack.c.bf16 %v1548, %v1545
        %v1604 = vpack.c.bf16 %v1556, %v1553
        %v1605 = vpack.c.bf16 %v1564, %v1561
        %v1606 = vpack.c.bf16 %v1572, %v1569
        %v1607 = vxor.u32 %v1575, 2147516416
        %v1608 = vxor.u32 %v1576, 2147516416
        %v1609 = vxor.u32 %v1577, 2147516416
        %v1610 = vxor.u32 %v1578, 2147516416
        %v1611 = vxor.u32 %v1579, 2147516416
        %v1612 = vxor.u32 %v1580, 2147516416
        %v1613 = vxor.u32 %v1581, 2147516416
        %v1614 = vxor.u32 %v1582, 2147516416
        %v1615 = vxor.u32 %v1583, 2147516416
        %v1616 = vxor.u32 %v1584, 2147516416
        %v1617 = vxor.u32 %v1585, 2147516416
        %v1618 = vxor.u32 %v1586, 2147516416
        %v1619 = vxor.u32 %v1587, 2147516416
        %v1620 = vxor.u32 %v1588, 2147516416
        %v1621 = vxor.u32 %v1589, 2147516416
        %v1622 = vxor.u32 %v1590, 2147516416
        %v1623 = vxor.u32 %v1591, 2147516416
        %v1624 = vxor.u32 %v1592, 2147516416
        %v1625 = vxor.u32 %v1593, 2147516416
        %v1626 = vxor.u32 %v1594, 2147516416
        %v1627 = vxor.u32 %v1595, 2147516416
        %v1628 = vxor.u32 %v1596, 2147516416
        %v1629 = vxor.u32 %v1597, 2147516416
        %v1630 = vxor.u32 %v1598, 2147516416
        %v1631 = vxor.u32 %v1599, 2147516416
        %v1632 = vxor.u32 %v1600, 2147516416
        %v1633 = vxor.u32 %v1601, 2147516416
        %v1634 = vxor.u32 %v1602, 2147516416
        %v1635 = vxor.u32 %v1603, 2147516416
        %v1636 = vxor.u32 %v1604, 2147516416
        %v1637 = vxor.u32 %v1605, 2147516416
        %v1638 = vxor.u32 %v1606, 2147516416
        %v1640 = vmul.bf16 %v1607, 1069105081
        %v1641 = vpow.bf16.pop %v1640
        %v1643 = vmul.bf16 %v1608, 1069105081
        %v1644 = vpow.bf16.pop %v1643
        %v1646 = vmul.bf16 %v1609, 1069105081
        %v1647 = vpow.bf16.pop %v1646
        %v1649 = vmul.bf16 %v1610, 1069105081
        %v1650 = vpow.bf16.pop %v1649
        %v1652 = vmul.bf16 %v1611, 1069105081
        %v1653 = vpow.bf16.pop %v1652
        %v1655 = vmul.bf16 %v1612, 1069105081
        %v1656 = vpow.bf16.pop %v1655
        %v1658 = vmul.bf16 %v1613, 1069105081
        %v1659 = vpow.bf16.pop %v1658
        %v1661 = vmul.bf16 %v1614, 1069105081
        %v1662 = vpow.bf16.pop %v1661
        %v1664 = vmul.bf16 %v1615, 1069105081
        %v1665 = vpow.bf16.pop %v1664
        %v1667 = vmul.bf16 %v1616, 1069105081
        %v1668 = vpow.bf16.pop %v1667
        %v1670 = vmul.bf16 %v1617, 1069105081
        %v1671 = vpow.bf16.pop %v1670
        %v1673 = vmul.bf16 %v1618, 1069105081
        %v1674 = vpow.bf16.pop %v1673
        %v1676 = vmul.bf16 %v1619, 1069105081
        %v1677 = vpow.bf16.pop %v1676
        %v1679 = vmul.bf16 %v1620, 1069105081
        %v1680 = vpow.bf16.pop %v1679
        %v1682 = vmul.bf16 %v1621, 1069105081
        %v1683 = vpow.bf16.pop %v1682
        %v1685 = vmul.bf16 %v1622, 1069105081
        %v1686 = vpow.bf16.pop %v1685
        %v1688 = vmul.bf16 %v1623, 1069105081
        %v1689 = vpow.bf16.pop %v1688
        %v1691 = vmul.bf16 %v1624, 1069105081
        %v1692 = vpow.bf16.pop %v1691
        %v1694 = vmul.bf16 %v1625, 1069105081
        %v1695 = vpow.bf16.pop %v1694
        %v1697 = vmul.bf16 %v1626, 1069105081
        %v1698 = vpow.bf16.pop %v1697
        %v1700 = vmul.bf16 %v1627, 1069105081
        %v1701 = vpow.bf16.pop %v1700
        %v1703 = vmul.bf16 %v1628, 1069105081
        %v1704 = vpow.bf16.pop %v1703
        %v1706 = vmul.bf16 %v1629, 1069105081
        %v1707 = vpow.bf16.pop %v1706
        %v1709 = vmul.bf16 %v1630, 1069105081
        %v1710 = vpow.bf16.pop %v1709
        %v1712 = vmul.bf16 %v1631, 1069105081
        %v1713 = vpow.bf16.pop %v1712
        %v1715 = vmul.bf16 %v1632, 1069105081
        %v1716 = vpow.bf16.pop %v1715
        %v1718 = vmul.bf16 %v1633, 1069105081
        %v1719 = vpow.bf16.pop %v1718
        %v1721 = vmul.bf16 %v1634, 1069105081
        %v1722 = vpow.bf16.pop %v1721
        %v1724 = vmul.bf16 %v1635, 1069105081
        %v1725 = vpow.bf16.pop %v1724
        %v1727 = vmul.bf16 %v1636, 1069105081
        %v1728 = vpow.bf16.pop %v1727
        %v1730 = vmul.bf16 %v1637, 1069105081
        %v1731 = vpow.bf16.pop %v1730
        %v1733 = vmul.bf16 %v1638, 1069105081
        %v1734 = vpow.bf16.pop %v1733
        %v1735 = vadd.bf16 %v1641, 1065369472
        %v1736 = vadd.bf16 %v1644, 1065369472
        %v1737 = vadd.bf16 %v1647, 1065369472
        %v1738 = vadd.bf16 %v1650, 1065369472
        %v1739 = vadd.bf16 %v1653, 1065369472
        %v1740 = vadd.bf16 %v1656, 1065369472
        %v1741 = vadd.bf16 %v1659, 1065369472
        %v1742 = vadd.bf16 %v1662, 1065369472
        %v1743 = vadd.bf16 %v1665, 1065369472
        %v1744 = vadd.bf16 %v1668, 1065369472
        %v1745 = vadd.bf16 %v1671, 1065369472
        %v1746 = vadd.bf16 %v1674, 1065369472
        %v1747 = vadd.bf16 %v1677, 1065369472
        %v1748 = vadd.bf16 %v1680, 1065369472
        %v1749 = vadd.bf16 %v1683, 1065369472
        %v1750 = vadd.bf16 %v1686, 1065369472
        %v1751 = vadd.bf16 %v1689, 1065369472
        %v1752 = vadd.bf16 %v1692, 1065369472
        %v1753 = vadd.bf16 %v1695, 1065369472
        %v1754 = vadd.bf16 %v1698, 1065369472
        %v1755 = vadd.bf16 %v1701, 1065369472
        %v1756 = vadd.bf16 %v1704, 1065369472
        %v1757 = vadd.bf16 %v1707, 1065369472
        %v1758 = vadd.bf16 %v1710, 1065369472
        %v1759 = vadd.bf16 %v1713, 1065369472
        %v1760 = vadd.bf16 %v1716, 1065369472
        %v1761 = vadd.bf16 %v1719, 1065369472
        %v1762 = vadd.bf16 %v1722, 1065369472
        %v1763 = vadd.bf16 %v1725, 1065369472
        %v1764 = vadd.bf16 %v1728, 1065369472
        %v1765 = vadd.bf16 %v1731, 1065369472
        %v1766 = vadd.bf16 %v1734, 1065369472
        %v1767 = vrcp.bf16.pop %v1735
        %v1768 = vmul.bf16 1065369472, %v1767
        %v1769 = vrcp.bf16.pop %v1736
        %v1770 = vmul.bf16 1065369472, %v1769
        %v1771 = vrcp.bf16.pop %v1737
        %v1772 = vmul.bf16 1065369472, %v1771
        %v1773 = vrcp.bf16.pop %v1738
        %v1774 = vmul.bf16 1065369472, %v1773
        %v1775 = vrcp.bf16.pop %v1739
        %v1776 = vmul.bf16 1065369472, %v1775
        %v1777 = vrcp.bf16.pop %v1740
        %v1778 = vmul.bf16 1065369472, %v1777
        %v1779 = vrcp.bf16.pop %v1741
        %v1780 = vmul.bf16 1065369472, %v1779
        %v1781 = vrcp.bf16.pop %v1742
        %v1782 = vmul.bf16 1065369472, %v1781
        %v1783 = vrcp.bf16.pop %v1743
        %v1784 = vmul.bf16 1065369472, %v1783
        %v1785 = vrcp.bf16.pop %v1744
        %v1786 = vmul.bf16 1065369472, %v1785
        %v1787 = vrcp.bf16.pop %v1745
        %v1788 = vmul.bf16 1065369472, %v1787
        %v1789 = vrcp.bf16.pop %v1746
        %v1790 = vmul.bf16 1065369472, %v1789
        %v1791 = vrcp.bf16.pop %v1747
        %v1792 = vmul.bf16 1065369472, %v1791
        %v1793 = vrcp.bf16.pop %v1748
        %v1794 = vmul.bf16 1065369472, %v1793
        %v1795 = vrcp.bf16.pop %v1749
        %v1796 = vmul.bf16 1065369472, %v1795
        %v1797 = vrcp.bf16.pop %v1750
        %v1798 = vmul.bf16 1065369472, %v1797
        %v1799 = vrcp.bf16.pop %v1751
        %v1800 = vmul.bf16 1065369472, %v1799
        %v1801 = vrcp.bf16.pop %v1752
        %v1802 = vmul.bf16 1065369472, %v1801
        %v1803 = vrcp.bf16.pop %v1753
        %v1804 = vmul.bf16 1065369472, %v1803
        %v1805 = vrcp.bf16.pop %v1754
        %v1806 = vmul.bf16 1065369472, %v1805
        %v1807 = vrcp.bf16.pop %v1755
        %v1808 = vmul.bf16 1065369472, %v1807
        %v1809 = vrcp.bf16.pop %v1756
        %v1810 = vmul.bf16 1065369472, %v1809
        %v1811 = vrcp.bf16.pop %v1757
        %v1812 = vmul.bf16 1065369472, %v1811
        %v1813 = vrcp.bf16.pop %v1758
        %v1814 = vmul.bf16 1065369472, %v1813
        %v1815 = vrcp.bf16.pop %v1759
        %v1816 = vmul.bf16 1065369472, %v1815
        %v1817 = vrcp.bf16.pop %v1760
        %v1818 = vmul.bf16 1065369472, %v1817
        %v1819 = vrcp.bf16.pop %v1761
        %v1820 = vmul.bf16 1065369472, %v1819
        %v1821 = vrcp.bf16.pop %v1762
        %v1822 = vmul.bf16 1065369472, %v1821
        %v1823 = vrcp.bf16.pop %v1763
        %v1824 = vmul.bf16 1065369472, %v1823
        %v1825 = vrcp.bf16.pop %v1764
        %v1826 = vmul.bf16 1065369472, %v1825
        %v1827 = vrcp.bf16.pop %v1765
        %v1828 = vmul.bf16 1065369472, %v1827
        %v1829 = vrcp.bf16.pop %v1766
        %v1830 = vmul.bf16 1065369472, %v1829
        %v1831 = vmul.bf16 %v1575, %v1768
        %v1832 = vmul.bf16 %v1576, %v1770
        %v1833 = vmul.bf16 %v1577, %v1772
        %v1834 = vmul.bf16 %v1578, %v1774
        %v1835 = vmul.bf16 %v1579, %v1776
        %v1836 = vmul.bf16 %v1580, %v1778
        %v1837 = vmul.bf16 %v1581, %v1780
        %v1838 = vmul.bf16 %v1582, %v1782
        %v1839 = vmul.bf16 %v1583, %v1784
        %v1840 = vmul.bf16 %v1584, %v1786
        %v1841 = vmul.bf16 %v1585, %v1788
        %v1842 = vmul.bf16 %v1586, %v1790
        %v1843 = vmul.bf16 %v1587, %v1792
        %v1844 = vmul.bf16 %v1588, %v1794
        %v1845 = vmul.bf16 %v1589, %v1796
        %v1846 = vmul.bf16 %v1590, %v1798
        %v1847 = vmul.bf16 %v1591, %v1800
        %v1848 = vmul.bf16 %v1592, %v1802
        %v1849 = vmul.bf16 %v1593, %v1804
        %v1850 = vmul.bf16 %v1594, %v1806
        %v1851 = vmul.bf16 %v1595, %v1808
        %v1852 = vmul.bf16 %v1596, %v1810
        %v1853 = vmul.bf16 %v1597, %v1812
        %v1854 = vmul.bf16 %v1598, %v1814
        %v1855 = vmul.bf16 %v1599, %v1816
        %v1856 = vmul.bf16 %v1600, %v1818
        %v1857 = vmul.bf16 %v1601, %v1820
        %v1858 = vmul.bf16 %v1602, %v1822
        %v1859 = vmul.bf16 %v1603, %v1824
        %v1860 = vmul.bf16 %v1604, %v1826
        %v1861 = vmul.bf16 %v1605, %v1828
        %v1862 = vmul.bf16 %v1606, %v1830
        %v1863 = vld [vmem:[#allocation8] sm:$0xf]
        %v1864 = vld [vmem:[#allocation8 + $0x4] sm:$0xf]
        %v1865 = vld [vmem:[#allocation8 + $0x8] sm:$0xf]
        %v1866 = vld [vmem:[#allocation8 + $0xc] sm:$0xf]
        %v1867 = vld [vmem:[#allocation8 + $0x10] sm:$0xf]
        %v1868 = vld [vmem:[#allocation8 + $0x14] sm:$0xf]
        %v1869 = vld [vmem:[#allocation8 + $0x18] sm:$0xf]
        %v1870 = vld [vmem:[#allocation8 + $0x1c] sm:$0xf]
        %v1871 = vld [vmem:[#allocation8 + $0x20] sm:$0xf]
        %v1872 = vld [vmem:[#allocation8 + $0x24] sm:$0xf]
        %v1873 = vld [vmem:[#allocation8 + $0x28] sm:$0xf]
        %v1874 = vld [vmem:[#allocation8 + $0x2c] sm:$0xf]
        %v1875 = vld [vmem:[#allocation8 + $0x30] sm:$0xf]
        %v1876 = vld [vmem:[#allocation8 + $0x34] sm:$0xf]
        %v1877 = vld [vmem:[#allocation8 + $0x38] sm:$0xf]
        %v1878 = vld [vmem:[#allocation8 + $0x3c] sm:$0xf]
        %v1879 = vld [vmem:[%s5] sm:$0x1]
        %v1881 = vlaneseq
        %v1882 = vshrl.u32 %v1881, 7
        %v1883 = vsub.s32 0, %v1882
        %v1884 = vrot.slane %v1879, %v1883
        %v1902 = vunpack.c.l.b16 %v1863
        %v1903 = vunpack.c.l.b16 %v1864
        %v1904 = vunpack.c.l.b16 %v1865
        %v1905 = vunpack.c.l.b16 %v1866
        %v1906 = vunpack.c.l.b16 %v1867
        %v1907 = vunpack.c.l.b16 %v1868
        %v1908 = vunpack.c.l.b16 %v1869
        %v1909 = vunpack.c.l.b16 %v1870
        %v1910 = vunpack.c.l.b16 %v1871
        %v1911 = vunpack.c.l.b16 %v1872
        %v1912 = vunpack.c.l.b16 %v1873
        %v1913 = vunpack.c.l.b16 %v1874
        %v1914 = vunpack.c.l.b16 %v1875
        %v1915 = vunpack.c.l.b16 %v1876
        %v1916 = vunpack.c.l.b16 %v1877
        %v1917 = vunpack.c.l.b16 %v1878
        %v1918 = vpack.c.b16 %v1903, %v1902
        %v1919 = vpack.c.b16 %v1905, %v1904
        %v1920 = vpack.c.b16 %v1907, %v1906
        %v1921 = vpack.c.b16 %v1909, %v1908
        %v1922 = vpack.c.b16 %v1911, %v1910
        %v1923 = vpack.c.b16 %v1913, %v1912
        %v1924 = vpack.c.b16 %v1915, %v1914
        %v1925 = vpack.c.b16 %v1917, %v1916
        %1934 = vmatprep.subr.bf16.mxu0 0
        %1935 = vmatpush1.bf16.msra.mxu0 %v1918
        %1936 = vmatprep.subr.bf16.mxu0 0
        %1937 = vmatpush1.bf16.msra.mxu0 %v1919
        %1938 = vmatprep.subr.bf16.mxu0 0
        %1939 = vmatpush1.bf16.msra.mxu0 %v1920
        %1940 = vmatprep.subr.bf16.mxu0 0
        %1941 = vmatpush1.bf16.msra.mxu0 %v1921
        %1942 = vmatprep.subr.bf16.mxu0 0
        %1943 = vmatpush1.bf16.msra.mxu0 %v1922
        %1944 = vmatprep.subr.bf16.mxu0 0
        %1945 = vmatpush1.bf16.msra.mxu0 %v1923
        %1946 = vmatprep.subr.bf16.mxu0 0
        %1947 = vmatpush1.bf16.msra.mxu0 %v1924
        %1948 = vmatprep.subr.bf16.mxu0 0
        %1949 = vmatpush1.bf16.msra.mxu0 %v1925
        %1950 = vmatprep.subr.bf16.mxu0 0
        %1951 = vmatpush1.bf16.msra.mxu0 0
        %1952 = vmatprep.subr.bf16.mxu0 0
        %1953 = vmatpush1.bf16.msra.mxu0 0
        %1954 = vmatprep.subr.bf16.mxu0 0
        %1955 = vmatpush1.bf16.msra.mxu0 0
        %1956 = vmatprep.subr.bf16.mxu0 0
        %1957 = vmatpush1.bf16.msra.mxu0 0
        %1958 = vmatprep.subr.bf16.mxu0 0
        %1959 = vmatpush1.bf16.msra.mxu0 0
        %1960 = vmatprep.subr.bf16.mxu0 0
        %1961 = vmatpush1.bf16.msra.mxu0 0
        %1962 = vmatprep.subr.bf16.mxu0 0
        %1963 = vmatpush1.bf16.msra.mxu0 0
        %1964 = vmatprep.subr.bf16.mxu0 0
        %1965 = vmatpush1.bf16.msra.mxu0 0
        %1966 = vmatprep.mubr.bf16.mxu0 0
        %1967 = vmatmul.mubr.bf16.gmra.mrb[0].mxu0 %v1831
        %v1968 = vpop.f32.mrb[0].mxu0
        %v1969 = vadd.f32 %v1884, %v1968
        %v1970 = vpop.f32.mrb[0].mxu0
        %v1971 = vpop.f32.mrb[0].mxu0
        %v1972 = vadd.f32 %v1884, %v1971
        %v1973 = vpop.f32.mrb[0].mxu0
        %1974 = vmatprep.mubr.bf16.mxu0 0
        %1975 = vmatmul.mubr.bf16.gmra.mrb[0].mxu0 %v1832
        %v1976 = vpop.f32.mrb[0].mxu0
        %v1977 = vadd.f32 %v1884, %v1976
        %v1978 = vpop.f32.mrb[0].mxu0
        %v1979 = vpop.f32.mrb[0].mxu0
        %v1980 = vadd.f32 %v1884, %v1979
        %v1981 = vpop.f32.mrb[0].mxu0
        %1982 = vmatprep.mubr.bf16.mxu0 0
        %1983 = vmatmul.mubr.bf16.gmra.mrb[0].mxu0 %v1833
        %v1984 = vpop.f32.mrb[0].mxu0
        %v1985 = vadd.f32 %v1884, %v1984
        %v1986 = vpop.f32.mrb[0].mxu0
        %v1987 = vpop.f32.mrb[0].mxu0
        %v1988 = vadd.f32 %v1884, %v1987
        %v1989 = vpop.f32.mrb[0].mxu0
        %1990 = vmatprep.mubr.bf16.mxu0 0
        %1991 = vmatmul.mubr.bf16.gmra.mrb[0].mxu0 %v1834
        %v1992 = vpop.f32.mrb[0].mxu0
        %v1993 = vadd.f32 %v1884, %v1992
        %v1994 = vpop.f32.mrb[0].mxu0
        %v1995 = vpop.f32.mrb[0].mxu0
        %v1996 = vadd.f32 %v1884, %v1995
        %v1997 = vpop.f32.mrb[0].mxu0
        %1998 = vmatprep.mubr.bf16.mxu0 0
        %1999 = vmatmul.mubr.bf16.gmra.mrb[0].mxu0 %v1835
        %v2000 = vpop.f32.mrb[0].mxu0
        %v2001 = vadd.f32 %v1884, %v2000
        %v2002 = vpop.f32.mrb[0].mxu0
        %v2003 = vpop.f32.mrb[0].mxu0
        %v2004 = vadd.f32 %v1884, %v2003
        %v2005 = vpop.f32.mrb[0].mxu0
        %2006 = vmatprep.mubr.bf16.mxu0 0
        %2007 = vmatmul.mubr.bf16.gmra.mrb[0].mxu0 %v1836
        %v2008 = vpop.f32.mrb[0].mxu0
        %v2009 = vadd.f32 %v1884, %v2008
        %v2010 = vpop.f32.mrb[0].mxu0
        %v2011 = vpop.f32.mrb[0].mxu0
        %v2012 = vadd.f32 %v1884, %v2011
        %v2013 = vpop.f32.mrb[0].mxu0
        %2014 = vmatprep.mubr.bf16.mxu0 0
        %2015 = vmatmul.mubr.bf16.gmra.mrb[0].mxu0 %v1837
        %v2016 = vpop.f32.mrb[0].mxu0
        %v2017 = vadd.f32 %v1884, %v2016
        %v2018 = vpop.f32.mrb[0].mxu0
        %v2019 = vpop.f32.mrb[0].mxu0
        %v2020 = vadd.f32 %v1884, %v2019
        %v2021 = vpop.f32.mrb[0].mxu0
        %2022 = vmatprep.mubr.bf16.mxu0 0
        %2023 = vmatmul.mubr.bf16.gmra.mrb[0].mxu0 %v1838
        %v2024 = vpop.f32.mrb[0].mxu0
        %v2025 = vadd.f32 %v1884, %v2024
        %v2026 = vpop.f32.mrb[0].mxu0
        %v2027 = vpop.f32.mrb[0].mxu0
        %v2028 = vadd.f32 %v1884, %v2027
        %v2029 = vpop.f32.mrb[0].mxu0
        %2030 = vmatprep.mubr.bf16.mxu0 0
        %2031 = vmatmul.mubr.bf16.gmra.mrb[0].mxu0 %v1839
        %v2032 = vpop.f32.mrb[0].mxu0
        %v2033 = vadd.f32 %v1884, %v2032
        %v2034 = vpop.f32.mrb[0].mxu0
        %v2035 = vpop.f32.mrb[0].mxu0
        %v2036 = vadd.f32 %v1884, %v2035
        %v2037 = vpop.f32.mrb[0].mxu0
        %2038 = vmatprep.mubr.bf16.mxu0 0
        %2039 = vmatmul.mubr.bf16.gmra.mrb[0].mxu0 %v1840
        %v2040 = vpop.f32.mrb[0].mxu0
        %v2041 = vadd.f32 %v1884, %v2040
        %v2042 = vpop.f32.mrb[0].mxu0
        %v2043 = vpop.f32.mrb[0].mxu0
        %v2044 = vadd.f32 %v1884, %v2043
        %v2045 = vpop.f32.mrb[0].mxu0
        %2046 = vmatprep.mubr.bf16.mxu0 0
        %2047 = vmatmul.mubr.bf16.gmra.mrb[0].mxu0 %v1841
        %v2048 = vpop.f32.mrb[0].mxu0
        %v2049 = vadd.f32 %v1884, %v2048
        %v2050 = vpop.f32.mrb[0].mxu0
        %v2051 = vpop.f32.mrb[0].mxu0
        %v2052 = vadd.f32 %v1884, %v2051
        %v2053 = vpop.f32.mrb[0].mxu0
        %2054 = vmatprep.mubr.bf16.mxu0 0
        %2055 = vmatmul.mubr.bf16.gmra.mrb[0].mxu0 %v1842
        %v2056 = vpop.f32.mrb[0].mxu0
        %v2057 = vadd.f32 %v1884, %v2056
        %v2058 = vpop.f32.mrb[0].mxu0
        %v2059 = vpop.f32.mrb[0].mxu0
        %v2060 = vadd.f32 %v1884, %v2059
        %v2061 = vpop.f32.mrb[0].mxu0
        %2062 = vmatprep.mubr.bf16.mxu0 0
        %2063 = vmatmul.mubr.bf16.gmra.mrb[0].mxu0 %v1843
        %v2064 = vpop.f32.mrb[0].mxu0
        %v2065 = vadd.f32 %v1884, %v2064
        %v2066 = vpop.f32.mrb[0].mxu0
        %v2067 = vpop.f32.mrb[0].mxu0
        %v2068 = vadd.f32 %v1884, %v2067
        %v2069 = vpop.f32.mrb[0].mxu0
        %2070 = vmatprep.mubr.bf16.mxu0 0
        %2071 = vmatmul.mubr.bf16.gmra.mrb[0].mxu0 %v1844
        %v2072 = vpop.f32.mrb[0].mxu0
        %v2073 = vadd.f32 %v1884, %v2072
        %v2074 = vpop.f32.mrb[0].mxu0
        %v2075 = vpop.f32.mrb[0].mxu0
        %v2076 = vadd.f32 %v1884, %v2075
        %v2077 = vpop.f32.mrb[0].mxu0
        %2078 = vmatprep.mubr.bf16.mxu0 0
        %2079 = vmatmul.mubr.bf16.gmra.mrb[0].mxu0 %v1845
        %v2080 = vpop.f32.mrb[0].mxu0
        %v2081 = vadd.f32 %v1884, %v2080
        %v2082 = vpop.f32.mrb[0].mxu0
        %v2083 = vpop.f32.mrb[0].mxu0
        %v2084 = vadd.f32 %v1884, %v2083
        %v2085 = vpop.f32.mrb[0].mxu0
        %2086 = vmatprep.mubr.bf16.mxu0 0
        %2087 = vmatmul.mubr.bf16.gmra.mrb[0].mxu0 %v1846
        %v2088 = vpop.f32.mrb[0].mxu0
        %v2089 = vadd.f32 %v1884, %v2088
        %v2090 = vpop.f32.mrb[0].mxu0
        %v2091 = vpop.f32.mrb[0].mxu0
        %v2092 = vadd.f32 %v1884, %v2091
        %v2093 = vpop.f32.mrb[0].mxu0
        %2094 = vmatprep.mubr.bf16.mxu0 0
        %2095 = vmatmul.mubr.bf16.gmra.mrb[0].mxu0 %v1847
        %v2096 = vpop.f32.mrb[0].mxu0
        %v2097 = vadd.f32 %v1884, %v2096
        %v2098 = vpop.f32.mrb[0].mxu0
        %v2099 = vpop.f32.mrb[0].mxu0
        %v2100 = vadd.f32 %v1884, %v2099
        %v2101 = vpop.f32.mrb[0].mxu0
        %2102 = vmatprep.mubr.bf16.mxu0 0
        %2103 = vmatmul.mubr.bf16.gmra.mrb[0].mxu0 %v1848
        %v2104 = vpop.f32.mrb[0].mxu0
        %v2105 = vadd.f32 %v1884, %v2104
        %v2106 = vpop.f32.mrb[0].mxu0
        %v2107 = vpop.f32.mrb[0].mxu0
        %v2108 = vadd.f32 %v1884, %v2107
        %v2109 = vpop.f32.mrb[0].mxu0
        %2110 = vmatprep.mubr.bf16.mxu0 0
        %2111 = vmatmul.mubr.bf16.gmra.mrb[0].mxu0 %v1849
        %v2112 = vpop.f32.mrb[0].mxu0
        %v2113 = vadd.f32 %v1884, %v2112
        %v2114 = vpop.f32.mrb[0].mxu0
        %v2115 = vpop.f32.mrb[0].mxu0
        %v2116 = vadd.f32 %v1884, %v2115
        %v2117 = vpop.f32.mrb[0].mxu0
        %2118 = vmatprep.mubr.bf16.mxu0 0
        %2119 = vmatmul.mubr.bf16.gmra.mrb[0].mxu0 %v1850
        %v2120 = vpop.f32.mrb[0].mxu0
        %v2121 = vadd.f32 %v1884, %v2120
        %v2122 = vpop.f32.mrb[0].mxu0
        %v2123 = vpop.f32.mrb[0].mxu0
        %v2124 = vadd.f32 %v1884, %v2123
        %v2125 = vpop.f32.mrb[0].mxu0
        %2126 = vmatprep.mubr.bf16.mxu0 0
        %2127 = vmatmul.mubr.bf16.gmra.mrb[0].mxu0 %v1851
        %v2128 = vpop.f32.mrb[0].mxu0
        %v2129 = vadd.f32 %v1884, %v2128
        %v2130 = vpop.f32.mrb[0].mxu0
        %v2131 = vpop.f32.mrb[0].mxu0
        %v2132 = vadd.f32 %v1884, %v2131
        %v2133 = vpop.f32.mrb[0].mxu0
        %2134 = vmatprep.mubr.bf16.mxu0 0
        %2135 = vmatmul.mubr.bf16.gmra.mrb[0].mxu0 %v1852
        %v2136 = vpop.f32.mrb[0].mxu0
        %v2137 = vadd.f32 %v1884, %v2136
        %v2138 = vpop.f32.mrb[0].mxu0
        %v2139 = vpop.f32.mrb[0].mxu0
        %v2140 = vadd.f32 %v1884, %v2139
        %v2141 = vpop.f32.mrb[0].mxu0
        %2142 = vmatprep.mubr.bf16.mxu0 0
        %2143 = vmatmul.mubr.bf16.gmra.mrb[0].mxu0 %v1853
        %v2144 = vpop.f32.mrb[0].mxu0
        %v2145 = vadd.f32 %v1884, %v2144
        %v2146 = vpop.f32.mrb[0].mxu0
        %v2147 = vpop.f32.mrb[0].mxu0
        %v2148 = vadd.f32 %v1884, %v2147
        %v2149 = vpop.f32.mrb[0].mxu0
        %2150 = vmatprep.mubr.bf16.mxu0 0
        %2151 = vmatmul.mubr.bf16.gmra.mrb[0].mxu0 %v1854
        %v2152 = vpop.f32.mrb[0].mxu0
        %v2153 = vadd.f32 %v1884, %v2152
        %v2154 = vpop.f32.mrb[0].mxu0
        %v2155 = vpop.f32.mrb[0].mxu0
        %v2156 = vadd.f32 %v1884, %v2155
        %v2157 = vpop.f32.mrb[0].mxu0
        %2158 = vmatprep.mubr.bf16.mxu0 0
        %2159 = vmatmul.mubr.bf16.gmra.mrb[0].mxu0 %v1855
        %v2160 = vpop.f32.mrb[0].mxu0
        %v2161 = vadd.f32 %v1884, %v2160
        %v2162 = vpop.f32.mrb[0].mxu0
        %v2163 = vpop.f32.mrb[0].mxu0
        %v2164 = vadd.f32 %v1884, %v2163
        %v2165 = vpop.f32.mrb[0].mxu0
        %2166 = vmatprep.mubr.bf16.mxu0 0
        %2167 = vmatmul.mubr.bf16.gmra.mrb[0].mxu0 %v1856
        %v2168 = vpop.f32.mrb[0].mxu0
        %v2169 = vadd.f32 %v1884, %v2168
        %v2170 = vpop.f32.mrb[0].mxu0
        %v2171 = vpop.f32.mrb[0].mxu0
        %v2172 = vadd.f32 %v1884, %v2171
        %v2173 = vpop.f32.mrb[0].mxu0
        %2174 = vmatprep.mubr.bf16.mxu0 0
        %2175 = vmatmul.mubr.bf16.gmra.mrb[0].mxu0 %v1857
        %v2176 = vpop.f32.mrb[0].mxu0
        %v2177 = vadd.f32 %v1884, %v2176
        %v2178 = vpop.f32.mrb[0].mxu0
        %v2179 = vpop.f32.mrb[0].mxu0
        %v2180 = vadd.f32 %v1884, %v2179
        %v2181 = vpop.f32.mrb[0].mxu0
        %2182 = vmatprep.mubr.bf16.mxu0 0
        %2183 = vmatmul.mubr.bf16.gmra.mrb[0].mxu0 %v1858
        %v2184 = vpop.f32.mrb[0].mxu0
        %v2185 = vadd.f32 %v1884, %v2184
        %v2186 = vpop.f32.mrb[0].mxu0
        %v2187 = vpop.f32.mrb[0].mxu0
        %v2188 = vadd.f32 %v1884, %v2187
        %v2189 = vpop.f32.mrb[0].mxu0
        %2190 = vmatprep.mubr.bf16.mxu0 0
        %2191 = vmatmul.mubr.bf16.gmra.mrb[0].mxu0 %v1859
        %v2192 = vpop.f32.mrb[0].mxu0
        %v2193 = vadd.f32 %v1884, %v2192
        %v2194 = vpop.f32.mrb[0].mxu0
        %v2195 = vpop.f32.mrb[0].mxu0
        %v2196 = vadd.f32 %v1884, %v2195
        %v2197 = vpop.f32.mrb[0].mxu0
        %2198 = vmatprep.mubr.bf16.mxu0 0
        %2199 = vmatmul.mubr.bf16.gmra.mrb[0].mxu0 %v1860
        %v2200 = vpop.f32.mrb[0].mxu0
        %v2201 = vadd.f32 %v1884, %v2200
        %v2202 = vpop.f32.mrb[0].mxu0
        %v2203 = vpop.f32.mrb[0].mxu0
        %v2204 = vadd.f32 %v1884, %v2203
        %v2205 = vpop.f32.mrb[0].mxu0
        %2206 = vmatprep.mubr.bf16.mxu0 0
        %2207 = vmatmul.mubr.bf16.gmra.mrb[0].mxu0 %v1861
        %v2208 = vpop.f32.mrb[0].mxu0
        %v2209 = vadd.f32 %v1884, %v2208
        %v2210 = vpop.f32.mrb[0].mxu0
        %v2211 = vpop.f32.mrb[0].mxu0
        %v2212 = vadd.f32 %v1884, %v2211
        %v2213 = vpop.f32.mrb[0].mxu0
        %2214 = vmatprep.mubr.bf16.mxu0 0
        %2215 = vmatmul.mubr.bf16.gmra.mrb[0].mxu0 %v1862
        %v2216 = vpop.f32.mrb[0].mxu0
        %v2217 = vadd.f32 %v1884, %v2216
        %v2218 = vpop.f32.mrb[0].mxu0
        %v2219 = vpop.f32.mrb[0].mxu0
        %v2220 = vadd.f32 %v1884, %v2219
        %v2221 = vpop.f32.mrb[0].mxu0
        %2222 = vdwg.mxu0
        %2223 = vst [vmem:[%s313] sm:$0xff] %v1969
        %2224 = vst [vmem:[%s313 + $0x8] sm:$0xff] %v1972
        %2225 = vst [vmem:[%s313 + $0x10] sm:$0xff] %v1977
        %2226 = vst [vmem:[%s313 + $0x18] sm:$0xff] %v1980
        %2227 = vst [vmem:[%s313 + $0x20] sm:$0xff] %v1985
        %2228 = vst [vmem:[%s313 + $0x28] sm:$0xff] %v1988
        %2229 = vst [vmem:[%s313 + $0x30] sm:$0xff] %v1993
        %2230 = vst [vmem:[%s313 + $0x38] sm:$0xff] %v1996
        %2231 = vst [vmem:[%s313 + $0x40] sm:$0xff] %v2001
        %2232 = vst [vmem:[%s313 + $0x48] sm:$0xff] %v2004
        %2233 = vst [vmem:[%s313 + $0x50] sm:$0xff] %v2009
        %2234 = vst [vmem:[%s313 + $0x58] sm:$0xff] %v2012
        %2235 = vst [vmem:[%s313 + $0x60] sm:$0xff] %v2017
        %2236 = vst [vmem:[%s313 + $0x68] sm:$0xff] %v2020
        %2237 = vst [vmem:[%s313 + $0x70] sm:$0xff] %v2025
        %2238 = vst [vmem:[%s313 + $0x78] sm:$0xff] %v2028
        %2239 = vst [vmem:[%s313 + $0x80] sm:$0xff] %v2033
        %2240 = vst [vmem:[%s313 + $0x88] sm:$0xff] %v2036
        %2241 = vst [vmem:[%s313 + $0x90] sm:$0xff] %v2041
        %2242 = vst [vmem:[%s313 + $0x98] sm:$0xff] %v2044
        %2243 = vst [vmem:[%s313 + $0xa0] sm:$0xff] %v2049
        %2244 = vst [vmem:[%s313 + $0xa8] sm:$0xff] %v2052
        %2245 = vst [vmem:[%s313 + $0xb0] sm:$0xff] %v2057
        %2246 = vst [vmem:[%s313 + $0xb8] sm:$0xff] %v2060
        %2247 = vst [vmem:[%s313 + $0xc0] sm:$0xff] %v2065
        %2248 = vst [vmem:[%s313 + $0xc8] sm:$0xff] %v2068
        %2249 = vst [vmem:[%s313 + $0xd0] sm:$0xff] %v2073
        %2250 = vst [vmem:[%s313 + $0xd8] sm:$0xff] %v2076
        %2251 = vst [vmem:[%s313 + $0xe0] sm:$0xff] %v2081
        %2252 = vst [vmem:[%s313 + $0xe8] sm:$0xff] %v2084
        %2253 = vst [vmem:[%s313 + $0xf0] sm:$0xff] %v2089
        %2254 = vst [vmem:[%s313 + $0xf8] sm:$0xff] %v2092
        %2255 = vst [vmem:[%s313 + $0x100] sm:$0xff] %v2097
        %2256 = vst [vmem:[%s313 + $0x108] sm:$0xff] %v2100
        %2257 = vst [vmem:[%s313 + $0x110] sm:$0xff] %v2105
        %2258 = vst [vmem:[%s313 + $0x118] sm:$0xff] %v2108
        %2259 = vst [vmem:[%s313 + $0x120] sm:$0xff] %v2113
        %2260 = vst [vmem:[%s313 + $0x128] sm:$0xff] %v2116
        %2261 = vst [vmem:[%s313 + $0x130] sm:$0xff] %v2121
        %2262 = vst [vmem:[%s313 + $0x138] sm:$0xff] %v2124
        %2263 = vst [vmem:[%s313 + $0x140] sm:$0xff] %v2129
        %2264 = vst [vmem:[%s313 + $0x148] sm:$0xff] %v2132
        %2265 = vst [vmem:[%s313 + $0x150] sm:$0xff] %v2137
        %2266 = vst [vmem:[%s313 + $0x158] sm:$0xff] %v2140
        %2267 = vst [vmem:[%s313 + $0x160] sm:$0xff] %v2145
        %2268 = vst [vmem:[%s313 + $0x168] sm:$0xff] %v2148
        %2269 = vst [vmem:[%s313 + $0x170] sm:$0xff] %v2153
        %2270 = vst [vmem:[%s313 + $0x178] sm:$0xff] %v2156
        %2271 = vst [vmem:[%s313 + $0x180] sm:$0xff] %v2161
        %2272 = vst [vmem:[%s313 + $0x188] sm:$0xff] %v2164
        %2273 = vst [vmem:[%s313 + $0x190] sm:$0xff] %v2169
        %2274 = vst [vmem:[%s313 + $0x198] sm:$0xff] %v2172
        %2275 = vst [vmem:[%s313 + $0x1a0] sm:$0xff] %v2177
        %2276 = vst [vmem:[%s313 + $0x1a8] sm:$0xff] %v2180
        %2277 = vst [vmem:[%s313 + $0x1b0] sm:$0xff] %v2185
        %2278 = vst [vmem:[%s313 + $0x1b8] sm:$0xff] %v2188
        %2279 = vst [vmem:[%s313 + $0x1c0] sm:$0xff] %v2193
        %2280 = vst [vmem:[%s313 + $0x1c8] sm:$0xff] %v2196
        %2281 = vst [vmem:[%s313 + $0x1d0] sm:$0xff] %v2201
        %2282 = vst [vmem:[%s313 + $0x1d8] sm:$0xff] %v2204
        %2283 = vst [vmem:[%s313 + $0x1e0] sm:$0xff] %v2209
        %2284 = vst [vmem:[%s313 + $0x1e8] sm:$0xff] %v2212
        %2285 = vst [vmem:[%s313 + $0x1f0] sm:$0xff] %v2217
        %2286 = vst [vmem:[%s313 + $0x1f8] sm:$0xff] %v2220
        %s2287 = sand.u32 %s164, 1
        %s2288 = scalar_lea.sflag [#allocation4], %s2287
        %s2289 = sand.u32 %s164, 1
        %s2290 = smul.addr %s2289, 512
        %s2291 = scalar_lea.vmem [#allocation10], %s2290
        // Predicated region
        $region61: #{tpu_custom_call.1} parent=43 // pred_check
          %p2292 = pneg %p174
        $region62: #{tpu_custom_call.1} parent=43 // pred_check_branch
          %2294 = sbr.rel (%p2292) target = $region64
        $region63: #{tpu_custom_call.1} parent=43 // pred_region
          %s2295 = smul.u32 64, %s25
          %s2297 = ssub.s32 8192, 8192
          %2298 = vsyncadd %s2288, %s2297
          %s2299 = smul.addr %s2295, 128
          %s2300 = scalar_lea.hbm %s6, %s2299
          %s2301 = sshll.u32 %s2291, 4
          %s2302 = int_to_ptr.vmem [resolvable:$true] %s2301
          %2307 = dma.vmem_to_hbm [thread:$0]  %s2302, 8192, %s2300, %s2288, 128, 128, 8
        $region64: #{tpu_custom_call.1} parent=43 // pred_fallthru
          _
      $region44: #{tpu_custom_call.1} parent=5 // pred_fallthru
        _
      %p2308 = scmp.le.s32.totalorder 2, %s20
      // Predicated region
      $region65: #{tpu_custom_call.1} parent=5 // pred_check
        %p2309 = pneg %p2308
      $region66: #{tpu_custom_call.1} parent=5 // pred_check_branch
        %2311 = sbr.rel (%p2309) target = $region68
      $region67: #{tpu_custom_call.1} parent=5 // pred_region
        %s2312 = ssub.s32 %s20, 2
        // Predicated region
        $region69: #{tpu_custom_call.1} parent=67 // pred_check
          %p2313 = pneg %p180
        $region70: #{tpu_custom_call.1} parent=67 // pred_check_branch
          %2315 = sbr.rel (%p2313) target = $region72
        $region71: #{tpu_custom_call.1} parent=67 // pred_region
          %s2316 = sand.u32 %s165, 1
          %s2317 = scalar_lea.sflag [#allocation4], %s2316
          %s2318 = sand.u32 %s165, 1
          %s2319 = smul.addr %s2318, 512
          %s2320 = scalar_lea.vmem [#allocation10], %s2319
          %2321 = dma.done %s2317, 8192
        $region72: #{tpu_custom_call.1} parent=67 // pred_fallthru
          _
      $region68: #{tpu_custom_call.1} parent=5 // pred_fallthru
        _
    $region6: #{tpu_custom_call.1} parent=1 // loop_footer
      %s24 = sadd.s32 1, %s20
    $region7: #{tpu_custom_call.1} parent=1 // loop_footer_branch
      %19 = sbr.rel target = $region3
    $region8: #{tpu_custom_call.1} parent=1 // loop_exit
      _
    %2322 = vsyncpa [#allocation3], 1
    %s2323 = scalar_lea.sflag [#allocation3], 1
    %2324 = vsyncpa %s2323, 1
    %2325 = vsyncpa [#allocation6], 1
    %2326 = vsyncpa [#allocation9], 1
    %2327 = vsyncpa [#allocation4], 1
    %s2328 = scalar_lea.sflag [#allocation4], 1
    %2329 = vsyncpa %s2328, 1

</llo_original>
